<compile_context>
chip_gen: v7x
topology: tpu7x:2x2x1
jax: 0.10.0
libtpu: 0.0.40
codegen_flags: <defaults>
</compile_context>

<pallas_src>
import functools
import math

import jax
import jax.numpy as jnp
from jax.experimental import pallas as pl
from jax.experimental.pallas import tpu as pltpu

_MXU_DTYPE = jnp.float32   # set to jnp.bfloat16 on v5e/v6e for full-rate MXU


# ----------------------------------------------------------------------------- #
# In-kernel helpers
# ----------------------------------------------------------------------------- #
def _erf(z):
    # Abramowitz & Stegun 7.1.26, |error| <= 1.5e-7 (f32-exact for our purposes).
    a1, a2, a3, a4, a5 = 0.254829592, -0.284496736, 1.421413741, -1.453152027, 1.061405429
    p = 0.3275911
    az = jnp.abs(z)
    t = 1.0 / (1.0 + p * az)
    poly = ((((a5 * t + a4) * t + a3) * t + a2) * t + a1) * t
    y = 1.0 - poly * jnp.exp(-az * az)
    return jnp.where(z < 0.0, -y, y)


def _gelu_exact(x):
    # PyTorch activation='gelu' (exact erf variant).
    return 0.5 * x * (1.0 + _erf(x * 0.7071067811865476))


def _layer_norm(v, g, b, eps):
    mu = jnp.mean(v, axis=-1, keepdims=True)
    var = jnp.mean(jnp.square(v - mu), axis=-1, keepdims=True)
    return (v - mu) * jax.lax.rsqrt(var + eps) * g + b


def _mm(a, b):
    return jnp.dot(a.astype(_MXU_DTYPE), b.astype(_MXU_DTYPE),
                   preferred_element_type=jnp.float32)


# ----------------------------------------------------------------------------- #
# Single fused kernel: embeddings + n_layers transformer encoder + final norm
# ----------------------------------------------------------------------------- #
def _encoder_kernel(x_ref, tok_w_ref, tok_b_ref, pos_ref,
                    wqkv_ref, bqkv_ref, wo_ref, bo_ref,
                    ln1_g_ref, ln1_b_ref,
                    w1_ref, b1_ref, w2_ref, b2_ref,
                    ln2_g_ref, ln2_b_ref,
                    nf_g_ref, nf_b_ref,
                    o_ref, *, n_layers, n_heads, eps):
    E = tok_w_ref.shape[1]
    dh = E // n_heads
    scale = 1.0 / math.sqrt(dh)

    # Embedding: token Linear + positional table (positions == arange(T)).
    x = x_ref[0]                                                    # (T, F)
    h = _mm(x, tok_w_ref[...]) + tok_b_ref[...] + pos_ref[...]      # (T, E)

    for l in range(n_layers):
        # ---- self attention: fused QKV projection, all heads, fused out-proj ----
        qkv = _mm(h, wqkv_ref[l]) + bqkv_ref[l]                     # (T, 3E)
        q = qkv[:, 0:E]
        k = qkv[:, E:2 * E]
        v = qkv[:, 2 * E:3 * E]
        wo_l = wo_ref[l]                                            # (E, E)
        attn = bo_ref[l]                                            # (1, E) -> broadcast
        for hd in range(n_heads):
            lo, hi = hd * dh, (hd + 1) * dh
            qh, kh, vh = q[:, lo:hi], k[:, lo:hi], v[:, lo:hi]      # (T, dh)
            s = jax.lax.dot_general(
                qh.astype(_MXU_DTYPE), kh.astype(_MXU_DTYPE),
                (((1,), (1,)), ((), ())),
                preferred_element_type=jnp.float32) * scale         # (T, T)
            m = jnp.max(s, axis=-1, keepdims=True)
            p = jnp.exp(s - m)
            inv_l = pl.reciprocal(jnp.sum(p, axis=-1, keepdims=True), approx=True)
            oh = _mm(p, vh) * inv_l                                 # (T, dh)
            # Head concat folded into the output projection:
            #   concat_h(o_h) @ Wo == sum_h o_h @ Wo[h*dh:(h+1)*dh, :]
            attn = attn + _mm(oh, wo_l[lo:hi, :])
        h = _layer_norm(h + attn, ln1_g_ref[l], ln1_b_ref[l], eps)

        # ---- feed forward: Linear -> GELU -> Linear (dropout = identity) ----
        ff = _gelu_exact(_mm(h, w1_ref[l]) + b1_ref[l])
        ff = _mm(ff, w2_ref[l]) + b2_ref[l]
        h = _layer_norm(h + ff, ln2_g_ref[l], ln2_b_ref[l], eps)

    # ---- final LayerNorm of the Encoder module ----
    o_ref[0] = _layer_norm(h, nf_g_ref[...], nf_b_ref[...], eps)


def encoder_forward(params, x, *, n_heads, eps=1e-5):
    B, T, F = x.shape
    E = params["tok_w"].shape[1]
    L = params["wqkv"].shape[0]
    assert E % n_heads == 0
    pos = params["pos_embed"][:T]                                   # (T, E)

    def full(shape):
        return pl.BlockSpec(shape, lambda b: (0,) * len(shape))

    kernel = functools.partial(_encoder_kernel, n_layers=L, n_heads=n_heads, eps=eps)
    return pl.pallas_call(
        kernel,
        out_shape=jax.ShapeDtypeStruct((B, T, E), jnp.float32),
        grid=(B,),
        in_specs=[
            pl.BlockSpec((1, T, F), lambda b: (b, 0, 0)),           # x
            full((F, E)), full((1, E)), full((T, E)),               # tok_w, tok_b, pos
            full((L, E, 3 * E)), full((L, 1, 3 * E)),               # wqkv, bqkv
            full((L, E, E)), full((L, 1, E)),                       # wo, bo
            full((L, 1, E)), full((L, 1, E)),                       # ln1 gamma/beta
            full((L, E, 4 * E)), full((L, 1, 4 * E)),               # w1, b1
            full((L, 4 * E, E)), full((L, 1, E)),                   # w2, b2
            full((L, 1, E)), full((L, 1, E)),                       # ln2 gamma/beta
            full((1, E)), full((1, E)),                             # final norm gamma/beta
        ],
        out_specs=pl.BlockSpec((1, T, E), lambda b: (b, 0, 0)),
        compiler_params=pltpu.CompilerParams(
            dimension_semantics=("parallel",)),
    )(x, params["tok_w"], params["tok_b"], pos,
      params["wqkv"], params["bqkv"], params["wo"], params["bo"],
      params["ln1_g"], params["ln1_b"],
      params["w1"], params["b1"], params["w2"], params["b2"],
      params["ln2_g"], params["ln2_b"],
      params["norm_g"], params["norm_b"])


# ----------------------------------------------------------------------------- #
# Deterministic parameter initialisation (mirrors the module's init scheme)
# ----------------------------------------------------------------------------- #
def init_params(key, *, feat_dim, embed_dim, n_heads, n_layers, max_seq_len=15):
    E = embed_dim
    Fd = 4 * E
    keys = iter(jax.random.split(key, 16 + 8 * n_layers))

    def xavier(shape, gain=1.0):
        limit = gain * math.sqrt(6.0 / (shape[0] + shape[1]))
        return jax.random.uniform(next(keys), shape, jnp.float32, -limit, limit)

    def small(shape):
        return jax.random.normal(next(keys), shape, jnp.float32) * 0.02

    def stack(fn):
        return jnp.stack([fn() for _ in range(n_layers)])

    return dict(
        tok_w=xavier((feat_dim, E)),                      # xavier_uniform_, gain=1.0
        tok_b=small((1, E)),
        pos_embed=small((max_seq_len, E)),                # nn.Embedding weight
        wqkv=stack(lambda: xavier((E, 3 * E))),           # fused in_proj (Wq|Wk|Wv)
        bqkv=stack(lambda: small((1, 3 * E))),
        wo=stack(lambda: xavier((E, E))),
        bo=stack(lambda: small((1, E))),
        ln1_g=jnp.ones((n_layers, 1, E), jnp.float32),
        ln1_b=jnp.zeros((n_layers, 1, E), jnp.float32),
        w1=stack(lambda: xavier((E, Fd), gain=1.43)),     # xavier_uniform_, gain=1.43
        b1=jnp.zeros((n_layers, 1, Fd), jnp.float32),     # zeros per module init
        w2=stack(lambda: xavier((Fd, E), gain=1.0)),
        b2=jnp.zeros((n_layers, 1, E), jnp.float32),
        ln2_g=jnp.ones((n_layers, 1, E), jnp.float32),
        ln2_b=jnp.zeros((n_layers, 1, E), jnp.float32),
        norm_g=jnp.ones((1, E), jnp.float32),
        norm_b=jnp.zeros((1, E), jnp.float32),
    )


# ----------------------------------------------------------------------------- #
if __name__ == "__main__":
    key = jax.random.PRNGKey(0)

    B, T = 2, 8               # batch, sequence length
    feat_dim = 4              # v_net_feature_dim
    embed_dim = 32            # embedding_dim (divisible by n_heads)
    n_heads = 4
    n_layers = 2
    max_seq_len = 15

    k_p, k_x = jax.random.split(key)
    params = init_params(k_p, feat_dim=feat_dim, embed_dim=embed_dim,
                         n_heads=n_heads, n_layers=n_layers, max_seq_len=max_seq_len)
    x = jax.random.normal(k_x, (B, T, feat_dim), jnp.float32)

    fwd = jax.jit(functools.partial(encoder_forward, n_heads=n_heads))
    out = jax.block_until_ready(fwd(params, x))

    assert out.shape == (B, T, embed_dim), out.shape
    assert bool(jnp.all(jnp.isfinite(out)))
    print("KERNEL_OK")
</pallas_src>

<mosaic_0001>
module attributes {stable_mosaic.version = 11 : i64} {
  func.func @_encoder_kernel(%arg0: i32, %arg1: memref<1x8x4xf32, #tpu.memory_space<vmem>>, %arg2: memref<4x32xf32, #tpu.memory_space<vmem>>, %arg3: memref<1x32xf32, #tpu.memory_space<vmem>>, %arg4: memref<8x32xf32, #tpu.memory_space<vmem>>, %arg5: memref<2x32x96xf32, #tpu.memory_space<vmem>>, %arg6: memref<2x1x96xf32, #tpu.memory_space<vmem>>, %arg7: memref<2x32x32xf32, #tpu.memory_space<vmem>>, %arg8: memref<2x1x32xf32, #tpu.memory_space<vmem>>, %arg9: memref<2x1x32xf32, #tpu.memory_space<vmem>>, %arg10: memref<2x1x32xf32, #tpu.memory_space<vmem>>, %arg11: memref<2x32x128xf32, #tpu.memory_space<vmem>>, %arg12: memref<2x1x128xf32, #tpu.memory_space<vmem>>, %arg13: memref<2x128x32xf32, #tpu.memory_space<vmem>>, %arg14: memref<2x1x32xf32, #tpu.memory_space<vmem>>, %arg15: memref<2x1x32xf32, #tpu.memory_space<vmem>>, %arg16: memref<2x1x32xf32, #tpu.memory_space<vmem>>, %arg17: memref<1x32xf32, #tpu.memory_space<vmem>>, %arg18: memref<1x32xf32, #tpu.memory_space<vmem>>, %arg19: memref<1x8x32xf32, #tpu.memory_space<vmem>>) attributes {dimension_semantics = [#tpu.dimension_semantics<parallel>], iteration_bounds = array<i64: 2>, scalar_prefetch = 0 : i64, scratch_operands = 0 : i64, tpu.core_type = #tpu.core_type<tc>, window_params = [{transform_indices = @transform_0, window_bounds = array<i64: 1, 8, 4>}, {pipeline_mode = #tpu.pipeline_mode<synchronous>, transform_indices = @transform_1, window_bounds = array<i64: 4, 32>}, {pipeline_mode = #tpu.pipeline_mode<synchronous>, transform_indices = @transform_2, window_bounds = array<i64: 1, 32>}, {pipeline_mode = #tpu.pipeline_mode<synchronous>, transform_indices = @transform_3, window_bounds = array<i64: 8, 32>}, {pipeline_mode = #tpu.pipeline_mode<synchronous>, transform_indices = @transform_4, window_bounds = array<i64: 2, 32, 96>}, {pipeline_mode = #tpu.pipeline_mode<synchronous>, transform_indices = @transform_5, window_bounds = array<i64: 2, 1, 96>}, {pipeline_mode = #tpu.pipeline_mode<synchronous>, transform_indices = @transform_6, window_bounds = array<i64: 2, 32, 32>}, {pipeline_mode = #tpu.pipeline_mode<synchronous>, transform_indices = @transform_7, window_bounds = array<i64: 2, 1, 32>}, {pipeline_mode = #tpu.pipeline_mode<synchronous>, transform_indices = @transform_8, window_bounds = array<i64: 2, 1, 32>}, {pipeline_mode = #tpu.pipeline_mode<synchronous>, transform_indices = @transform_9, window_bounds = array<i64: 2, 1, 32>}, {pipeline_mode = #tpu.pipeline_mode<synchronous>, transform_indices = @transform_10, window_bounds = array<i64: 2, 32, 128>}, {pipeline_mode = #tpu.pipeline_mode<synchronous>, transform_indices = @transform_11, window_bounds = array<i64: 2, 1, 128>}, {pipeline_mode = #tpu.pipeline_mode<synchronous>, transform_indices = @transform_12, window_bounds = array<i64: 2, 128, 32>}, {pipeline_mode = #tpu.pipeline_mode<synchronous>, transform_indices = @transform_13, window_bounds = array<i64: 2, 1, 32>}, {pipeline_mode = #tpu.pipeline_mode<synchronous>, transform_indices = @transform_14, window_bounds = array<i64: 2, 1, 32>}, {pipeline_mode = #tpu.pipeline_mode<synchronous>, transform_indices = @transform_15, window_bounds = array<i64: 2, 1, 32>}, {pipeline_mode = #tpu.pipeline_mode<synchronous>, transform_indices = @transform_16, window_bounds = array<i64: 1, 32>}, {pipeline_mode = #tpu.pipeline_mode<synchronous>, transform_indices = @transform_17, window_bounds = array<i64: 1, 32>}, {transform_indices = @transform_18, window_bounds = array<i64: 1, 8, 32>}]} {
    %c0 = arith.constant 0 : index
    %c0_0 = arith.constant 0 : index
    %c0_1 = arith.constant 0 : index
    %0 = vector.load %arg1[%c0, %c0_0, %c0_1] : memref<1x8x4xf32, #tpu.memory_space<vmem>>, vector<1x8x4xf32>
    %1 = vector.shape_cast %0 : vector<1x8x4xf32> to vector<8x4xf32>
    %c0_2 = arith.constant 0 : index
    %c0_3 = arith.constant 0 : index
    %2 = vector.load %arg2[%c0_2, %c0_3] : memref<4x32xf32, #tpu.memory_space<vmem>>, vector<4x32xf32>
    %cst = arith.constant dense<0.000000e+00> : vector<8x32xf32>
    %3 = tpu.matmul %1, %2, %cst {dimension_numbers = #tpu.dot_dimension_numbers<[1], [0], [0], [1], [0, 0, 1, 1], [], []>} : vector<8x4xf32>, vector<4x32xf32>, vector<8x32xf32> -> vector<8x32xf32>
    %c0_4 = arith.constant 0 : index
    %c0_5 = arith.constant 0 : index
    %4 = vector.load %arg3[%c0_4, %c0_5] : memref<1x32xf32, #tpu.memory_space<vmem>>, vector<1x32xf32>
    %5 = vector.broadcast %4 : vector<1x32xf32> to vector<8x32xf32>
    %6 = arith.addf %3, %5 : vector<8x32xf32>
    %c0_6 = arith.constant 0 : index
    %c0_7 = arith.constant 0 : index
    %7 = vector.load %arg4[%c0_6, %c0_7] : memref<8x32xf32, #tpu.memory_space<vmem>>, vector<8x32xf32>
    %8 = arith.addf %6, %7 : vector<8x32xf32>
    %c0_8 = arith.constant 0 : index
    %c0_9 = arith.constant 0 : index
    %c0_10 = arith.constant 0 : index
    %9 = vector.load %arg5[%c0_8, %c0_9, %c0_10] : memref<2x32x96xf32, #tpu.memory_space<vmem>>, vector<1x32x96xf32>
    %10 = vector.shape_cast %9 : vector<1x32x96xf32> to vector<32x96xf32>
    %cst_11 = arith.constant dense<0.000000e+00> : vector<8x96xf32>
    %11 = tpu.matmul %8, %10, %cst_11 {dimension_numbers = #tpu.dot_dimension_numbers<[1], [0], [0], [1], [0, 0, 1, 1], [], []>} : vector<8x32xf32>, vector<32x96xf32>, vector<8x96xf32> -> vector<8x96xf32>
    %c0_12 = arith.constant 0 : index
    %c0_13 = arith.constant 0 : index
    %c0_14 = arith.constant 0 : index
    %12 = vector.load %arg6[%c0_12, %c0_13, %c0_14] : memref<2x1x96xf32, #tpu.memory_space<vmem>>, vector<1x1x96xf32>
    %13 = vector.shape_cast %12 : vector<1x1x96xf32> to vector<1x96xf32>
    %14 = vector.broadcast %13 : vector<1x96xf32> to vector<8x96xf32>
    %15 = arith.addf %11, %14 : vector<8x96xf32>
    %16 = vector.extract_strided_slice %15 {offsets = [0, 0], sizes = [8, 32], strides = [1, 1]} : vector<8x96xf32> to vector<8x32xf32>
    %17 = vector.extract_strided_slice %15 {offsets = [0, 32], sizes = [8, 32], strides = [1, 1]} : vector<8x96xf32> to vector<8x32xf32>
    %18 = vector.extract_strided_slice %15 {offsets = [0, 64], sizes = [8, 32], strides = [1, 1]} : vector<8x96xf32> to vector<8x32xf32>
    %c0_15 = arith.constant 0 : index
    %c0_16 = arith.constant 0 : index
    %c0_17 = arith.constant 0 : index
    %19 = vector.load %arg7[%c0_15, %c0_16, %c0_17] : memref<2x32x32xf32, #tpu.memory_space<vmem>>, vector<1x32x32xf32>
    %20 = vector.shape_cast %19 : vector<1x32x32xf32> to vector<32x32xf32>
    %c0_18 = arith.constant 0 : index
    %c0_19 = arith.constant 0 : index
    %c0_20 = arith.constant 0 : index
    %21 = vector.load %arg8[%c0_18, %c0_19, %c0_20] : memref<2x1x32xf32, #tpu.memory_space<vmem>>, vector<1x1x32xf32>
    %22 = vector.shape_cast %21 : vector<1x1x32xf32> to vector<1x32xf32>
    %23 = vector.extract_strided_slice %16 {offsets = [0, 0], sizes = [8, 8], strides = [1, 1]} : vector<8x32xf32> to vector<8x8xf32>
    %24 = vector.extract_strided_slice %17 {offsets = [0, 0], sizes = [8, 8], strides = [1, 1]} : vector<8x32xf32> to vector<8x8xf32>
    %25 = vector.extract_strided_slice %18 {offsets = [0, 0], sizes = [8, 8], strides = [1, 1]} : vector<8x32xf32> to vector<8x8xf32>
    %cst_21 = arith.constant dense<0.000000e+00> : vector<8x8xf32>
    %26 = tpu.matmul %23, %24, %cst_21 {dimension_numbers = #tpu.dot_dimension_numbers<[1], [1], [0], [0], [0, 0, 1, 0], [], []>} : vector<8x8xf32>, vector<8x8xf32>, vector<8x8xf32> -> vector<8x8xf32>
    %cst_22 = arith.constant 0.353553385 : f32
    %27 = vector.broadcast %cst_22 : f32 to vector<8x8xf32>
    %28 = arith.mulf %26, %27 : vector<8x8xf32>
    %cst_23 = arith.constant dense<0xFF800000> : vector<8xf32>
    %29 = vector.multi_reduction <maximumf>, %28, %cst_23 [1] : vector<8x8xf32> to vector<8xf32>
    %30 = vector.shape_cast %29 : vector<8xf32> to vector<8x1xf32>
    %31 = vector.broadcast %30 : vector<8x1xf32> to vector<8x8xf32>
    %32 = arith.subf %28, %31 : vector<8x8xf32>
    %33 = math.exp %32 : vector<8x8xf32>
    %cst_24 = arith.constant dense<0.000000e+00> : vector<8xf32>
    %34 = vector.multi_reduction <add>, %33, %cst_24 [1] : vector<8x8xf32> to vector<8xf32>
    %35 = vector.shape_cast %34 : vector<8xf32> to vector<8x1xf32>
    %36 = tpu.reciprocal %35 {approx = true} : vector<8x1xf32> -> vector<8x1xf32>
    %cst_25 = arith.constant dense<0.000000e+00> : vector<8x8xf32>
    %37 = tpu.matmul %33, %25, %cst_25 {dimension_numbers = #tpu.dot_dimension_numbers<[1], [0], [0], [1], [0, 0, 1, 1], [], []>} : vector<8x8xf32>, vector<8x8xf32>, vector<8x8xf32> -> vector<8x8xf32>
    %38 = vector.broadcast %36 : vector<8x1xf32> to vector<8x8xf32>
    %39 = arith.mulf %37, %38 : vector<8x8xf32>
    %40 = vector.extract_strided_slice %20 {offsets = [0, 0], sizes = [8, 32], strides = [1, 1]} : vector<32x32xf32> to vector<8x32xf32>
    %cst_26 = arith.constant dense<0.000000e+00> : vector<8x32xf32>
    %41 = tpu.matmul %39, %40, %cst_26 {dimension_numbers = #tpu.dot_dimension_numbers<[1], [0], [0], [1], [0, 0, 1, 1], [], []>} : vector<8x8xf32>, vector<8x32xf32>, vector<8x32xf32> -> vector<8x32xf32>
    %42 = vector.broadcast %22 : vector<1x32xf32> to vector<8x32xf32>
    %43 = arith.addf %42, %41 : vector<8x32xf32>
    %44 = vector.extract_strided_slice %16 {offsets = [0, 8], sizes = [8, 8], strides = [1, 1]} : vector<8x32xf32> to vector<8x8xf32>
    %45 = vector.extract_strided_slice %17 {offsets = [0, 8], sizes = [8, 8], strides = [1, 1]} : vector<8x32xf32> to vector<8x8xf32>
    %46 = vector.extract_strided_slice %18 {offsets = [0, 8], sizes = [8, 8], strides = [1, 1]} : vector<8x32xf32> to vector<8x8xf32>
    %cst_27 = arith.constant dense<0.000000e+00> : vector<8x8xf32>
    %47 = tpu.matmul %44, %45, %cst_27 {dimension_numbers = #tpu.dot_dimension_numbers<[1], [1], [0], [0], [0, 0, 1, 0], [], []>} : vector<8x8xf32>, vector<8x8xf32>, vector<8x8xf32> -> vector<8x8xf32>
    %cst_28 = arith.constant 0.353553385 : f32
    %48 = vector.broadcast %cst_28 : f32 to vector<8x8xf32>
    %49 = arith.mulf %47, %48 : vector<8x8xf32>
    %cst_29 = arith.constant dense<0xFF800000> : vector<8xf32>
    %50 = vector.multi_reduction <maximumf>, %49, %cst_29 [1] : vector<8x8xf32> to vector<8xf32>
    %51 = vector.shape_cast %50 : vector<8xf32> to vector<8x1xf32>
    %52 = vector.broadcast %51 : vector<8x1xf32> to vector<8x8xf32>
    %53 = arith.subf %49, %52 : vector<8x8xf32>
    %54 = math.exp %53 : vector<8x8xf32>
    %cst_30 = arith.constant dense<0.000000e+00> : vector<8xf32>
    %55 = vector.multi_reduction <add>, %54, %cst_30 [1] : vector<8x8xf32> to vector<8xf32>
    %56 = vector.shape_cast %55 : vector<8xf32> to vector<8x1xf32>
    %57 = tpu.reciprocal %56 {approx = true} : vector<8x1xf32> -> vector<8x1xf32>
    %cst_31 = arith.constant dense<0.000000e+00> : vector<8x8xf32>
    %58 = tpu.matmul %54, %46, %cst_31 {dimension_numbers = #tpu.dot_dimension_numbers<[1], [0], [0], [1], [0, 0, 1, 1], [], []>} : vector<8x8xf32>, vector<8x8xf32>, vector<8x8xf32> -> vector<8x8xf32>
    %59 = vector.broadcast %57 : vector<8x1xf32> to vector<8x8xf32>
    %60 = arith.mulf %58, %59 : vector<8x8xf32>
    %61 = vector.extract_strided_slice %20 {offsets = [8, 0], sizes = [8, 32], strides = [1, 1]} : vector<32x32xf32> to vector<8x32xf32>
    %cst_32 = arith.constant dense<0.000000e+00> : vector<8x32xf32>
    %62 = tpu.matmul %60, %61, %cst_32 {dimension_numbers = #tpu.dot_dimension_numbers<[1], [0], [0], [1], [0, 0, 1, 1], [], []>} : vector<8x8xf32>, vector<8x32xf32>, vector<8x32xf32> -> vector<8x32xf32>
    %63 = arith.addf %43, %62 : vector<8x32xf32>
    %64 = vector.extract_strided_slice %16 {offsets = [0, 16], sizes = [8, 8], strides = [1, 1]} : vector<8x32xf32> to vector<8x8xf32>
    %65 = vector.extract_strided_slice %17 {offsets = [0, 16], sizes = [8, 8], strides = [1, 1]} : vector<8x32xf32> to vector<8x8xf32>
    %66 = vector.extract_strided_slice %18 {offsets = [0, 16], sizes = [8, 8], strides = [1, 1]} : vector<8x32xf32> to vector<8x8xf32>
    %cst_33 = arith.constant dense<0.000000e+00> : vector<8x8xf32>
    %67 = tpu.matmul %64, %65, %cst_33 {dimension_numbers = #tpu.dot_dimension_numbers<[1], [1], [0], [0], [0, 0, 1, 0], [], []>} : vector<8x8xf32>, vector<8x8xf32>, vector<8x8xf32> -> vector<8x8xf32>
    %cst_34 = arith.constant 0.353553385 : f32
    %68 = vector.broadcast %cst_34 : f32 to vector<8x8xf32>
    %69 = arith.mulf %67, %68 : vector<8x8xf32>
    %cst_35 = arith.constant dense<0xFF800000> : vector<8xf32>
    %70 = vector.multi_reduction <maximumf>, %69, %cst_35 [1] : vector<8x8xf32> to vector<8xf32>
    %71 = vector.shape_cast %70 : vector<8xf32> to vector<8x1xf32>
    %72 = vector.broadcast %71 : vector<8x1xf32> to vector<8x8xf32>
    %73 = arith.subf %69, %72 : vector<8x8xf32>
    %74 = math.exp %73 : vector<8x8xf32>
    %cst_36 = arith.constant dense<0.000000e+00> : vector<8xf32>
    %75 = vector.multi_reduction <add>, %74, %cst_36 [1] : vector<8x8xf32> to vector<8xf32>
    %76 = vector.shape_cast %75 : vector<8xf32> to vector<8x1xf32>
    %77 = tpu.reciprocal %76 {approx = true} : vector<8x1xf32> -> vector<8x1xf32>
    %cst_37 = arith.constant dense<0.000000e+00> : vector<8x8xf32>
    %78 = tpu.matmul %74, %66, %cst_37 {dimension_numbers = #tpu.dot_dimension_numbers<[1], [0], [0], [1], [0, 0, 1, 1], [], []>} : vector<8x8xf32>, vector<8x8xf32>, vector<8x8xf32> -> vector<8x8xf32>
    %79 = vector.broadcast %77 : vector<8x1xf32> to vector<8x8xf32>
    %80 = arith.mulf %78, %79 : vector<8x8xf32>
    %81 = vector.extract_strided_slice %20 {offsets = [16, 0], sizes = [8, 32], strides = [1, 1]} : vector<32x32xf32> to vector<8x32xf32>
    %cst_38 = arith.constant dense<0.000000e+00> : vector<8x32xf32>
    %82 = tpu.matmul %80, %81, %cst_38 {dimension_numbers = #tpu.dot_dimension_numbers<[1], [0], [0], [1], [0, 0, 1, 1], [], []>} : vector<8x8xf32>, vector<8x32xf32>, vector<8x32xf32> -> vector<8x32xf32>
    %83 = arith.addf %63, %82 : vector<8x32xf32>
    %84 = vector.extract_strided_slice %16 {offsets = [0, 24], sizes = [8, 8], strides = [1, 1]} : vector<8x32xf32> to vector<8x8xf32>
    %85 = vector.extract_strided_slice %17 {offsets = [0, 24], sizes = [8, 8], strides = [1, 1]} : vector<8x32xf32> to vector<8x8xf32>
    %86 = vector.extract_strided_slice %18 {offsets = [0, 24], sizes = [8, 8], strides = [1, 1]} : vector<8x32xf32> to vector<8x8xf32>
    %cst_39 = arith.constant dense<0.000000e+00> : vector<8x8xf32>
    %87 = tpu.matmul %84, %85, %cst_39 {dimension_numbers = #tpu.dot_dimension_numbers<[1], [1], [0], [0], [0, 0, 1, 0], [], []>} : vector<8x8xf32>, vector<8x8xf32>, vector<8x8xf32> -> vector<8x8xf32>
    %cst_40 = arith.constant 0.353553385 : f32
    %88 = vector.broadcast %cst_40 : f32 to vector<8x8xf32>
    %89 = arith.mulf %87, %88 : vector<8x8xf32>
    %cst_41 = arith.constant dense<0xFF800000> : vector<8xf32>
    %90 = vector.multi_reduction <maximumf>, %89, %cst_41 [1] : vector<8x8xf32> to vector<8xf32>
    %91 = vector.shape_cast %90 : vector<8xf32> to vector<8x1xf32>
    %92 = vector.broadcast %91 : vector<8x1xf32> to vector<8x8xf32>
    %93 = arith.subf %89, %92 : vector<8x8xf32>
    %94 = math.exp %93 : vector<8x8xf32>
    %cst_42 = arith.constant dense<0.000000e+00> : vector<8xf32>
    %95 = vector.multi_reduction <add>, %94, %cst_42 [1] : vector<8x8xf32> to vector<8xf32>
    %96 = vector.shape_cast %95 : vector<8xf32> to vector<8x1xf32>
    %97 = tpu.reciprocal %96 {approx = true} : vector<8x1xf32> -> vector<8x1xf32>
    %cst_43 = arith.constant dense<0.000000e+00> : vector<8x8xf32>
    %98 = tpu.matmul %94, %86, %cst_43 {dimension_numbers = #tpu.dot_dimension_numbers<[1], [0], [0], [1], [0, 0, 1, 1], [], []>} : vector<8x8xf32>, vector<8x8xf32>, vector<8x8xf32> -> vector<8x8xf32>
    %99 = vector.broadcast %97 : vector<8x1xf32> to vector<8x8xf32>
    %100 = arith.mulf %98, %99 : vector<8x8xf32>
    %101 = vector.extract_strided_slice %20 {offsets = [24, 0], sizes = [8, 32], strides = [1, 1]} : vector<32x32xf32> to vector<8x32xf32>
    %cst_44 = arith.constant dense<0.000000e+00> : vector<8x32xf32>
    %102 = tpu.matmul %100, %101, %cst_44 {dimension_numbers = #tpu.dot_dimension_numbers<[1], [0], [0], [1], [0, 0, 1, 1], [], []>} : vector<8x8xf32>, vector<8x32xf32>, vector<8x32xf32> -> vector<8x32xf32>
    %103 = arith.addf %83, %102 : vector<8x32xf32>
    %104 = arith.addf %8, %103 : vector<8x32xf32>
    %c0_45 = arith.constant 0 : index
    %c0_46 = arith.constant 0 : index
    %c0_47 = arith.constant 0 : index
    %105 = vector.load %arg9[%c0_45, %c0_46, %c0_47] : memref<2x1x32xf32, #tpu.memory_space<vmem>>, vector<1x1x32xf32>
    %106 = vector.shape_cast %105 : vector<1x1x32xf32> to vector<1x32xf32>
    %c0_48 = arith.constant 0 : index
    %c0_49 = arith.constant 0 : index
    %c0_50 = arith.constant 0 : index
    %107 = vector.load %arg10[%c0_48, %c0_49, %c0_50] : memref<2x1x32xf32, #tpu.memory_space<vmem>>, vector<1x1x32xf32>
    %108 = vector.shape_cast %107 : vector<1x1x32xf32> to vector<1x32xf32>
    %cst_51 = arith.constant dense<0.000000e+00> : vector<8xf32>
    %109 = vector.multi_reduction <add>, %104, %cst_51 [1] : vector<8x32xf32> to vector<8xf32>
    %110 = vector.shape_cast %109 : vector<8xf32> to vector<8x1xf32>
    %cst_52 = arith.constant 3.200000e+01 : f32
    %111 = vector.broadcast %cst_52 : f32 to vector<8x1xf32>
    %112 = arith.divf %110, %111 : vector<8x1xf32>
    %113 = vector.broadcast %112 : vector<8x1xf32> to vector<8x32xf32>
    %114 = arith.subf %104, %113 : vector<8x32xf32>
    %115 = arith.mulf %114, %114 : vector<8x32xf32>
    %cst_53 = arith.constant dense<0.000000e+00> : vector<8xf32>
    %116 = vector.multi_reduction <add>, %115, %cst_53 [1] : vector<8x32xf32> to vector<8xf32>
    %117 = vector.shape_cast %116 : vector<8xf32> to vector<8x1xf32>
    %cst_54 = arith.constant 3.200000e+01 : f32
    %118 = vector.broadcast %cst_54 : f32 to vector<8x1xf32>
    %119 = arith.divf %117, %118 : vector<8x1xf32>
    %120 = vector.broadcast %112 : vector<8x1xf32> to vector<8x32xf32>
    %121 = arith.subf %104, %120 : vector<8x32xf32>
    %cst_55 = arith.constant 9.99999974E-6 : f32
    %122 = vector.broadcast %cst_55 : f32 to vector<8x1xf32>
    %123 = arith.addf %119, %122 : vector<8x1xf32>
    %124 = math.rsqrt %123 : vector<8x1xf32>
    %125 = vector.broadcast %124 : vector<8x1xf32> to vector<8x32xf32>
    %126 = arith.mulf %121, %125 : vector<8x32xf32>
    %127 = vector.broadcast %106 : vector<1x32xf32> to vector<8x32xf32>
    %128 = arith.mulf %126, %127 : vector<8x32xf32>
    %129 = vector.broadcast %108 : vector<1x32xf32> to vector<8x32xf32>
    %130 = arith.addf %128, %129 : vector<8x32xf32>
    %c0_56 = arith.constant 0 : index
    %c0_57 = arith.constant 0 : index
    %c0_58 = arith.constant 0 : index
    %131 = vector.load %arg11[%c0_56, %c0_57, %c0_58] : memref<2x32x128xf32, #tpu.memory_space<vmem>>, vector<1x32x128xf32>
    %132 = vector.shape_cast %131 : vector<1x32x128xf32> to vector<32x128xf32>
    %cst_59 = arith.constant dense<0.000000e+00> : vector<8x128xf32>
    %133 = tpu.matmul %130, %132, %cst_59 {dimension_numbers = #tpu.dot_dimension_numbers<[1], [0], [0], [1], [0, 0, 1, 1], [], []>} : vector<8x32xf32>, vector<32x128xf32>, vector<8x128xf32> -> vector<8x128xf32>
    %c0_60 = arith.constant 0 : index
    %c0_61 = arith.constant 0 : index
    %c0_62 = arith.constant 0 : index
    %134 = vector.load %arg12[%c0_60, %c0_61, %c0_62] : memref<2x1x128xf32, #tpu.memory_space<vmem>>, vector<1x1x128xf32>
    %135 = vector.shape_cast %134 : vector<1x1x128xf32> to vector<1x128xf32>
    %136 = vector.broadcast %135 : vector<1x128xf32> to vector<8x128xf32>
    %137 = arith.addf %133, %136 : vector<8x128xf32>
    %cst_63 = arith.constant 5.000000e-01 : f32
    %138 = vector.broadcast %cst_63 : f32 to vector<8x128xf32>
    %139 = arith.mulf %138, %137 : vector<8x128xf32>
    %cst_64 = arith.constant 0.707106769 : f32
    %140 = vector.broadcast %cst_64 : f32 to vector<8x128xf32>
    %141 = arith.mulf %137, %140 : vector<8x128xf32>
    %142 = math.absf %141 : vector<8x128xf32>
    %cst_65 = arith.constant 0.327591091 : f32
    %143 = vector.broadcast %cst_65 : f32 to vector<8x128xf32>
    %144 = arith.mulf %143, %142 : vector<8x128xf32>
    %cst_66 = arith.constant 1.000000e+00 : f32
    %145 = vector.broadcast %cst_66 : f32 to vector<8x128xf32>
    %146 = arith.addf %145, %144 : vector<8x128xf32>
    %cst_67 = arith.constant 1.000000e+00 : f32
    %147 = vector.broadcast %cst_67 : f32 to vector<8x128xf32>
    %148 = arith.divf %147, %146 : vector<8x128xf32>
    %cst_68 = arith.constant 1.06140542 : f32
    %149 = vector.broadcast %cst_68 : f32 to vector<8x128xf32>
    %150 = arith.mulf %149, %148 : vector<8x128xf32>
    %cst_69 = arith.constant -1.45315206 : f32
    %151 = vector.broadcast %cst_69 : f32 to vector<8x128xf32>
    %152 = arith.addf %150, %151 : vector<8x128xf32>
    %153 = arith.mulf %152, %148 : vector<8x128xf32>
    %cst_70 = arith.constant 1.42141378 : f32
    %154 = vector.broadcast %cst_70 : f32 to vector<8x128xf32>
    %155 = arith.addf %153, %154 : vector<8x128xf32>
    %156 = arith.mulf %155, %148 : vector<8x128xf32>
    %cst_71 = arith.constant -0.284496725 : f32
    %157 = vector.broadcast %cst_71 : f32 to vector<8x128xf32>
    %158 = arith.addf %156, %157 : vector<8x128xf32>
    %159 = arith.mulf %158, %148 : vector<8x128xf32>
    %cst_72 = arith.constant 0.254829586 : f32
    %160 = vector.broadcast %cst_72 : f32 to vector<8x128xf32>
    %161 = arith.addf %159, %160 : vector<8x128xf32>
    %162 = arith.mulf %161, %148 : vector<8x128xf32>
    %cst_73 = arith.constant 0.000000e+00 : f32
    %163 = vector.broadcast %cst_73 : f32 to vector<8x128xf32>
    %164 = arith.subf %163, %142 : vector<8x128xf32>
    %165 = arith.mulf %164, %142 : vector<8x128xf32>
    %166 = math.exp %165 : vector<8x128xf32>
    %167 = arith.mulf %162, %166 : vector<8x128xf32>
    %cst_74 = arith.constant 1.000000e+00 : f32
    %168 = vector.broadcast %cst_74 : f32 to vector<8x128xf32>
    %169 = arith.subf %168, %167 : vector<8x128xf32>
    %cst_75 = arith.constant 0.000000e+00 : f32
    %170 = vector.broadcast %cst_75 : f32 to vector<8x128xf32>
    %171 = arith.cmpf olt, %141, %170 : vector<8x128xf32>
    %cst_76 = arith.constant 0.000000e+00 : f32
    %172 = vector.broadcast %cst_76 : f32 to vector<8x128xf32>
    %173 = arith.subf %172, %169 : vector<8x128xf32>
    %174 = arith.select %171, %173, %169 : vector<8x128xi1>, vector<8x128xf32>
    %cst_77 = arith.constant 1.000000e+00 : f32
    %175 = vector.broadcast %cst_77 : f32 to vector<8x128xf32>
    %176 = arith.addf %175, %174 : vector<8x128xf32>
    %177 = arith.mulf %139, %176 : vector<8x128xf32>
    %c0_78 = arith.constant 0 : index
    %c0_79 = arith.constant 0 : index
    %c0_80 = arith.constant 0 : index
    %178 = vector.load %arg13[%c0_78, %c0_79, %c0_80] : memref<2x128x32xf32, #tpu.memory_space<vmem>>, vector<1x128x32xf32>
    %179 = vector.shape_cast %178 : vector<1x128x32xf32> to vector<128x32xf32>
    %cst_81 = arith.constant dense<0.000000e+00> : vector<8x32xf32>
    %180 = tpu.matmul %177, %179, %cst_81 {dimension_numbers = #tpu.dot_dimension_numbers<[1], [0], [0], [1], [0, 0, 1, 1], [], []>} : vector<8x128xf32>, vector<128x32xf32>, vector<8x32xf32> -> vector<8x32xf32>
    %c0_82 = arith.constant 0 : index
    %c0_83 = arith.constant 0 : index
    %c0_84 = arith.constant 0 : index
    %181 = vector.load %arg14[%c0_82, %c0_83, %c0_84] : memref<2x1x32xf32, #tpu.memory_space<vmem>>, vector<1x1x32xf32>
    %182 = vector.shape_cast %181 : vector<1x1x32xf32> to vector<1x32xf32>
    %183 = vector.broadcast %182 : vector<1x32xf32> to vector<8x32xf32>
    %184 = arith.addf %180, %183 : vector<8x32xf32>
    %185 = arith.addf %130, %184 : vector<8x32xf32>
    %c0_85 = arith.constant 0 : index
    %c0_86 = arith.constant 0 : index
    %c0_87 = arith.constant 0 : index
    %186 = vector.load %arg15[%c0_85, %c0_86, %c0_87] : memref<2x1x32xf32, #tpu.memory_space<vmem>>, vector<1x1x32xf32>
    %187 = vector.shape_cast %186 : vector<1x1x32xf32> to vector<1x32xf32>
    %c0_88 = arith.constant 0 : index
    %c0_89 = arith.constant 0 : index
    %c0_90 = arith.constant 0 : index
    %188 = vector.load %arg16[%c0_88, %c0_89, %c0_90] : memref<2x1x32xf32, #tpu.memory_space<vmem>>, vector<1x1x32xf32>
    %189 = vector.shape_cast %188 : vector<1x1x32xf32> to vector<1x32xf32>
    %cst_91 = arith.constant dense<0.000000e+00> : vector<8xf32>
    %190 = vector.multi_reduction <add>, %185, %cst_91 [1] : vector<8x32xf32> to vector<8xf32>
    %191 = vector.shape_cast %190 : vector<8xf32> to vector<8x1xf32>
    %cst_92 = arith.constant 3.200000e+01 : f32
    %192 = vector.broadcast %cst_92 : f32 to vector<8x1xf32>
    %193 = arith.divf %191, %192 : vector<8x1xf32>
    %194 = vector.broadcast %193 : vector<8x1xf32> to vector<8x32xf32>
    %195 = arith.subf %185, %194 : vector<8x32xf32>
    %196 = arith.mulf %195, %195 : vector<8x32xf32>
    %cst_93 = arith.constant dense<0.000000e+00> : vector<8xf32>
    %197 = vector.multi_reduction <add>, %196, %cst_93 [1] : vector<8x32xf32> to vector<8xf32>
    %198 = vector.shape_cast %197 : vector<8xf32> to vector<8x1xf32>
    %cst_94 = arith.constant 3.200000e+01 : f32
    %199 = vector.broadcast %cst_94 : f32 to vector<8x1xf32>
    %200 = arith.divf %198, %199 : vector<8x1xf32>
    %201 = vector.broadcast %193 : vector<8x1xf32> to vector<8x32xf32>
    %202 = arith.subf %185, %201 : vector<8x32xf32>
    %cst_95 = arith.constant 9.99999974E-6 : f32
    %203 = vector.broadcast %cst_95 : f32 to vector<8x1xf32>
    %204 = arith.addf %200, %203 : vector<8x1xf32>
    %205 = math.rsqrt %204 : vector<8x1xf32>
    %206 = vector.broadcast %205 : vector<8x1xf32> to vector<8x32xf32>
    %207 = arith.mulf %202, %206 : vector<8x32xf32>
    %208 = vector.broadcast %187 : vector<1x32xf32> to vector<8x32xf32>
    %209 = arith.mulf %207, %208 : vector<8x32xf32>
    %210 = vector.broadcast %189 : vector<1x32xf32> to vector<8x32xf32>
    %211 = arith.addf %209, %210 : vector<8x32xf32>
    %c1 = arith.constant 1 : index
    %c0_96 = arith.constant 0 : index
    %c0_97 = arith.constant 0 : index
    %212 = vector.load %arg5[%c1, %c0_96, %c0_97] : memref<2x32x96xf32, #tpu.memory_space<vmem>>, vector<1x32x96xf32>
    %213 = vector.shape_cast %212 : vector<1x32x96xf32> to vector<32x96xf32>
    %cst_98 = arith.constant dense<0.000000e+00> : vector<8x96xf32>
    %214 = tpu.matmul %211, %213, %cst_98 {dimension_numbers = #tpu.dot_dimension_numbers<[1], [0], [0], [1], [0, 0, 1, 1], [], []>} : vector<8x32xf32>, vector<32x96xf32>, vector<8x96xf32> -> vector<8x96xf32>
    %c1_99 = arith.constant 1 : index
    %c0_100 = arith.constant 0 : index
    %c0_101 = arith.constant 0 : index
    %215 = vector.load %arg6[%c1_99, %c0_100, %c0_101] : memref<2x1x96xf32, #tpu.memory_space<vmem>>, vector<1x1x96xf32>
    %216 = vector.shape_cast %215 : vector<1x1x96xf32> to vector<1x96xf32>
    %217 = vector.broadcast %216 : vector<1x96xf32> to vector<8x96xf32>
    %218 = arith.addf %214, %217 : vector<8x96xf32>
    %219 = vector.extract_strided_slice %218 {offsets = [0, 0], sizes = [8, 32], strides = [1, 1]} : vector<8x96xf32> to vector<8x32xf32>
    %220 = vector.extract_strided_slice %218 {offsets = [0, 32], sizes = [8, 32], strides = [1, 1]} : vector<8x96xf32> to vector<8x32xf32>
    %221 = vector.extract_strided_slice %218 {offsets = [0, 64], sizes = [8, 32], strides = [1, 1]} : vector<8x96xf32> to vector<8x32xf32>
    %c1_102 = arith.constant 1 : index
    %c0_103 = arith.constant 0 : index
    %c0_104 = arith.constant 0 : index
    %222 = vector.load %arg7[%c1_102, %c0_103, %c0_104] : memref<2x32x32xf32, #tpu.memory_space<vmem>>, vector<1x32x32xf32>
    %223 = vector.shape_cast %222 : vector<1x32x32xf32> to vector<32x32xf32>
    %c1_105 = arith.constant 1 : index
    %c0_106 = arith.constant 0 : index
    %c0_107 = arith.constant 0 : index
    %224 = vector.load %arg8[%c1_105, %c0_106, %c0_107] : memref<2x1x32xf32, #tpu.memory_space<vmem>>, vector<1x1x32xf32>
    %225 = vector.shape_cast %224 : vector<1x1x32xf32> to vector<1x32xf32>
    %226 = vector.extract_strided_slice %219 {offsets = [0, 0], sizes = [8, 8], strides = [1, 1]} : vector<8x32xf32> to vector<8x8xf32>
    %227 = vector.extract_strided_slice %220 {offsets = [0, 0], sizes = [8, 8], strides = [1, 1]} : vector<8x32xf32> to vector<8x8xf32>
    %228 = vector.extract_strided_slice %221 {offsets = [0, 0], sizes = [8, 8], strides = [1, 1]} : vector<8x32xf32> to vector<8x8xf32>
    %cst_108 = arith.constant dense<0.000000e+00> : vector<8x8xf32>
    %229 = tpu.matmul %226, %227, %cst_108 {dimension_numbers = #tpu.dot_dimension_numbers<[1], [1], [0], [0], [0, 0, 1, 0], [], []>} : vector<8x8xf32>, vector<8x8xf32>, vector<8x8xf32> -> vector<8x8xf32>
    %cst_109 = arith.constant 0.353553385 : f32
    %230 = vector.broadcast %cst_109 : f32 to vector<8x8xf32>
    %231 = arith.mulf %229, %230 : vector<8x8xf32>
    %cst_110 = arith.constant dense<0xFF800000> : vector<8xf32>
    %232 = vector.multi_reduction <maximumf>, %231, %cst_110 [1] : vector<8x8xf32> to vector<8xf32>
    %233 = vector.shape_cast %232 : vector<8xf32> to vector<8x1xf32>
    %234 = vector.broadcast %233 : vector<8x1xf32> to vector<8x8xf32>
    %235 = arith.subf %231, %234 : vector<8x8xf32>
    %236 = math.exp %235 : vector<8x8xf32>
    %cst_111 = arith.constant dense<0.000000e+00> : vector<8xf32>
    %237 = vector.multi_reduction <add>, %236, %cst_111 [1] : vector<8x8xf32> to vector<8xf32>
    %238 = vector.shape_cast %237 : vector<8xf32> to vector<8x1xf32>
    %239 = tpu.reciprocal %238 {approx = true} : vector<8x1xf32> -> vector<8x1xf32>
    %cst_112 = arith.constant dense<0.000000e+00> : vector<8x8xf32>
    %240 = tpu.matmul %236, %228, %cst_112 {dimension_numbers = #tpu.dot_dimension_numbers<[1], [0], [0], [1], [0, 0, 1, 1], [], []>} : vector<8x8xf32>, vector<8x8xf32>, vector<8x8xf32> -> vector<8x8xf32>
    %241 = vector.broadcast %239 : vector<8x1xf32> to vector<8x8xf32>
    %242 = arith.mulf %240, %241 : vector<8x8xf32>
    %243 = vector.extract_strided_slice %223 {offsets = [0, 0], sizes = [8, 32], strides = [1, 1]} : vector<32x32xf32> to vector<8x32xf32>
    %cst_113 = arith.constant dense<0.000000e+00> : vector<8x32xf32>
    %244 = tpu.matmul %242, %243, %cst_113 {dimension_numbers = #tpu.dot_dimension_numbers<[1], [0], [0], [1], [0, 0, 1, 1], [], []>} : vector<8x8xf32>, vector<8x32xf32>, vector<8x32xf32> -> vector<8x32xf32>
    %245 = vector.broadcast %225 : vector<1x32xf32> to vector<8x32xf32>
    %246 = arith.addf %245, %244 : vector<8x32xf32>
    %247 = vector.extract_strided_slice %219 {offsets = [0, 8], sizes = [8, 8], strides = [1, 1]} : vector<8x32xf32> to vector<8x8xf32>
    %248 = vector.extract_strided_slice %220 {offsets = [0, 8], sizes = [8, 8], strides = [1, 1]} : vector<8x32xf32> to vector<8x8xf32>
    %249 = vector.extract_strided_slice %221 {offsets = [0, 8], sizes = [8, 8], strides = [1, 1]} : vector<8x32xf32> to vector<8x8xf32>
    %cst_114 = arith.constant dense<0.000000e+00> : vector<8x8xf32>
    %250 = tpu.matmul %247, %248, %cst_114 {dimension_numbers = #tpu.dot_dimension_numbers<[1], [1], [0], [0], [0, 0, 1, 0], [], []>} : vector<8x8xf32>, vector<8x8xf32>, vector<8x8xf32> -> vector<8x8xf32>
    %cst_115 = arith.constant 0.353553385 : f32
    %251 = vector.broadcast %cst_115 : f32 to vector<8x8xf32>
    %252 = arith.mulf %250, %251 : vector<8x8xf32>
    %cst_116 = arith.constant dense<0xFF800000> : vector<8xf32>
    %253 = vector.multi_reduction <maximumf>, %252, %cst_116 [1] : vector<8x8xf32> to vector<8xf32>
    %254 = vector.shape_cast %253 : vector<8xf32> to vector<8x1xf32>
    %255 = vector.broadcast %254 : vector<8x1xf32> to vector<8x8xf32>
    %256 = arith.subf %252, %255 : vector<8x8xf32>
    %257 = math.exp %256 : vector<8x8xf32>
    %cst_117 = arith.constant dense<0.000000e+00> : vector<8xf32>
    %258 = vector.multi_reduction <add>, %257, %cst_117 [1] : vector<8x8xf32> to vector<8xf32>
    %259 = vector.shape_cast %258 : vector<8xf32> to vector<8x1xf32>
    %260 = tpu.reciprocal %259 {approx = true} : vector<8x1xf32> -> vector<8x1xf32>
    %cst_118 = arith.constant dense<0.000000e+00> : vector<8x8xf32>
    %261 = tpu.matmul %257, %249, %cst_118 {dimension_numbers = #tpu.dot_dimension_numbers<[1], [0], [0], [1], [0, 0, 1, 1], [], []>} : vector<8x8xf32>, vector<8x8xf32>, vector<8x8xf32> -> vector<8x8xf32>
    %262 = vector.broadcast %260 : vector<8x1xf32> to vector<8x8xf32>
    %263 = arith.mulf %261, %262 : vector<8x8xf32>
    %264 = vector.extract_strided_slice %223 {offsets = [8, 0], sizes = [8, 32], strides = [1, 1]} : vector<32x32xf32> to vector<8x32xf32>
    %cst_119 = arith.constant dense<0.000000e+00> : vector<8x32xf32>
    %265 = tpu.matmul %263, %264, %cst_119 {dimension_numbers = #tpu.dot_dimension_numbers<[1], [0], [0], [1], [0, 0, 1, 1], [], []>} : vector<8x8xf32>, vector<8x32xf32>, vector<8x32xf32> -> vector<8x32xf32>
    %266 = arith.addf %246, %265 : vector<8x32xf32>
    %267 = vector.extract_strided_slice %219 {offsets = [0, 16], sizes = [8, 8], strides = [1, 1]} : vector<8x32xf32> to vector<8x8xf32>
    %268 = vector.extract_strided_slice %220 {offsets = [0, 16], sizes = [8, 8], strides = [1, 1]} : vector<8x32xf32> to vector<8x8xf32>
    %269 = vector.extract_strided_slice %221 {offsets = [0, 16], sizes = [8, 8], strides = [1, 1]} : vector<8x32xf32> to vector<8x8xf32>
    %cst_120 = arith.constant dense<0.000000e+00> : vector<8x8xf32>
    %270 = tpu.matmul %267, %268, %cst_120 {dimension_numbers = #tpu.dot_dimension_numbers<[1], [1], [0], [0], [0, 0, 1, 0], [], []>} : vector<8x8xf32>, vector<8x8xf32>, vector<8x8xf32> -> vector<8x8xf32>
    %cst_121 = arith.constant 0.353553385 : f32
    %271 = vector.broadcast %cst_121 : f32 to vector<8x8xf32>
    %272 = arith.mulf %270, %271 : vector<8x8xf32>
    %cst_122 = arith.constant dense<0xFF800000> : vector<8xf32>
    %273 = vector.multi_reduction <maximumf>, %272, %cst_122 [1] : vector<8x8xf32> to vector<8xf32>
    %274 = vector.shape_cast %273 : vector<8xf32> to vector<8x1xf32>
    %275 = vector.broadcast %274 : vector<8x1xf32> to vector<8x8xf32>
    %276 = arith.subf %272, %275 : vector<8x8xf32>
    %277 = math.exp %276 : vector<8x8xf32>
    %cst_123 = arith.constant dense<0.000000e+00> : vector<8xf32>
    %278 = vector.multi_reduction <add>, %277, %cst_123 [1] : vector<8x8xf32> to vector<8xf32>
    %279 = vector.shape_cast %278 : vector<8xf32> to vector<8x1xf32>
    %280 = tpu.reciprocal %279 {approx = true} : vector<8x1xf32> -> vector<8x1xf32>
    %cst_124 = arith.constant dense<0.000000e+00> : vector<8x8xf32>
    %281 = tpu.matmul %277, %269, %cst_124 {dimension_numbers = #tpu.dot_dimension_numbers<[1], [0], [0], [1], [0, 0, 1, 1], [], []>} : vector<8x8xf32>, vector<8x8xf32>, vector<8x8xf32> -> vector<8x8xf32>
    %282 = vector.broadcast %280 : vector<8x1xf32> to vector<8x8xf32>
    %283 = arith.mulf %281, %282 : vector<8x8xf32>
    %284 = vector.extract_strided_slice %223 {offsets = [16, 0], sizes = [8, 32], strides = [1, 1]} : vector<32x32xf32> to vector<8x32xf32>
    %cst_125 = arith.constant dense<0.000000e+00> : vector<8x32xf32>
    %285 = tpu.matmul %283, %284, %cst_125 {dimension_numbers = #tpu.dot_dimension_numbers<[1], [0], [0], [1], [0, 0, 1, 1], [], []>} : vector<8x8xf32>, vector<8x32xf32>, vector<8x32xf32> -> vector<8x32xf32>
    %286 = arith.addf %266, %285 : vector<8x32xf32>
    %287 = vector.extract_strided_slice %219 {offsets = [0, 24], sizes = [8, 8], strides = [1, 1]} : vector<8x32xf32> to vector<8x8xf32>
    %288 = vector.extract_strided_slice %220 {offsets = [0, 24], sizes = [8, 8], strides = [1, 1]} : vector<8x32xf32> to vector<8x8xf32>
    %289 = vector.extract_strided_slice %221 {offsets = [0, 24], sizes = [8, 8], strides = [1, 1]} : vector<8x32xf32> to vector<8x8xf32>
    %cst_126 = arith.constant dense<0.000000e+00> : vector<8x8xf32>
    %290 = tpu.matmul %287, %288, %cst_126 {dimension_numbers = #tpu.dot_dimension_numbers<[1], [1], [0], [0], [0, 0, 1, 0], [], []>} : vector<8x8xf32>, vector<8x8xf32>, vector<8x8xf32> -> vector<8x8xf32>
    %cst_127 = arith.constant 0.353553385 : f32
    %291 = vector.broadcast %cst_127 : f32 to vector<8x8xf32>
    %292 = arith.mulf %290, %291 : vector<8x8xf32>
    %cst_128 = arith.constant dense<0xFF800000> : vector<8xf32>
    %293 = vector.multi_reduction <maximumf>, %292, %cst_128 [1] : vector<8x8xf32> to vector<8xf32>
    %294 = vector.shape_cast %293 : vector<8xf32> to vector<8x1xf32>
    %295 = vector.broadcast %294 : vector<8x1xf32> to vector<8x8xf32>
    %296 = arith.subf %292, %295 : vector<8x8xf32>
    %297 = math.exp %296 : vector<8x8xf32>
    %cst_129 = arith.constant dense<0.000000e+00> : vector<8xf32>
    %298 = vector.multi_reduction <add>, %297, %cst_129 [1] : vector<8x8xf32> to vector<8xf32>
    %299 = vector.shape_cast %298 : vector<8xf32> to vector<8x1xf32>
    %300 = tpu.reciprocal %299 {approx = true} : vector<8x1xf32> -> vector<8x1xf32>
    %cst_130 = arith.constant dense<0.000000e+00> : vector<8x8xf32>
    %301 = tpu.matmul %297, %289, %cst_130 {dimension_numbers = #tpu.dot_dimension_numbers<[1], [0], [0], [1], [0, 0, 1, 1], [], []>} : vector<8x8xf32>, vector<8x8xf32>, vector<8x8xf32> -> vector<8x8xf32>
    %302 = vector.broadcast %300 : vector<8x1xf32> to vector<8x8xf32>
    %303 = arith.mulf %301, %302 : vector<8x8xf32>
    %304 = vector.extract_strided_slice %223 {offsets = [24, 0], sizes = [8, 32], strides = [1, 1]} : vector<32x32xf32> to vector<8x32xf32>
    %cst_131 = arith.constant dense<0.000000e+00> : vector<8x32xf32>
    %305 = tpu.matmul %303, %304, %cst_131 {dimension_numbers = #tpu.dot_dimension_numbers<[1], [0], [0], [1], [0, 0, 1, 1], [], []>} : vector<8x8xf32>, vector<8x32xf32>, vector<8x32xf32> -> vector<8x32xf32>
    %306 = arith.addf %286, %305 : vector<8x32xf32>
    %307 = arith.addf %211, %306 : vector<8x32xf32>
    %c1_132 = arith.constant 1 : index
    %c0_133 = arith.constant 0 : index
    %c0_134 = arith.constant 0 : index
    %308 = vector.load %arg9[%c1_132, %c0_133, %c0_134] : memref<2x1x32xf32, #tpu.memory_space<vmem>>, vector<1x1x32xf32>
    %309 = vector.shape_cast %308 : vector<1x1x32xf32> to vector<1x32xf32>
    %c1_135 = arith.constant 1 : index
    %c0_136 = arith.constant 0 : index
    %c0_137 = arith.constant 0 : index
    %310 = vector.load %arg10[%c1_135, %c0_136, %c0_137] : memref<2x1x32xf32, #tpu.memory_space<vmem>>, vector<1x1x32xf32>
    %311 = vector.shape_cast %310 : vector<1x1x32xf32> to vector<1x32xf32>
    %cst_138 = arith.constant dense<0.000000e+00> : vector<8xf32>
    %312 = vector.multi_reduction <add>, %307, %cst_138 [1] : vector<8x32xf32> to vector<8xf32>
    %313 = vector.shape_cast %312 : vector<8xf32> to vector<8x1xf32>
    %cst_139 = arith.constant 3.200000e+01 : f32
    %314 = vector.broadcast %cst_139 : f32 to vector<8x1xf32>
    %315 = arith.divf %313, %314 : vector<8x1xf32>
    %316 = vector.broadcast %315 : vector<8x1xf32> to vector<8x32xf32>
    %317 = arith.subf %307, %316 : vector<8x32xf32>
    %318 = arith.mulf %317, %317 : vector<8x32xf32>
    %cst_140 = arith.constant dense<0.000000e+00> : vector<8xf32>
    %319 = vector.multi_reduction <add>, %318, %cst_140 [1] : vector<8x32xf32> to vector<8xf32>
    %320 = vector.shape_cast %319 : vector<8xf32> to vector<8x1xf32>
    %cst_141 = arith.constant 3.200000e+01 : f32
    %321 = vector.broadcast %cst_141 : f32 to vector<8x1xf32>
    %322 = arith.divf %320, %321 : vector<8x1xf32>
    %323 = vector.broadcast %315 : vector<8x1xf32> to vector<8x32xf32>
    %324 = arith.subf %307, %323 : vector<8x32xf32>
    %cst_142 = arith.constant 9.99999974E-6 : f32
    %325 = vector.broadcast %cst_142 : f32 to vector<8x1xf32>
    %326 = arith.addf %322, %325 : vector<8x1xf32>
    %327 = math.rsqrt %326 : vector<8x1xf32>
    %328 = vector.broadcast %327 : vector<8x1xf32> to vector<8x32xf32>
    %329 = arith.mulf %324, %328 : vector<8x32xf32>
    %330 = vector.broadcast %309 : vector<1x32xf32> to vector<8x32xf32>
    %331 = arith.mulf %329, %330 : vector<8x32xf32>
    %332 = vector.broadcast %311 : vector<1x32xf32> to vector<8x32xf32>
    %333 = arith.addf %331, %332 : vector<8x32xf32>
    %c1_143 = arith.constant 1 : index
    %c0_144 = arith.constant 0 : index
    %c0_145 = arith.constant 0 : index
    %334 = vector.load %arg11[%c1_143, %c0_144, %c0_145] : memref<2x32x128xf32, #tpu.memory_space<vmem>>, vector<1x32x128xf32>
    %335 = vector.shape_cast %334 : vector<1x32x128xf32> to vector<32x128xf32>
    %cst_146 = arith.constant dense<0.000000e+00> : vector<8x128xf32>
    %336 = tpu.matmul %333, %335, %cst_146 {dimension_numbers = #tpu.dot_dimension_numbers<[1], [0], [0], [1], [0, 0, 1, 1], [], []>} : vector<8x32xf32>, vector<32x128xf32>, vector<8x128xf32> -> vector<8x128xf32>
    %c1_147 = arith.constant 1 : index
    %c0_148 = arith.constant 0 : index
    %c0_149 = arith.constant 0 : index
    %337 = vector.load %arg12[%c1_147, %c0_148, %c0_149] : memref<2x1x128xf32, #tpu.memory_space<vmem>>, vector<1x1x128xf32>
    %338 = vector.shape_cast %337 : vector<1x1x128xf32> to vector<1x128xf32>
    %339 = vector.broadcast %338 : vector<1x128xf32> to vector<8x128xf32>
    %340 = arith.addf %336, %339 : vector<8x128xf32>
    %cst_150 = arith.constant 5.000000e-01 : f32
    %341 = vector.broadcast %cst_150 : f32 to vector<8x128xf32>
    %342 = arith.mulf %341, %340 : vector<8x128xf32>
    %cst_151 = arith.constant 0.707106769 : f32
    %343 = vector.broadcast %cst_151 : f32 to vector<8x128xf32>
    %344 = arith.mulf %340, %343 : vector<8x128xf32>
    %345 = math.absf %344 : vector<8x128xf32>
    %cst_152 = arith.constant 0.327591091 : f32
    %346 = vector.broadcast %cst_152 : f32 to vector<8x128xf32>
    %347 = arith.mulf %346, %345 : vector<8x128xf32>
    %cst_153 = arith.constant 1.000000e+00 : f32
    %348 = vector.broadcast %cst_153 : f32 to vector<8x128xf32>
    %349 = arith.addf %348, %347 : vector<8x128xf32>
    %cst_154 = arith.constant 1.000000e+00 : f32
    %350 = vector.broadcast %cst_154 : f32 to vector<8x128xf32>
    %351 = arith.divf %350, %349 : vector<8x128xf32>
    %cst_155 = arith.constant 1.06140542 : f32
    %352 = vector.broadcast %cst_155 : f32 to vector<8x128xf32>
    %353 = arith.mulf %352, %351 : vector<8x128xf32>
    %cst_156 = arith.constant -1.45315206 : f32
    %354 = vector.broadcast %cst_156 : f32 to vector<8x128xf32>
    %355 = arith.addf %353, %354 : vector<8x128xf32>
    %356 = arith.mulf %355, %351 : vector<8x128xf32>
    %cst_157 = arith.constant 1.42141378 : f32
    %357 = vector.broadcast %cst_157 : f32 to vector<8x128xf32>
    %358 = arith.addf %356, %357 : vector<8x128xf32>
    %359 = arith.mulf %358, %351 : vector<8x128xf32>
    %cst_158 = arith.constant -0.284496725 : f32
    %360 = vector.broadcast %cst_158 : f32 to vector<8x128xf32>
    %361 = arith.addf %359, %360 : vector<8x128xf32>
    %362 = arith.mulf %361, %351 : vector<8x128xf32>
    %cst_159 = arith.constant 0.254829586 : f32
    %363 = vector.broadcast %cst_159 : f32 to vector<8x128xf32>
    %364 = arith.addf %362, %363 : vector<8x128xf32>
    %365 = arith.mulf %364, %351 : vector<8x128xf32>
    %cst_160 = arith.constant 0.000000e+00 : f32
    %366 = vector.broadcast %cst_160 : f32 to vector<8x128xf32>
    %367 = arith.subf %366, %345 : vector<8x128xf32>
    %368 = arith.mulf %367, %345 : vector<8x128xf32>
    %369 = math.exp %368 : vector<8x128xf32>
    %370 = arith.mulf %365, %369 : vector<8x128xf32>
    %cst_161 = arith.constant 1.000000e+00 : f32
    %371 = vector.broadcast %cst_161 : f32 to vector<8x128xf32>
    %372 = arith.subf %371, %370 : vector<8x128xf32>
    %cst_162 = arith.constant 0.000000e+00 : f32
    %373 = vector.broadcast %cst_162 : f32 to vector<8x128xf32>
    %374 = arith.cmpf olt, %344, %373 : vector<8x128xf32>
    %cst_163 = arith.constant 0.000000e+00 : f32
    %375 = vector.broadcast %cst_163 : f32 to vector<8x128xf32>
    %376 = arith.subf %375, %372 : vector<8x128xf32>
    %377 = arith.select %374, %376, %372 : vector<8x128xi1>, vector<8x128xf32>
    %cst_164 = arith.constant 1.000000e+00 : f32
    %378 = vector.broadcast %cst_164 : f32 to vector<8x128xf32>
    %379 = arith.addf %378, %377 : vector<8x128xf32>
    %380 = arith.mulf %342, %379 : vector<8x128xf32>
    %c1_165 = arith.constant 1 : index
    %c0_166 = arith.constant 0 : index
    %c0_167 = arith.constant 0 : index
    %381 = vector.load %arg13[%c1_165, %c0_166, %c0_167] : memref<2x128x32xf32, #tpu.memory_space<vmem>>, vector<1x128x32xf32>
    %382 = vector.shape_cast %381 : vector<1x128x32xf32> to vector<128x32xf32>
    %cst_168 = arith.constant dense<0.000000e+00> : vector<8x32xf32>
    %383 = tpu.matmul %380, %382, %cst_168 {dimension_numbers = #tpu.dot_dimension_numbers<[1], [0], [0], [1], [0, 0, 1, 1], [], []>} : vector<8x128xf32>, vector<128x32xf32>, vector<8x32xf32> -> vector<8x32xf32>
    %c1_169 = arith.constant 1 : index
    %c0_170 = arith.constant 0 : index
    %c0_171 = arith.constant 0 : index
    %384 = vector.load %arg14[%c1_169, %c0_170, %c0_171] : memref<2x1x32xf32, #tpu.memory_space<vmem>>, vector<1x1x32xf32>
    %385 = vector.shape_cast %384 : vector<1x1x32xf32> to vector<1x32xf32>
    %386 = vector.broadcast %385 : vector<1x32xf32> to vector<8x32xf32>
    %387 = arith.addf %383, %386 : vector<8x32xf32>
    %388 = arith.addf %333, %387 : vector<8x32xf32>
    %c1_172 = arith.constant 1 : index
    %c0_173 = arith.constant 0 : index
    %c0_174 = arith.constant 0 : index
    %389 = vector.load %arg15[%c1_172, %c0_173, %c0_174] : memref<2x1x32xf32, #tpu.memory_space<vmem>>, vector<1x1x32xf32>
    %390 = vector.shape_cast %389 : vector<1x1x32xf32> to vector<1x32xf32>
    %c1_175 = arith.constant 1 : index
    %c0_176 = arith.constant 0 : index
    %c0_177 = arith.constant 0 : index
    %391 = vector.load %arg16[%c1_175, %c0_176, %c0_177] : memref<2x1x32xf32, #tpu.memory_space<vmem>>, vector<1x1x32xf32>
    %392 = vector.shape_cast %391 : vector<1x1x32xf32> to vector<1x32xf32>
    %cst_178 = arith.constant dense<0.000000e+00> : vector<8xf32>
    %393 = vector.multi_reduction <add>, %388, %cst_178 [1] : vector<8x32xf32> to vector<8xf32>
    %394 = vector.shape_cast %393 : vector<8xf32> to vector<8x1xf32>
    %cst_179 = arith.constant 3.200000e+01 : f32
    %395 = vector.broadcast %cst_179 : f32 to vector<8x1xf32>
    %396 = arith.divf %394, %395 : vector<8x1xf32>
    %397 = vector.broadcast %396 : vector<8x1xf32> to vector<8x32xf32>
    %398 = arith.subf %388, %397 : vector<8x32xf32>
    %399 = arith.mulf %398, %398 : vector<8x32xf32>
    %cst_180 = arith.constant dense<0.000000e+00> : vector<8xf32>
    %400 = vector.multi_reduction <add>, %399, %cst_180 [1] : vector<8x32xf32> to vector<8xf32>
    %401 = vector.shape_cast %400 : vector<8xf32> to vector<8x1xf32>
    %cst_181 = arith.constant 3.200000e+01 : f32
    %402 = vector.broadcast %cst_181 : f32 to vector<8x1xf32>
    %403 = arith.divf %401, %402 : vector<8x1xf32>
    %404 = vector.broadcast %396 : vector<8x1xf32> to vector<8x32xf32>
    %405 = arith.subf %388, %404 : vector<8x32xf32>
    %cst_182 = arith.constant 9.99999974E-6 : f32
    %406 = vector.broadcast %cst_182 : f32 to vector<8x1xf32>
    %407 = arith.addf %403, %406 : vector<8x1xf32>
    %408 = math.rsqrt %407 : vector<8x1xf32>
    %409 = vector.broadcast %408 : vector<8x1xf32> to vector<8x32xf32>
    %410 = arith.mulf %405, %409 : vector<8x32xf32>
    %411 = vector.broadcast %390 : vector<1x32xf32> to vector<8x32xf32>
    %412 = arith.mulf %410, %411 : vector<8x32xf32>
    %413 = vector.broadcast %392 : vector<1x32xf32> to vector<8x32xf32>
    %414 = arith.addf %412, %413 : vector<8x32xf32>
    %c0_183 = arith.constant 0 : index
    %c0_184 = arith.constant 0 : index
    %415 = vector.load %arg17[%c0_183, %c0_184] : memref<1x32xf32, #tpu.memory_space<vmem>>, vector<1x32xf32>
    %c0_185 = arith.constant 0 : index
    %c0_186 = arith.constant 0 : index
    %416 = vector.load %arg18[%c0_185, %c0_186] : memref<1x32xf32, #tpu.memory_space<vmem>>, vector<1x32xf32>
    %cst_187 = arith.constant dense<0.000000e+00> : vector<8xf32>
    %417 = vector.multi_reduction <add>, %414, %cst_187 [1] : vector<8x32xf32> to vector<8xf32>
    %418 = vector.shape_cast %417 : vector<8xf32> to vector<8x1xf32>
    %cst_188 = arith.constant 3.200000e+01 : f32
    %419 = vector.broadcast %cst_188 : f32 to vector<8x1xf32>
    %420 = arith.divf %418, %419 : vector<8x1xf32>
    %421 = vector.broadcast %420 : vector<8x1xf32> to vector<8x32xf32>
    %422 = arith.subf %414, %421 : vector<8x32xf32>
    %423 = arith.mulf %422, %422 : vector<8x32xf32>
    %cst_189 = arith.constant dense<0.000000e+00> : vector<8xf32>
    %424 = vector.multi_reduction <add>, %423, %cst_189 [1] : vector<8x32xf32> to vector<8xf32>
    %425 = vector.shape_cast %424 : vector<8xf32> to vector<8x1xf32>
    %cst_190 = arith.constant 3.200000e+01 : f32
    %426 = vector.broadcast %cst_190 : f32 to vector<8x1xf32>
    %427 = arith.divf %425, %426 : vector<8x1xf32>
    %428 = vector.broadcast %420 : vector<8x1xf32> to vector<8x32xf32>
    %429 = arith.subf %414, %428 : vector<8x32xf32>
    %cst_191 = arith.constant 9.99999974E-6 : f32
    %430 = vector.broadcast %cst_191 : f32 to vector<8x1xf32>
    %431 = arith.addf %427, %430 : vector<8x1xf32>
    %432 = math.rsqrt %431 : vector<8x1xf32>
    %433 = vector.broadcast %432 : vector<8x1xf32> to vector<8x32xf32>
    %434 = arith.mulf %429, %433 : vector<8x32xf32>
    %435 = vector.broadcast %415 : vector<1x32xf32> to vector<8x32xf32>
    %436 = arith.mulf %434, %435 : vector<8x32xf32>
    %437 = vector.broadcast %416 : vector<1x32xf32> to vector<8x32xf32>
    %438 = arith.addf %436, %437 : vector<8x32xf32>
    %c0_192 = arith.constant 0 : index
    %c0_193 = arith.constant 0 : index
    %c0_194 = arith.constant 0 : index
    %439 = vector.load %arg19[%c0_192, %c0_193, %c0_194] : memref<1x8x32xf32, #tpu.memory_space<vmem>>, vector<1x8x32xf32>
    %440 = vector.shape_cast %439 : vector<1x8x32xf32> to vector<8x32xf32>
    %441 = vector.shape_cast %438 : vector<8x32xf32> to vector<1x8x32xf32>
    tpu.vector_store %arg19[%c0_192, %c0_193, %c0_194], %441 {strides = array<i32>} : memref<1x8x32xf32, #tpu.memory_space<vmem>>, vector<1x8x32xf32>,
    return
  }
  func.func @transform_0(%arg0: i32) -> (i32, i32, i32) {
    %c0_i32 = arith.constant 0 : i32
    %c0_i32_0 = arith.constant 0 : i32
    %c0_i32_1 = arith.constant 0 : i32
    return %arg0, %c0_i32, %c0_i32_0 : i32, i32, i32
  }
  func.func @transform_1(%arg0: i32) -> (i32, i32) {
    %c0_i32 = arith.constant 0 : i32
    %c0_i32_0 = arith.constant 0 : i32
    %c0_i32_1 = arith.constant 0 : i32
    return %c0_i32, %c0_i32_0 : i32, i32
  }
  func.func @transform_2(%arg0: i32) -> (i32, i32) {
    %c0_i32 = arith.constant 0 : i32
    %c0_i32_0 = arith.constant 0 : i32
    %c0_i32_1 = arith.constant 0 : i32
    return %c0_i32, %c0_i32_0 : i32, i32
  }
  func.func @transform_3(%arg0: i32) -> (i32, i32) {
    %c0_i32 = arith.constant 0 : i32
    %c0_i32_0 = arith.constant 0 : i32
    %c0_i32_1 = arith.constant 0 : i32
    return %c0_i32, %c0_i32_0 : i32, i32
  }
  func.func @transform_4(%arg0: i32) -> (i32, i32, i32) {
    %c0_i32 = arith.constant 0 : i32
    %c0_i32_0 = arith.constant 0 : i32
    %c0_i32_1 = arith.constant 0 : i32
    %c0_i32_2 = arith.constant 0 : i32
    return %c0_i32, %c0_i32_0, %c0_i32_1 : i32, i32, i32
  }
  func.func @transform_5(%arg0: i32) -> (i32, i32, i32) {
    %c0_i32 = arith.constant 0 : i32
    %c0_i32_0 = arith.constant 0 : i32
    %c0_i32_1 = arith.constant 0 : i32
    %c0_i32_2 = arith.constant 0 : i32
    return %c0_i32, %c0_i32_0, %c0_i32_1 : i32, i32, i32
  }
  func.func @transform_6(%arg0: i32) -> (i32, i32, i32) {
    %c0_i32 = arith.constant 0 : i32
    %c0_i32_0 = arith.constant 0 : i32
    %c0_i32_1 = arith.constant 0 : i32
    %c0_i32_2 = arith.constant 0 : i32
    return %c0_i32, %c0_i32_0, %c0_i32_1 : i32, i32, i32
  }
  func.func @transform_7(%arg0: i32) -> (i32, i32, i32) {
    %c0_i32 = arith.constant 0 : i32
    %c0_i32_0 = arith.constant 0 : i32
    %c0_i32_1 = arith.constant 0 : i32
    %c0_i32_2 = arith.constant 0 : i32
    return %c0_i32, %c0_i32_0, %c0_i32_1 : i32, i32, i32
  }
  func.func @transform_8(%arg0: i32) -> (i32, i32, i32) {
    %c0_i32 = arith.constant 0 : i32
    %c0_i32_0 = arith.constant 0 : i32
    %c0_i32_1 = arith.constant 0 : i32
    %c0_i32_2 = arith.constant 0 : i32
    return %c0_i32, %c0_i32_0, %c0_i32_1 : i32, i32, i32
  }
  func.func @transform_9(%arg0: i32) -> (i32, i32, i32) {
    %c0_i32 = arith.constant 0 : i32
    %c0_i32_0 = arith.constant 0 : i32
    %c0_i32_1 = arith.constant 0 : i32
    %c0_i32_2 = arith.constant 0 : i32
    return %c0_i32, %c0_i32_0, %c0_i32_1 : i32, i32, i32
  }
  func.func @transform_10(%arg0: i32) -> (i32, i32, i32) {
    %c0_i32 = arith.constant 0 : i32
    %c0_i32_0 = arith.constant 0 : i32
    %c0_i32_1 = arith.constant 0 : i32
    %c0_i32_2 = arith.constant 0 : i32
    return %c0_i32, %c0_i32_0, %c0_i32_1 : i32, i32, i32
  }
  func.func @transform_11(%arg0: i32) -> (i32, i32, i32) {
    %c0_i32 = arith.constant 0 : i32
    %c0_i32_0 = arith.constant 0 : i32
    %c0_i32_1 = arith.constant 0 : i32
    %c0_i32_2 = arith.constant 0 : i32
    return %c0_i32, %c0_i32_0, %c0_i32_1 : i32, i32, i32
  }
  func.func @transform_12(%arg0: i32) -> (i32, i32, i32) {
    %c0_i32 = arith.constant 0 : i32
    %c0_i32_0 = arith.constant 0 : i32
    %c0_i32_1 = arith.constant 0 : i32
    %c0_i32_2 = arith.constant 0 : i32
    return %c0_i32, %c0_i32_0, %c0_i32_1 : i32, i32, i32
  }
  func.func @transform_13(%arg0: i32) -> (i32, i32, i32) {
    %c0_i32 = arith.constant 0 : i32
    %c0_i32_0 = arith.constant 0 : i32
    %c0_i32_1 = arith.constant 0 : i32
    %c0_i32_2 = arith.constant 0 : i32
    return %c0_i32, %c0_i32_0, %c0_i32_1 : i32, i32, i32
  }
  func.func @transform_14(%arg0: i32) -> (i32, i32, i32) {
    %c0_i32 = arith.constant 0 : i32
    %c0_i32_0 = arith.constant 0 : i32
    %c0_i32_1 = arith.constant 0 : i32
    %c0_i32_2 = arith.constant 0 : i32
    return %c0_i32, %c0_i32_0, %c0_i32_1 : i32, i32, i32
  }
  func.func @transform_15(%arg0: i32) -> (i32, i32, i32) {
    %c0_i32 = arith.constant 0 : i32
    %c0_i32_0 = arith.constant 0 : i32
    %c0_i32_1 = arith.constant 0 : i32
    %c0_i32_2 = arith.constant 0 : i32
    return %c0_i32, %c0_i32_0, %c0_i32_1 : i32, i32, i32
  }
  func.func @transform_16(%arg0: i32) -> (i32, i32) {
    %c0_i32 = arith.constant 0 : i32
    %c0_i32_0 = arith.constant 0 : i32
    %c0_i32_1 = arith.constant 0 : i32
    return %c0_i32, %c0_i32_0 : i32, i32
  }
  func.func @transform_17(%arg0: i32) -> (i32, i32) {
    %c0_i32 = arith.constant 0 : i32
    %c0_i32_0 = arith.constant 0 : i32
    %c0_i32_1 = arith.constant 0 : i32
    return %c0_i32, %c0_i32_0 : i32, i32
  }
  func.func @transform_18(%arg0: i32) -> (i32, i32, i32) {
    %c0_i32 = arith.constant 0 : i32
    %c0_i32_0 = arith.constant 0 : i32
    %c0_i32_1 = arith.constant 0 : i32
    return %arg0, %c0_i32, %c0_i32_0 : i32, i32, i32
  }
}

</mosaic_0001>

<llo_original>
// kernel: encoder_forward.1
$region0: #{encoder_forward.1}
  #allocation0 [shape = 'u32[]', space=smem, size = 0x4, offset = 0x4, fixed_abs, tag = 'smem constant byte address 0x4 - core index']
  #allocation1 [shape = 'u32[144,128]{1,0:T(1,128)}', space=vmem, size = 0x12000, scoped, tag = 'internal scratch']
  %s0 = inlined_call_operand.vmem [shape: f32[2,8,4], index: 0, kind: input, shape index: {}]
  %s1 = inlined_call_operand.vmem [shape: f32[4,32], index: 1, kind: input, shape index: {}]
  %s2 = inlined_call_operand.vmem [shape: f32[1,32], index: 2, kind: input, shape index: {}]
  %s3 = inlined_call_operand.vmem [shape: f32[8,32], index: 3, kind: input, shape index: {}]
  %s4 = inlined_call_operand.vmem [shape: f32[2,32,96], index: 4, kind: input, shape index: {}]
  %s5 = inlined_call_operand.vmem [shape: f32[2,1,96], index: 5, kind: input, shape index: {}]
  %s6 = inlined_call_operand.vmem [shape: f32[2,32,32], index: 6, kind: input, shape index: {}]
  %s7 = inlined_call_operand.vmem [shape: f32[2,1,32], index: 7, kind: input, shape index: {}]
  %s8 = inlined_call_operand.vmem [shape: f32[2,1,32], index: 8, kind: input, shape index: {}]
  %s9 = inlined_call_operand.vmem [shape: f32[2,1,32], index: 9, kind: input, shape index: {}]
  %s10 = inlined_call_operand.vmem [shape: f32[2,32,128], index: 10, kind: input, shape index: {}]
  %s11 = inlined_call_operand.vmem [shape: f32[2,1,128], index: 11, kind: input, shape index: {}]
  %s12 = inlined_call_operand.vmem [shape: f32[2,128,32], index: 12, kind: input, shape index: {}]
  %s13 = inlined_call_operand.vmem [shape: f32[2,1,32], index: 13, kind: input, shape index: {}]
  %s14 = inlined_call_operand.vmem [shape: f32[2,1,32], index: 14, kind: input, shape index: {}]
  %s15 = inlined_call_operand.vmem [shape: f32[2,1,32], index: 15, kind: input, shape index: {}]
  %s16 = inlined_call_operand.vmem [shape: f32[1,32], index: 16, kind: input, shape index: {}]
  %s17 = inlined_call_operand.vmem [shape: f32[1,32], index: 17, kind: input, shape index: {}]
  %s18 = inlined_call_operand.hbm [shape: f32[2,8,32], index: 18, kind: output, shape index: {}]
  %s19 = sld [smem:[#allocation0]]
  $region105: #{encoder_forward.1} parent=0
    _
  %s21 = ssub.s32 1, %s19
  %s22 = scalar_select 0, %s21, %s19
  $region1: #{encoder_forward.1} parent=0
    #allocation2 [shape = 'u8[8192]{0}', space=vmem, size = 0x2000, scoped, tag = 'output window, operand 0']
    #allocation3 [shape = 's32[2]{0}', space=sflag, size = 0x8, scoped, tag = 'scoped memory for encoder_forward.1']
    %23 = vsyncpa [#allocation3], 0
    %s24 = scalar_lea.sflag [#allocation3], 1
    %25 = vsyncpa %s24, 0
    loop: start=0, step=1, limit=4
    $region2: #{encoder_forward.1} parent=1 // loop_pre_header
      _
    $region3: #{encoder_forward.1} parent=1 // loop_header
      %s27 = sphi 0, %s31
      %p28 = scmp.ge.s32.totalorder %s27, 4
      %s37 = sphi 0, %s39
      %s40 = sphi 0, %s37
      %s41 = sphi 0, %s40
      %s57 = sphi 0, %s41
      %s61 = sphi 0, %s61
      %s63 = sphi 0, %s61
      %s64 = sphi 0, %s63
      %s78 = sphi 0, %s64
      %s82 = sphi 0, %s82
      %s84 = sphi 0, %s82
      %s85 = sphi 0, %s84
      %s99 = sphi 0, %s85
      %s103 = sphi 0, %s103
      %s105 = sphi 0, %s103
      %s106 = sphi 0, %s105
      %s120 = sphi 0, %s106
      %s124 = sphi 0, %s124
      %s126 = sphi 0, %s124
      %s127 = sphi 0, %s126
      %s141 = sphi 0, %s127
      %s145 = sphi 0, %s145
      %s147 = sphi 0, %s145
      %s148 = sphi 0, %s147
      %s162 = sphi 0, %s148
      %s166 = sphi 0, %s166
      %s168 = sphi 0, %s166
      %s169 = sphi 0, %s168
      %s183 = sphi 0, %s169
      %s187 = sphi 0, %s187
      %s189 = sphi 0, %s187
      %s190 = sphi 0, %s189
      %s204 = sphi 0, %s190
      %s208 = sphi 0, %s208
      %s210 = sphi 0, %s208
      %s211 = sphi 0, %s210
      %s225 = sphi 0, %s211
      %s229 = sphi 0, %s229
      %s231 = sphi 0, %s229
      %s232 = sphi 0, %s231
      %s246 = sphi 0, %s232
      %s250 = sphi 0, %s250
      %s252 = sphi 0, %s250
      %s253 = sphi 0, %s252
      %s267 = sphi 0, %s253
      %s271 = sphi 0, %s271
      %s273 = sphi 0, %s271
      %s274 = sphi 0, %s273
      %s288 = sphi 0, %s274
      %s292 = sphi 0, %s292
      %s294 = sphi 0, %s292
      %s295 = sphi 0, %s294
      %s309 = sphi 0, %s295
      %s313 = sphi 0, %s313
      %s315 = sphi 0, %s313
      %s316 = sphi 0, %s315
      %s330 = sphi 0, %s316
      %s334 = sphi 0, %s334
      %s336 = sphi 0, %s334
      %s337 = sphi 0, %s336
      %s351 = sphi 0, %s337
      %s355 = sphi 0, %s355
      %s357 = sphi 0, %s355
      %s358 = sphi 0, %s357
      %s372 = sphi 0, %s358
      %s376 = sphi 0, %s376
      %s378 = sphi 0, %s376
      %s379 = sphi 0, %s378
      %s393 = sphi 0, %s379
      %s397 = sphi 0, %s397
      %s399 = sphi 0, %s397
      %s400 = sphi 0, %s399
      %s414 = sphi 0, %s400
      %s420 = sphi 0, %s422
      %s423 = sphi 0, %s420
      %s424 = sphi 0, %s423
      %s440 = sphi 0, %s424
    $region4: #{encoder_forward.1} parent=1 // loop_header_branch
      %30 = sbr.rel (%p28) target = $region8
    $region5: #{encoder_forward.1} parent=1 // loop_body
      %s32 = ssub.s32 %s27, 1
      %s33 = ssub.s32 %s27, 2
      %s34 = sadd.s32 %s27, 1
      %s35 = ssub.s32 %s27, %s34
      %p36 = scmp.eq.s32.totalorder %s35, 0
      %s38 = sadd.s32 %s37, 1
      %s39 = scalar_select %p36, %s37, %s38
      %p42 = pneg %p36
      %p43 = scmp.eq.s32.totalorder %s27, 1
      %p44 = por %p42, %p43
      %p45 = scmp.ne.s32.totalorder %s37, %s40
      %p46 = scmp.eq.s32.totalorder %s27, 0
      %p47 = por %p45, %p46
      %p48 = scmp.ne.s32.totalorder %s37, %s40
      %p49 = scmp.eq.s32.totalorder %s32, 1
      %p50 = por %p48, %p49
      %p51 = scmp.ne.s32.totalorder %s40, %s41
      %p52 = scmp.eq.s32.totalorder %s32, 0
      %p53 = por %p51, %p52
      %p54 = scmp.ne.s32.totalorder %s40, %s41
      %p55 = scmp.eq.s32.totalorder %s33, 1
      %p56 = por %p54, %p55
      %p58 = scmp.ne.s32.totalorder %s41, %s57
      %p59 = scmp.eq.s32.totalorder %s33, 0
      %p60 = por %p58, %p59
      %s62 = sadd.s32 %s61, 1
      %p65 = scmp.eq.s32.totalorder %s27, 1
      %p66 = scmp.ne.s32.totalorder %s61, %s63
      %p67 = scmp.eq.s32.totalorder %s27, 0
      %p68 = por %p66, %p67
      %p69 = scmp.ne.s32.totalorder %s61, %s63
      %p70 = scmp.eq.s32.totalorder %s32, 1
      %p71 = por %p69, %p70
      %p72 = scmp.ne.s32.totalorder %s63, %s64
      %p73 = scmp.eq.s32.totalorder %s32, 0
      %p74 = por %p72, %p73
      %p75 = scmp.ne.s32.totalorder %s63, %s64
      %p76 = scmp.eq.s32.totalorder %s33, 1
      %p77 = por %p75, %p76
      %p79 = scmp.ne.s32.totalorder %s64, %s78
      %p80 = scmp.eq.s32.totalorder %s33, 0
      %p81 = por %p79, %p80
      %s83 = sadd.s32 %s82, 1
      %p86 = scmp.eq.s32.totalorder %s27, 1
      %p87 = scmp.ne.s32.totalorder %s82, %s84
      %p88 = scmp.eq.s32.totalorder %s27, 0
      %p89 = por %p87, %p88
      %p90 = scmp.ne.s32.totalorder %s82, %s84
      %p91 = scmp.eq.s32.totalorder %s32, 1
      %p92 = por %p90, %p91
      %p93 = scmp.ne.s32.totalorder %s84, %s85
      %p94 = scmp.eq.s32.totalorder %s32, 0
      %p95 = por %p93, %p94
      %p96 = scmp.ne.s32.totalorder %s84, %s85
      %p97 = scmp.eq.s32.totalorder %s33, 1
      %p98 = por %p96, %p97
      %p100 = scmp.ne.s32.totalorder %s85, %s99
      %p101 = scmp.eq.s32.totalorder %s33, 0
      %p102 = por %p100, %p101
      %s104 = sadd.s32 %s103, 1
      %p107 = scmp.eq.s32.totalorder %s27, 1
      %p108 = scmp.ne.s32.totalorder %s103, %s105
      %p109 = scmp.eq.s32.totalorder %s27, 0
      %p110 = por %p108, %p109
      %p111 = scmp.ne.s32.totalorder %s103, %s105
      %p112 = scmp.eq.s32.totalorder %s32, 1
      %p113 = por %p111, %p112
      %p114 = scmp.ne.s32.totalorder %s105, %s106
      %p115 = scmp.eq.s32.totalorder %s32, 0
      %p116 = por %p114, %p115
      %p117 = scmp.ne.s32.totalorder %s105, %s106
      %p118 = scmp.eq.s32.totalorder %s33, 1
      %p119 = por %p117, %p118
      %p121 = scmp.ne.s32.totalorder %s106, %s120
      %p122 = scmp.eq.s32.totalorder %s33, 0
      %p123 = por %p121, %p122
      %s125 = sadd.s32 %s124, 1
      %p128 = scmp.eq.s32.totalorder %s27, 1
      %p129 = scmp.ne.s32.totalorder %s124, %s126
      %p130 = scmp.eq.s32.totalorder %s27, 0
      %p131 = por %p129, %p130
      %p132 = scmp.ne.s32.totalorder %s124, %s126
      %p133 = scmp.eq.s32.totalorder %s32, 1
      %p134 = por %p132, %p133
      %p135 = scmp.ne.s32.totalorder %s126, %s127
      %p136 = scmp.eq.s32.totalorder %s32, 0
      %p137 = por %p135, %p136
      %p138 = scmp.ne.s32.totalorder %s126, %s127
      %p139 = scmp.eq.s32.totalorder %s33, 1
      %p140 = por %p138, %p139
      %p142 = scmp.ne.s32.totalorder %s127, %s141
      %p143 = scmp.eq.s32.totalorder %s33, 0
      %p144 = por %p142, %p143
      %s146 = sadd.s32 %s145, 1
      %p149 = scmp.eq.s32.totalorder %s27, 1
      %p150 = scmp.ne.s32.totalorder %s145, %s147
      %p151 = scmp.eq.s32.totalorder %s27, 0
      %p152 = por %p150, %p151
      %p153 = scmp.ne.s32.totalorder %s145, %s147
      %p154 = scmp.eq.s32.totalorder %s32, 1
      %p155 = por %p153, %p154
      %p156 = scmp.ne.s32.totalorder %s147, %s148
      %p157 = scmp.eq.s32.totalorder %s32, 0
      %p158 = por %p156, %p157
      %p159 = scmp.ne.s32.totalorder %s147, %s148
      %p160 = scmp.eq.s32.totalorder %s33, 1
      %p161 = por %p159, %p160
      %p163 = scmp.ne.s32.totalorder %s148, %s162
      %p164 = scmp.eq.s32.totalorder %s33, 0
      %p165 = por %p163, %p164
      %s167 = sadd.s32 %s166, 1
      %p170 = scmp.eq.s32.totalorder %s27, 1
      %p171 = scmp.ne.s32.totalorder %s166, %s168
      %p172 = scmp.eq.s32.totalorder %s27, 0
      %p173 = por %p171, %p172
      %p174 = scmp.ne.s32.totalorder %s166, %s168
      %p175 = scmp.eq.s32.totalorder %s32, 1
      %p176 = por %p174, %p175
      %p177 = scmp.ne.s32.totalorder %s168, %s169
      %p178 = scmp.eq.s32.totalorder %s32, 0
      %p179 = por %p177, %p178
      %p180 = scmp.ne.s32.totalorder %s168, %s169
      %p181 = scmp.eq.s32.totalorder %s33, 1
      %p182 = por %p180, %p181
      %p184 = scmp.ne.s32.totalorder %s169, %s183
      %p185 = scmp.eq.s32.totalorder %s33, 0
      %p186 = por %p184, %p185
      %s188 = sadd.s32 %s187, 1
      %p191 = scmp.eq.s32.totalorder %s27, 1
      %p192 = scmp.ne.s32.totalorder %s187, %s189
      %p193 = scmp.eq.s32.totalorder %s27, 0
      %p194 = por %p192, %p193
      %p195 = scmp.ne.s32.totalorder %s187, %s189
      %p196 = scmp.eq.s32.totalorder %s32, 1
      %p197 = por %p195, %p196
      %p198 = scmp.ne.s32.totalorder %s189, %s190
      %p199 = scmp.eq.s32.totalorder %s32, 0
      %p200 = por %p198, %p199
      %p201 = scmp.ne.s32.totalorder %s189, %s190
      %p202 = scmp.eq.s32.totalorder %s33, 1
      %p203 = por %p201, %p202
      %p205 = scmp.ne.s32.totalorder %s190, %s204
      %p206 = scmp.eq.s32.totalorder %s33, 0
      %p207 = por %p205, %p206
      %s209 = sadd.s32 %s208, 1
      %p212 = scmp.eq.s32.totalorder %s27, 1
      %p213 = scmp.ne.s32.totalorder %s208, %s210
      %p214 = scmp.eq.s32.totalorder %s27, 0
      %p215 = por %p213, %p214
      %p216 = scmp.ne.s32.totalorder %s208, %s210
      %p217 = scmp.eq.s32.totalorder %s32, 1
      %p218 = por %p216, %p217
      %p219 = scmp.ne.s32.totalorder %s210, %s211
      %p220 = scmp.eq.s32.totalorder %s32, 0
      %p221 = por %p219, %p220
      %p222 = scmp.ne.s32.totalorder %s210, %s211
      %p223 = scmp.eq.s32.totalorder %s33, 1
      %p224 = por %p222, %p223
      %p226 = scmp.ne.s32.totalorder %s211, %s225
      %p227 = scmp.eq.s32.totalorder %s33, 0
      %p228 = por %p226, %p227
      %s230 = sadd.s32 %s229, 1
      %p233 = scmp.eq.s32.totalorder %s27, 1
      %p234 = scmp.ne.s32.totalorder %s229, %s231
      %p235 = scmp.eq.s32.totalorder %s27, 0
      %p236 = por %p234, %p235
      %p237 = scmp.ne.s32.totalorder %s229, %s231
      %p238 = scmp.eq.s32.totalorder %s32, 1
      %p239 = por %p237, %p238
      %p240 = scmp.ne.s32.totalorder %s231, %s232
      %p241 = scmp.eq.s32.totalorder %s32, 0
      %p242 = por %p240, %p241
      %p243 = scmp.ne.s32.totalorder %s231, %s232
      %p244 = scmp.eq.s32.totalorder %s33, 1
      %p245 = por %p243, %p244
      %p247 = scmp.ne.s32.totalorder %s232, %s246
      %p248 = scmp.eq.s32.totalorder %s33, 0
      %p249 = por %p247, %p248
      %s251 = sadd.s32 %s250, 1
      %p254 = scmp.eq.s32.totalorder %s27, 1
      %p255 = scmp.ne.s32.totalorder %s250, %s252
      %p256 = scmp.eq.s32.totalorder %s27, 0
      %p257 = por %p255, %p256
      %p258 = scmp.ne.s32.totalorder %s250, %s252
      %p259 = scmp.eq.s32.totalorder %s32, 1
      %p260 = por %p258, %p259
      %p261 = scmp.ne.s32.totalorder %s252, %s253
      %p262 = scmp.eq.s32.totalorder %s32, 0
      %p263 = por %p261, %p262
      %p264 = scmp.ne.s32.totalorder %s252, %s253
      %p265 = scmp.eq.s32.totalorder %s33, 1
      %p266 = por %p264, %p265
      %p268 = scmp.ne.s32.totalorder %s253, %s267
      %p269 = scmp.eq.s32.totalorder %s33, 0
      %p270 = por %p268, %p269
      %s272 = sadd.s32 %s271, 1
      %p275 = scmp.eq.s32.totalorder %s27, 1
      %p276 = scmp.ne.s32.totalorder %s271, %s273
      %p277 = scmp.eq.s32.totalorder %s27, 0
      %p278 = por %p276, %p277
      %p279 = scmp.ne.s32.totalorder %s271, %s273
      %p280 = scmp.eq.s32.totalorder %s32, 1
      %p281 = por %p279, %p280
      %p282 = scmp.ne.s32.totalorder %s273, %s274
      %p283 = scmp.eq.s32.totalorder %s32, 0
      %p284 = por %p282, %p283
      %p285 = scmp.ne.s32.totalorder %s273, %s274
      %p286 = scmp.eq.s32.totalorder %s33, 1
      %p287 = por %p285, %p286
      %p289 = scmp.ne.s32.totalorder %s274, %s288
      %p290 = scmp.eq.s32.totalorder %s33, 0
      %p291 = por %p289, %p290
      %s293 = sadd.s32 %s292, 1
      %p296 = scmp.eq.s32.totalorder %s27, 1
      %p297 = scmp.ne.s32.totalorder %s292, %s294
      %p298 = scmp.eq.s32.totalorder %s27, 0
      %p299 = por %p297, %p298
      %p300 = scmp.ne.s32.totalorder %s292, %s294
      %p301 = scmp.eq.s32.totalorder %s32, 1
      %p302 = por %p300, %p301
      %p303 = scmp.ne.s32.totalorder %s294, %s295
      %p304 = scmp.eq.s32.totalorder %s32, 0
      %p305 = por %p303, %p304
      %p306 = scmp.ne.s32.totalorder %s294, %s295
      %p307 = scmp.eq.s32.totalorder %s33, 1
      %p308 = por %p306, %p307
      %p310 = scmp.ne.s32.totalorder %s295, %s309
      %p311 = scmp.eq.s32.totalorder %s33, 0
      %p312 = por %p310, %p311
      %s314 = sadd.s32 %s313, 1
      %p317 = scmp.eq.s32.totalorder %s27, 1
      %p318 = scmp.ne.s32.totalorder %s313, %s315
      %p319 = scmp.eq.s32.totalorder %s27, 0
      %p320 = por %p318, %p319
      %p321 = scmp.ne.s32.totalorder %s313, %s315
      %p322 = scmp.eq.s32.totalorder %s32, 1
      %p323 = por %p321, %p322
      %p324 = scmp.ne.s32.totalorder %s315, %s316
      %p325 = scmp.eq.s32.totalorder %s32, 0
      %p326 = por %p324, %p325
      %p327 = scmp.ne.s32.totalorder %s315, %s316
      %p328 = scmp.eq.s32.totalorder %s33, 1
      %p329 = por %p327, %p328
      %p331 = scmp.ne.s32.totalorder %s316, %s330
      %p332 = scmp.eq.s32.totalorder %s33, 0
      %p333 = por %p331, %p332
      %s335 = sadd.s32 %s334, 1
      %p338 = scmp.eq.s32.totalorder %s27, 1
      %p339 = scmp.ne.s32.totalorder %s334, %s336
      %p340 = scmp.eq.s32.totalorder %s27, 0
      %p341 = por %p339, %p340
      %p342 = scmp.ne.s32.totalorder %s334, %s336
      %p343 = scmp.eq.s32.totalorder %s32, 1
      %p344 = por %p342, %p343
      %p345 = scmp.ne.s32.totalorder %s336, %s337
      %p346 = scmp.eq.s32.totalorder %s32, 0
      %p347 = por %p345, %p346
      %p348 = scmp.ne.s32.totalorder %s336, %s337
      %p349 = scmp.eq.s32.totalorder %s33, 1
      %p350 = por %p348, %p349
      %p352 = scmp.ne.s32.totalorder %s337, %s351
      %p353 = scmp.eq.s32.totalorder %s33, 0
      %p354 = por %p352, %p353
      %s356 = sadd.s32 %s355, 1
      %p359 = scmp.eq.s32.totalorder %s27, 1
      %p360 = scmp.ne.s32.totalorder %s355, %s357
      %p361 = scmp.eq.s32.totalorder %s27, 0
      %p362 = por %p360, %p361
      %p363 = scmp.ne.s32.totalorder %s355, %s357
      %p364 = scmp.eq.s32.totalorder %s32, 1
      %p365 = por %p363, %p364
      %p366 = scmp.ne.s32.totalorder %s357, %s358
      %p367 = scmp.eq.s32.totalorder %s32, 0
      %p368 = por %p366, %p367
      %p369 = scmp.ne.s32.totalorder %s357, %s358
      %p370 = scmp.eq.s32.totalorder %s33, 1
      %p371 = por %p369, %p370
      %p373 = scmp.ne.s32.totalorder %s358, %s372
      %p374 = scmp.eq.s32.totalorder %s33, 0
      %p375 = por %p373, %p374
      %s377 = sadd.s32 %s376, 1
      %p380 = scmp.eq.s32.totalorder %s27, 1
      %p381 = scmp.ne.s32.totalorder %s376, %s378
      %p382 = scmp.eq.s32.totalorder %s27, 0
      %p383 = por %p381, %p382
      %p384 = scmp.ne.s32.totalorder %s376, %s378
      %p385 = scmp.eq.s32.totalorder %s32, 1
      %p386 = por %p384, %p385
      %p387 = scmp.ne.s32.totalorder %s378, %s379
      %p388 = scmp.eq.s32.totalorder %s32, 0
      %p389 = por %p387, %p388
      %p390 = scmp.ne.s32.totalorder %s378, %s379
      %p391 = scmp.eq.s32.totalorder %s33, 1
      %p392 = por %p390, %p391
      %p394 = scmp.ne.s32.totalorder %s379, %s393
      %p395 = scmp.eq.s32.totalorder %s33, 0
      %p396 = por %p394, %p395
      %s398 = sadd.s32 %s397, 1
      %p401 = scmp.eq.s32.totalorder %s27, 1
      %p402 = scmp.ne.s32.totalorder %s397, %s399
      %p403 = scmp.eq.s32.totalorder %s27, 0
      %p404 = por %p402, %p403
      %p405 = scmp.ne.s32.totalorder %s397, %s399
      %p406 = scmp.eq.s32.totalorder %s32, 1
      %p407 = por %p405, %p406
      %p408 = scmp.ne.s32.totalorder %s399, %s400
      %p409 = scmp.eq.s32.totalorder %s32, 0
      %p410 = por %p408, %p409
      %p411 = scmp.ne.s32.totalorder %s399, %s400
      %p412 = scmp.eq.s32.totalorder %s33, 1
      %p413 = por %p411, %p412
      %p415 = scmp.ne.s32.totalorder %s400, %s414
      %p416 = scmp.eq.s32.totalorder %s33, 0
      %p417 = por %p415, %p416
      %s418 = ssub.s32 %s27, %s34
      %p419 = scmp.eq.s32.totalorder %s418, 0
      %s421 = sadd.s32 %s420, 1
      %s422 = scalar_select %p419, %s420, %s421
      %p425 = pneg %p419
      %p426 = scmp.eq.s32.totalorder %s27, 1
      %p427 = por %p425, %p426
      %p428 = scmp.ne.s32.totalorder %s420, %s423
      %p429 = scmp.eq.s32.totalorder %s27, 0
      %p430 = por %p428, %p429
      %p431 = scmp.ne.s32.totalorder %s420, %s423
      %p432 = scmp.eq.s32.totalorder %s32, 1
      %p433 = por %p431, %p432
      %p434 = scmp.ne.s32.totalorder %s423, %s424
      %p435 = scmp.eq.s32.totalorder %s32, 0
      %p436 = por %p434, %p435
      %p437 = scmp.ne.s32.totalorder %s423, %s424
      %p438 = scmp.eq.s32.totalorder %s33, 1
      %p439 = por %p437, %p438
      %p441 = scmp.ne.s32.totalorder %s424, %s440
      %p442 = scmp.eq.s32.totalorder %s33, 0
      %p443 = por %p441, %p442
      %p444 = scmp.le.s32.totalorder 1, %s27
      %p445 = scmp.lt.s32.totalorder %s27, 3
      %p446 = pnand %p444, %p445
      %p447 = pneg %p446
      // Predicated region
      $region9: #{encoder_forward.1} parent=5 // pred_check
        _
      $region10: #{encoder_forward.1} parent=5 // pred_check_branch
        %449 = sbr.rel (%p446) target = $region12
      $region11: #{encoder_forward.1} parent=5 // pred_region
        %s450 = ssub.s32 %s27, 1
        // Predicated region
        $region13: #{encoder_forward.1} parent=11 // pred_check
          %p451 = pneg %p74
        $region14: #{encoder_forward.1} parent=11 // pred_check_branch
          %453 = sbr.rel (%p451) target = $region16
        $region15: #{encoder_forward.1} parent=11 // pred_region
          _
        $region16: #{encoder_forward.1} parent=11 // pred_fallthru
          _
        // Predicated region
        $region17: #{encoder_forward.1} parent=11 // pred_check
          %p454 = pneg %p95
        $region18: #{encoder_forward.1} parent=11 // pred_check_branch
          %456 = sbr.rel (%p454) target = $region20
        $region19: #{encoder_forward.1} parent=11 // pred_region
          _
        $region20: #{encoder_forward.1} parent=11 // pred_fallthru
          _
        // Predicated region
        $region21: #{encoder_forward.1} parent=11 // pred_check
          %p457 = pneg %p116
        $region22: #{encoder_forward.1} parent=11 // pred_check_branch
          %459 = sbr.rel (%p457) target = $region24
        $region23: #{encoder_forward.1} parent=11 // pred_region
          _
        $region24: #{encoder_forward.1} parent=11 // pred_fallthru
          _
        // Predicated region
        $region25: #{encoder_forward.1} parent=11 // pred_check
          %p460 = pneg %p137
        $region26: #{encoder_forward.1} parent=11 // pred_check_branch
          %462 = sbr.rel (%p460) target = $region28
        $region27: #{encoder_forward.1} parent=11 // pred_region
          _
        $region28: #{encoder_forward.1} parent=11 // pred_fallthru
          _
        // Predicated region
        $region29: #{encoder_forward.1} parent=11 // pred_check
          %p463 = pneg %p158
        $region30: #{encoder_forward.1} parent=11 // pred_check_branch
          %465 = sbr.rel (%p463) target = $region32
        $region31: #{encoder_forward.1} parent=11 // pred_region
          _
        $region32: #{encoder_forward.1} parent=11 // pred_fallthru
          _
        // Predicated region
        $region33: #{encoder_forward.1} parent=11 // pred_check
          %p466 = pneg %p179
        $region34: #{encoder_forward.1} parent=11 // pred_check_branch
          %468 = sbr.rel (%p466) target = $region36
        $region35: #{encoder_forward.1} parent=11 // pred_region
          _
        $region36: #{encoder_forward.1} parent=11 // pred_fallthru
          _
        // Predicated region
        $region37: #{encoder_forward.1} parent=11 // pred_check
          %p469 = pneg %p200
        $region38: #{encoder_forward.1} parent=11 // pred_check_branch
          %471 = sbr.rel (%p469) target = $region40
        $region39: #{encoder_forward.1} parent=11 // pred_region
          _
        $region40: #{encoder_forward.1} parent=11 // pred_fallthru
          _
        // Predicated region
        $region41: #{encoder_forward.1} parent=11 // pred_check
          %p472 = pneg %p221
        $region42: #{encoder_forward.1} parent=11 // pred_check_branch
          %474 = sbr.rel (%p472) target = $region44
        $region43: #{encoder_forward.1} parent=11 // pred_region
          _
        $region44: #{encoder_forward.1} parent=11 // pred_fallthru
          _
        // Predicated region
        $region45: #{encoder_forward.1} parent=11 // pred_check
          %p475 = pneg %p242
        $region46: #{encoder_forward.1} parent=11 // pred_check_branch
          %477 = sbr.rel (%p475) target = $region48
        $region47: #{encoder_forward.1} parent=11 // pred_region
          _
        $region48: #{encoder_forward.1} parent=11 // pred_fallthru
          _
        // Predicated region
        $region49: #{encoder_forward.1} parent=11 // pred_check
          %p478 = pneg %p263
        $region50: #{encoder_forward.1} parent=11 // pred_check_branch
          %480 = sbr.rel (%p478) target = $region52
        $region51: #{encoder_forward.1} parent=11 // pred_region
          _
        $region52: #{encoder_forward.1} parent=11 // pred_fallthru
          _
        // Predicated region
        $region53: #{encoder_forward.1} parent=11 // pred_check
          %p481 = pneg %p284
        $region54: #{encoder_forward.1} parent=11 // pred_check_branch
          %483 = sbr.rel (%p481) target = $region56
        $region55: #{encoder_forward.1} parent=11 // pred_region
          _
        $region56: #{encoder_forward.1} parent=11 // pred_fallthru
          _
        // Predicated region
        $region57: #{encoder_forward.1} parent=11 // pred_check
          %p484 = pneg %p305
        $region58: #{encoder_forward.1} parent=11 // pred_check_branch
          %486 = sbr.rel (%p484) target = $region60
        $region59: #{encoder_forward.1} parent=11 // pred_region
          _
        $region60: #{encoder_forward.1} parent=11 // pred_fallthru
          _
        // Predicated region
        $region61: #{encoder_forward.1} parent=11 // pred_check
          %p487 = pneg %p326
        $region62: #{encoder_forward.1} parent=11 // pred_check_branch
          %489 = sbr.rel (%p487) target = $region64
        $region63: #{encoder_forward.1} parent=11 // pred_region
          _
        $region64: #{encoder_forward.1} parent=11 // pred_fallthru
          _
        // Predicated region
        $region65: #{encoder_forward.1} parent=11 // pred_check
          %p490 = pneg %p347
        $region66: #{encoder_forward.1} parent=11 // pred_check_branch
          %492 = sbr.rel (%p490) target = $region68
        $region67: #{encoder_forward.1} parent=11 // pred_region
          _
        $region68: #{encoder_forward.1} parent=11 // pred_fallthru
          _
        // Predicated region
        $region69: #{encoder_forward.1} parent=11 // pred_check
          %p493 = pneg %p368
        $region70: #{encoder_forward.1} parent=11 // pred_check_branch
          %495 = sbr.rel (%p493) target = $region72
        $region71: #{encoder_forward.1} parent=11 // pred_region
          _
        $region72: #{encoder_forward.1} parent=11 // pred_fallthru
          _
        // Predicated region
        $region73: #{encoder_forward.1} parent=11 // pred_check
          %p496 = pneg %p389
        $region74: #{encoder_forward.1} parent=11 // pred_check_branch
          %498 = sbr.rel (%p496) target = $region76
        $region75: #{encoder_forward.1} parent=11 // pred_region
          _
        $region76: #{encoder_forward.1} parent=11 // pred_fallthru
          _
        // Predicated region
        $region77: #{encoder_forward.1} parent=11 // pred_check
          %p499 = pneg %p410
        $region78: #{encoder_forward.1} parent=11 // pred_check_branch
          %501 = sbr.rel (%p499) target = $region80
        $region79: #{encoder_forward.1} parent=11 // pred_region
          _
        $region80: #{encoder_forward.1} parent=11 // pred_fallthru
          _
      $region12: #{encoder_forward.1} parent=5 // pred_fallthru
        _
      %p502 = scmp.lt.s32.totalorder %s27, 2
      // Predicated region
      $region81: #{encoder_forward.1} parent=5 // pred_check
        %p503 = pneg %p502
      $region82: #{encoder_forward.1} parent=5 // pred_check_branch
        %505 = sbr.rel (%p503) target = $region84
      $region83: #{encoder_forward.1} parent=5 // pred_region
        // Predicated region
        $region85: #{encoder_forward.1} parent=83 // pred_check
          %p506 = pneg %p47
        $region86: #{encoder_forward.1} parent=83 // pred_check_branch
          %508 = sbr.rel (%p506) target = $region88
        $region87: #{encoder_forward.1} parent=83 // pred_region
          %p509 = scmp.lt.s32.totalorder %s27, 1
          %s510 = scalar_select %p509, %s27, 1
          %s511 = smul.addr %s510, 8
          %s512 = scalar_lea.vmem %s0, %s511
        $region88: #{encoder_forward.1} parent=83 // pred_fallthru
          _
      $region84: #{encoder_forward.1} parent=5 // pred_fallthru
        _
      %p513 = scmp.le.s32.totalorder 1, %s27
      %p514 = scmp.lt.s32.totalorder %s27, 3
      %p515 = pnand %p513, %p514
      %p516 = pneg %p515
      // Predicated region
      $region89: #{encoder_forward.1} parent=5 // pred_check
        _
      $region90: #{encoder_forward.1} parent=5 // pred_check_branch
        %518 = sbr.rel (%p515) target = $region92
      $region91: #{encoder_forward.1} parent=5 // pred_region
        %s519 = ssub.s32 %s27, 1
        %p520 = scmp.lt.s32.totalorder %s32, 1
        %s521 = scalar_select %p520, %s32, 1
        %s522 = smul.addr %s521, 8
        %s523 = scalar_lea.vmem %s0, %s522
        %p524 = pneg %p53
        %p525 = pneg %p50
        %p526 = pneg %p74
        %p527 = pneg %p71
        %p528 = pneg %p95
        %p529 = pneg %p92
        %p530 = pneg %p116
        %p531 = pneg %p113
        %p532 = pneg %p137
        %p533 = pneg %p134
        %p534 = pneg %p158
        %p535 = pneg %p155
        %p536 = pneg %p179
        %p537 = pneg %p176
        %p538 = pneg %p200
        %p539 = pneg %p197
        %p540 = pneg %p221
        %p541 = pneg %p218
        %p542 = pneg %p242
        %p543 = pneg %p239
        %p544 = pneg %p263
        %p545 = pneg %p260
        %p546 = pneg %p284
        %p547 = pneg %p281
        %p548 = pneg %p305
        %p549 = pneg %p302
        %p550 = pneg %p326
        %p551 = pneg %p323
        %p552 = pneg %p347
        %p553 = pneg %p344
        %p554 = pneg %p368
        %p555 = pneg %p365
        %p556 = pneg %p389
        %p557 = pneg %p386
        %p558 = pneg %p410
        %p559 = pneg %p407
        %p560 = pneg %p436
        %p561 = pneg %p433
        %s562 = sand.u32 %s423, 1
        %s563 = scalar_lea.sflag [#allocation3], %s562
        %s564 = sand.u32 %s423, 1
        %s565 = smul.addr %s564, 8
        %s566 = scalar_lea.vmem [#allocation2], %s565
        %p567 = scmp.lt.s32.totalorder %s32, 1
        %s568 = scalar_select %p567, %s32, 1
        %s569 = smul.addr %s568, 8
        %s570 = scalar_lea.vmem %s0, %s569
        %v571 = vld [vmem:[%s570] sm:$0xff]
        %v572 = vld [vmem:[%s1] sm:$0xf]
        %v573 = vld [vmem:[%s2] sm:$0x1]
        %v575 = vlaneseq
        %v576 = vshrl.u32 %v575, 7
        %v577 = vsub.s32 0, %v576
        %v578 = vrot.slane %v573, %v577
        %vm580 = vcmask 31744
        %v582 = vsel %vm580, %v571, 0
        %vm584 = vcmask 1043456
        %v586 = vsel %vm584, %v572, 0
        %588 = vmatprep.subr.mxu0 0.0
        %589 = vmatpush1.msra.mxu0 %v586
        %590 = vmatprep.subr.mxu0 0.0
        %591 = vmatpush1.msra.mxu0 0.0
        %592 = vmatprep.subr.mxu0 0.0
        %593 = vmatpush1.msra.mxu0 0.0
        %594 = vmatprep.subr.mxu0 0.0
        %595 = vmatpush1.msra.mxu0 0.0
        %596 = vmatprep.subr.mxu0 0.0
        %597 = vmatpush1.msra.mxu0 0.0
        %598 = vmatprep.subr.mxu0 0.0
        %599 = vmatpush1.msra.mxu0 0.0
        %600 = vmatprep.subr.mxu0 0.0
        %601 = vmatpush1.msra.mxu0 0.0
        %602 = vmatprep.subr.mxu0 0.0
        %603 = vmatpush1.msra.mxu0 0.0
        %604 = vmatprep.subr.mxu0 0.0
        %605 = vmatpush1.msra.mxu0 0.0
        %606 = vmatprep.subr.mxu0 0.0
        %607 = vmatpush1.msra.mxu0 0.0
        %608 = vmatprep.subr.mxu0 0.0
        %609 = vmatpush1.msra.mxu0 0.0
        %610 = vmatprep.subr.mxu0 0.0
        %611 = vmatpush1.msra.mxu0 0.0
        %612 = vmatprep.subr.mxu0 0.0
        %613 = vmatpush1.msra.mxu0 0.0
        %614 = vmatprep.subr.mxu0 0.0
        %615 = vmatpush1.msra.mxu0 0.0
        %616 = vmatprep.subr.mxu0 0.0
        %617 = vmatpush1.msra.mxu0 0.0
        %618 = vmatprep.subr.mxu0 0.0
        %619 = vmatpush1.msra.mxu0 0.0
        %620 = vmatprep.subr.mxu0 0.0
        %621 = vmatpush1.msra.mxu0 0.0
        %622 = vmatprep.subr.mxu0 0.0
        %623 = vmatpush1.msra.mxu0 0.0
        %624 = vmatprep.subr.mxu0 0.0
        %625 = vmatpush1.msra.mxu0 0.0
        %626 = vmatprep.subr.mxu0 0.0
        %627 = vmatpush1.msra.mxu0 0.0
        %628 = vmatprep.subr.mxu0 0.0
        %629 = vmatpush1.msra.mxu0 0.0
        %630 = vmatprep.subr.mxu0 0.0
        %631 = vmatpush1.msra.mxu0 0.0
        %632 = vmatprep.subr.mxu0 0.0
        %633 = vmatpush1.msra.mxu0 0.0
        %634 = vmatprep.subr.mxu0 0.0
        %635 = vmatpush1.msra.mxu0 0.0
        %636 = vmatprep.subr.mxu0 0.0
        %637 = vmatpush1.msra.mxu0 0.0
        %638 = vmatprep.subr.mxu0 0.0
        %639 = vmatpush1.msra.mxu0 0.0
        %640 = vmatprep.subr.mxu0 0.0
        %641 = vmatpush1.msra.mxu0 0.0
        %642 = vmatprep.subr.mxu0 0.0
        %643 = vmatpush1.msra.mxu0 0.0
        %644 = vmatprep.subr.mxu0 0.0
        %645 = vmatpush1.msra.mxu0 0.0
        %646 = vmatprep.subr.mxu0 0.0
        %647 = vmatpush1.msra.mxu0 0.0
        %648 = vmatprep.subr.mxu0 0.0
        %649 = vmatpush1.msra.mxu0 0.0
        %650 = vmatprep.subr.mxu0 0.0
        %651 = vmatpush1.msra.mxu0 0.0
        %652 = vmatprep.mubr.f32.mxu0 0.0
        %653 = vmatmul.mubr.f32.gmra.mrb[0].mxu0 %v582
        %v654 = vpop.f32.mrb[0].mxu0
        %v655 = vadd.f32 %v578, %v654
        %v656 = vpop.f32.mrb[0].mxu0
        %657 = vdwg.mxu0
        %v658 = vld [vmem:[%s3] sm:$0xff]
        %v659 = vadd.f32 %v655, %v658
        %v660 = vld [vmem:[%s4] sm:$0xff]
        %v661 = vld [vmem:[%s4 + $0x8] sm:$0xff]
        %v662 = vld [vmem:[%s4 + $0x10] sm:$0xff]
        %v663 = vld [vmem:[%s4 + $0x18] sm:$0xff]
        %v664 = vld [vmem:[%s5] sm:$0x1]
        %v666 = vlaneseq
        %v667 = vshrl.u32 %v666, 7
        %v668 = vsub.s32 0, %v667
        %v669 = vrot.slane %v664, %v668
        %vm671 = vcmask 261120
        %v673 = vsel %vm671, %v659, 0
        %675 = vmatprep.subr.mxu0 0.0
        %676 = vmatpush1.msra.mxu0 %v660
        %677 = vmatprep.subr.mxu0 0.0
        %678 = vmatpush1.msra.mxu0 %v661
        %679 = vmatprep.subr.mxu0 0.0
        %680 = vmatpush1.msra.mxu0 %v662
        %681 = vmatprep.subr.mxu0 0.0
        %682 = vmatpush1.msra.mxu0 %v663
        %683 = vmatprep.subr.mxu0 0.0
        %684 = vmatpush1.msra.mxu0 0.0
        %685 = vmatprep.subr.mxu0 0.0
        %686 = vmatpush1.msra.mxu0 0.0
        %687 = vmatprep.subr.mxu0 0.0
        %688 = vmatpush1.msra.mxu0 0.0
        %689 = vmatprep.subr.mxu0 0.0
        %690 = vmatpush1.msra.mxu0 0.0
        %691 = vmatprep.subr.mxu0 0.0
        %692 = vmatpush1.msra.mxu0 0.0
        %693 = vmatprep.subr.mxu0 0.0
        %694 = vmatpush1.msra.mxu0 0.0
        %695 = vmatprep.subr.mxu0 0.0
        %696 = vmatpush1.msra.mxu0 0.0
        %697 = vmatprep.subr.mxu0 0.0
        %698 = vmatpush1.msra.mxu0 0.0
        %699 = vmatprep.subr.mxu0 0.0
        %700 = vmatpush1.msra.mxu0 0.0
        %701 = vmatprep.subr.mxu0 0.0
        %702 = vmatpush1.msra.mxu0 0.0
        %703 = vmatprep.subr.mxu0 0.0
        %704 = vmatpush1.msra.mxu0 0.0
        %705 = vmatprep.subr.mxu0 0.0
        %706 = vmatpush1.msra.mxu0 0.0
        %707 = vmatprep.subr.mxu0 0.0
        %708 = vmatpush1.msra.mxu0 0.0
        %709 = vmatprep.subr.mxu0 0.0
        %710 = vmatpush1.msra.mxu0 0.0
        %711 = vmatprep.subr.mxu0 0.0
        %712 = vmatpush1.msra.mxu0 0.0
        %713 = vmatprep.subr.mxu0 0.0
        %714 = vmatpush1.msra.mxu0 0.0
        %715 = vmatprep.subr.mxu0 0.0
        %716 = vmatpush1.msra.mxu0 0.0
        %717 = vmatprep.subr.mxu0 0.0
        %718 = vmatpush1.msra.mxu0 0.0
        %719 = vmatprep.subr.mxu0 0.0
        %720 = vmatpush1.msra.mxu0 0.0
        %721 = vmatprep.subr.mxu0 0.0
        %722 = vmatpush1.msra.mxu0 0.0
        %723 = vmatprep.subr.mxu0 0.0
        %724 = vmatpush1.msra.mxu0 0.0
        %725 = vmatprep.subr.mxu0 0.0
        %726 = vmatpush1.msra.mxu0 0.0
        %727 = vmatprep.subr.mxu0 0.0
        %728 = vmatpush1.msra.mxu0 0.0
        %729 = vmatprep.subr.mxu0 0.0
        %730 = vmatpush1.msra.mxu0 0.0
        %731 = vmatprep.subr.mxu0 0.0
        %732 = vmatpush1.msra.mxu0 0.0
        %733 = vmatprep.subr.mxu0 0.0
        %734 = vmatpush1.msra.mxu0 0.0
        %735 = vmatprep.subr.mxu0 0.0
        %736 = vmatpush1.msra.mxu0 0.0
        %737 = vmatprep.subr.mxu0 0.0
        %738 = vmatpush1.msra.mxu0 0.0
        %739 = vmatprep.mubr.f32.mxu0 0.0
        %740 = vmatmul.mubr.f32.gmra.mrb[0].mxu0 %v673
        %v741 = vpop.f32.mrb[0].mxu0
        %v742 = vadd.f32 %v669, %v741
        %v743 = vpop.f32.mrb[0].mxu0
        %744 = vdwg.mxu0
        %v745 = vld [vmem:[%s6] sm:$0xff]
        %v746 = vld [vmem:[%s6 + $0x8] sm:$0xff]
        %v747 = vld [vmem:[%s6 + $0x10] sm:$0xff]
        %v748 = vld [vmem:[%s6 + $0x18] sm:$0xff]
        %v749 = vld [vmem:[%s7] sm:$0x1]
        %751 = vrot.lane.b32.xlu0 %v742, 96
        %v752 = vpop.permute.xlu0 %751
        %vm753 = vcmask 64512
        %v754 = vsel %vm753, %v742, 0
        %v756 = vsel %vm753, %v752, 0
        %758 = vmatprep.subr.mxu0 0.0
        %759 = vmatpush1.xpose.msra.mxu0 %v756
        %760 = vmatprep.subr.mxu0 0.0
        %761 = vmatpush1.xpose.msra.mxu0 0.0
        %762 = vmatprep.subr.mxu0 0.0
        %763 = vmatpush1.xpose.msra.mxu0 0.0
        %764 = vmatprep.subr.mxu0 0.0
        %765 = vmatpush1.xpose.msra.mxu0 0.0
        %766 = vmatprep.subr.mxu0 0.0
        %767 = vmatpush1.xpose.msra.mxu0 0.0
        %768 = vmatprep.subr.mxu0 0.0
        %769 = vmatpush1.xpose.msra.mxu0 0.0
        %770 = vmatprep.subr.mxu0 0.0
        %771 = vmatpush1.xpose.msra.mxu0 0.0
        %772 = vmatprep.subr.mxu0 0.0
        %773 = vmatpush1.xpose.msra.mxu0 0.0
        %774 = vmatprep.subr.mxu0 0.0
        %775 = vmatpush1.xpose.msra.mxu0 0.0
        %776 = vmatprep.subr.mxu0 0.0
        %777 = vmatpush1.xpose.msra.mxu0 0.0
        %778 = vmatprep.subr.mxu0 0.0
        %779 = vmatpush1.xpose.msra.mxu0 0.0
        %780 = vmatprep.subr.mxu0 0.0
        %781 = vmatpush1.xpose.msra.mxu0 0.0
        %782 = vmatprep.subr.mxu0 0.0
        %783 = vmatpush1.xpose.msra.mxu0 0.0
        %784 = vmatprep.subr.mxu0 0.0
        %785 = vmatpush1.xpose.msra.mxu0 0.0
        %786 = vmatprep.subr.mxu0 0.0
        %787 = vmatpush1.xpose.msra.mxu0 0.0
        %788 = vmatprep.subr.mxu0 0.0
        %789 = vmatpush1.xpose.msra.mxu0 0.0
        %790 = vmatprep.subr.mxu0 0.0
        %791 = vmatpush1.xpose.msra.mxu0 0.0
        %792 = vmatprep.subr.mxu0 0.0
        %793 = vmatpush1.xpose.msra.mxu0 0.0
        %794 = vmatprep.subr.mxu0 0.0
        %795 = vmatpush1.xpose.msra.mxu0 0.0
        %796 = vmatprep.subr.mxu0 0.0
        %797 = vmatpush1.xpose.msra.mxu0 0.0
        %798 = vmatprep.subr.mxu0 0.0
        %799 = vmatpush1.xpose.msra.mxu0 0.0
        %800 = vmatprep.subr.mxu0 0.0
        %801 = vmatpush1.xpose.msra.mxu0 0.0
        %802 = vmatprep.subr.mxu0 0.0
        %803 = vmatpush1.xpose.msra.mxu0 0.0
        %804 = vmatprep.subr.mxu0 0.0
        %805 = vmatpush1.xpose.msra.mxu0 0.0
        %806 = vmatprep.subr.mxu0 0.0
        %807 = vmatpush1.xpose.msra.mxu0 0.0
        %808 = vmatprep.subr.mxu0 0.0
        %809 = vmatpush1.xpose.msra.mxu0 0.0
        %810 = vmatprep.subr.mxu0 0.0
        %811 = vmatpush1.xpose.msra.mxu0 0.0
        %812 = vmatprep.subr.mxu0 0.0
        %813 = vmatpush1.xpose.msra.mxu0 0.0
        %814 = vmatprep.subr.mxu0 0.0
        %815 = vmatpush1.xpose.msra.mxu0 0.0
        %816 = vmatprep.subr.mxu0 0.0
        %817 = vmatpush1.xpose.msra.mxu0 0.0
        %818 = vmatprep.subr.mxu0 0.0
        %819 = vmatpush1.xpose.msra.mxu0 0.0
        %820 = vmatprep.subr.mxu0 0.0
        %821 = vmatpush1.xpose.msra.mxu0 0.0
        %822 = vmatprep.mubr.f32.mxu0 0.0
        %823 = vmatmul.mubr.f32.gmra.mrb[0].mxu0 %v754
        %v824 = vpop.f32.mrb[0].mxu0
        %v825 = vadd.f32 0.0, %v824
        %v826 = vpop.f32.mrb[0].mxu0
        %827 = vdwg.mxu0
        %v828 = vmul.f32 %v825, 0.35355338
        %v829 = vsel %vm753, %v828, -inf
        %830 = vmax.xlane.f32.xlu0 %v829
        %v831 = vpop.xlane.xlu0 %830
        %v832 = vsub.f32 %v828, %v831
        %v833 = vmul.f32 %v832, 1.442695
        %v834 = vpow.pop %v833
        %v835 = vsel %vm753, %v834, 0.0
        %836 = vadd.xlane.f32.xlu0 %v835
        %v837 = vpop.xlane.xlu0 %836
        %v838 = vrcp.pop %v837
        %839 = vrot.lane.b32.xlu0 %v742, 64
        %v840 = vpop.permute.xlu0 %839
        %v843 = vsel %vm753, %v834, 0
        %845 = vmatprep.subr.mxu0 0.0
        %846 = vmatpush1.msra.mxu0 %v840
        %847 = vmatprep.subr.mxu0 0.0
        %848 = vmatpush1.msra.mxu0 0.0
        %849 = vmatprep.subr.mxu0 0.0
        %850 = vmatpush1.msra.mxu0 0.0
        %851 = vmatprep.subr.mxu0 0.0
        %852 = vmatpush1.msra.mxu0 0.0
        %853 = vmatprep.subr.mxu0 0.0
        %854 = vmatpush1.msra.mxu0 0.0
        %855 = vmatprep.subr.mxu0 0.0
        %856 = vmatpush1.msra.mxu0 0.0
        %857 = vmatprep.subr.mxu0 0.0
        %858 = vmatpush1.msra.mxu0 0.0
        %859 = vmatprep.subr.mxu0 0.0
        %860 = vmatpush1.msra.mxu0 0.0
        %861 = vmatprep.subr.mxu0 0.0
        %862 = vmatpush1.msra.mxu0 0.0
        %863 = vmatprep.subr.mxu0 0.0
        %864 = vmatpush1.msra.mxu0 0.0
        %865 = vmatprep.subr.mxu0 0.0
        %866 = vmatpush1.msra.mxu0 0.0
        %867 = vmatprep.subr.mxu0 0.0
        %868 = vmatpush1.msra.mxu0 0.0
        %869 = vmatprep.subr.mxu0 0.0
        %870 = vmatpush1.msra.mxu0 0.0
        %871 = vmatprep.subr.mxu0 0.0
        %872 = vmatpush1.msra.mxu0 0.0
        %873 = vmatprep.subr.mxu0 0.0
        %874 = vmatpush1.msra.mxu0 0.0
        %875 = vmatprep.subr.mxu0 0.0
        %876 = vmatpush1.msra.mxu0 0.0
        %877 = vmatprep.subr.mxu0 0.0
        %878 = vmatpush1.msra.mxu0 0.0
        %879 = vmatprep.subr.mxu0 0.0
        %880 = vmatpush1.msra.mxu0 0.0
        %881 = vmatprep.subr.mxu0 0.0
        %882 = vmatpush1.msra.mxu0 0.0
        %883 = vmatprep.subr.mxu0 0.0
        %884 = vmatpush1.msra.mxu0 0.0
        %885 = vmatprep.subr.mxu0 0.0
        %886 = vmatpush1.msra.mxu0 0.0
        %887 = vmatprep.subr.mxu0 0.0
        %888 = vmatpush1.msra.mxu0 0.0
        %889 = vmatprep.subr.mxu0 0.0
        %890 = vmatpush1.msra.mxu0 0.0
        %891 = vmatprep.subr.mxu0 0.0
        %892 = vmatpush1.msra.mxu0 0.0
        %893 = vmatprep.subr.mxu0 0.0
        %894 = vmatpush1.msra.mxu0 0.0
        %895 = vmatprep.subr.mxu0 0.0
        %896 = vmatpush1.msra.mxu0 0.0
        %897 = vmatprep.subr.mxu0 0.0
        %898 = vmatpush1.msra.mxu0 0.0
        %899 = vmatprep.subr.mxu0 0.0
        %900 = vmatpush1.msra.mxu0 0.0
        %901 = vmatprep.subr.mxu0 0.0
        %902 = vmatpush1.msra.mxu0 0.0
        %903 = vmatprep.subr.mxu0 0.0
        %904 = vmatpush1.msra.mxu0 0.0
        %905 = vmatprep.subr.mxu0 0.0
        %906 = vmatpush1.msra.mxu0 0.0
        %907 = vmatprep.subr.mxu0 0.0
        %908 = vmatpush1.msra.mxu0 0.0
        %909 = vmatprep.mubr.f32.mxu0 0.0
        %910 = vmatmul.mubr.f32.gmra.mrb[0].mxu0 %v843
        %v911 = vpop.f32.mrb[0].mxu0
        %v912 = vadd.f32 0.0, %v911
        %v913 = vpop.f32.mrb[0].mxu0
        %914 = vdwg.mxu0
        %v915 = vmul.f32 %v912, %v838
        %v917 = vsel %vm753, %v915, 0
        %919 = vmatprep.subr.mxu0 0.0
        %920 = vmatpush1.msra.mxu0 %v745
        %921 = vmatprep.subr.mxu0 0.0
        %922 = vmatpush1.msra.mxu0 0.0
        %923 = vmatprep.subr.mxu0 0.0
        %924 = vmatpush1.msra.mxu0 0.0
        %925 = vmatprep.subr.mxu0 0.0
        %926 = vmatpush1.msra.mxu0 0.0
        %927 = vmatprep.subr.mxu0 0.0
        %928 = vmatpush1.msra.mxu0 0.0
        %929 = vmatprep.subr.mxu0 0.0
        %930 = vmatpush1.msra.mxu0 0.0
        %931 = vmatprep.subr.mxu0 0.0
        %932 = vmatpush1.msra.mxu0 0.0
        %933 = vmatprep.subr.mxu0 0.0
        %934 = vmatpush1.msra.mxu0 0.0
        %935 = vmatprep.subr.mxu0 0.0
        %936 = vmatpush1.msra.mxu0 0.0
        %937 = vmatprep.subr.mxu0 0.0
        %938 = vmatpush1.msra.mxu0 0.0
        %939 = vmatprep.subr.mxu0 0.0
        %940 = vmatpush1.msra.mxu0 0.0
        %941 = vmatprep.subr.mxu0 0.0
        %942 = vmatpush1.msra.mxu0 0.0
        %943 = vmatprep.subr.mxu0 0.0
        %944 = vmatpush1.msra.mxu0 0.0
        %945 = vmatprep.subr.mxu0 0.0
        %946 = vmatpush1.msra.mxu0 0.0
        %947 = vmatprep.subr.mxu0 0.0
        %948 = vmatpush1.msra.mxu0 0.0
        %949 = vmatprep.subr.mxu0 0.0
        %950 = vmatpush1.msra.mxu0 0.0
        %951 = vmatprep.subr.mxu0 0.0
        %952 = vmatpush1.msra.mxu0 0.0
        %953 = vmatprep.subr.mxu0 0.0
        %954 = vmatpush1.msra.mxu0 0.0
        %955 = vmatprep.subr.mxu0 0.0
        %956 = vmatpush1.msra.mxu0 0.0
        %957 = vmatprep.subr.mxu0 0.0
        %958 = vmatpush1.msra.mxu0 0.0
        %959 = vmatprep.subr.mxu0 0.0
        %960 = vmatpush1.msra.mxu0 0.0
        %961 = vmatprep.subr.mxu0 0.0
        %962 = vmatpush1.msra.mxu0 0.0
        %963 = vmatprep.subr.mxu0 0.0
        %964 = vmatpush1.msra.mxu0 0.0
        %965 = vmatprep.subr.mxu0 0.0
        %966 = vmatpush1.msra.mxu0 0.0
        %967 = vmatprep.subr.mxu0 0.0
        %968 = vmatpush1.msra.mxu0 0.0
        %969 = vmatprep.subr.mxu0 0.0
        %970 = vmatpush1.msra.mxu0 0.0
        %971 = vmatprep.subr.mxu0 0.0
        %972 = vmatpush1.msra.mxu0 0.0
        %973 = vmatprep.subr.mxu0 0.0
        %974 = vmatpush1.msra.mxu0 0.0
        %975 = vmatprep.subr.mxu0 0.0
        %976 = vmatpush1.msra.mxu0 0.0
        %977 = vmatprep.subr.mxu0 0.0
        %978 = vmatpush1.msra.mxu0 0.0
        %979 = vmatprep.subr.mxu0 0.0
        %980 = vmatpush1.msra.mxu0 0.0
        %981 = vmatprep.subr.mxu0 0.0
        %982 = vmatpush1.msra.mxu0 0.0
        %983 = vmatprep.mubr.f32.mxu0 0.0
        %984 = vmatmul.mubr.f32.gmra.mrb[0].mxu0 %v917
        %v985 = vpop.f32.mrb[0].mxu0
        %v986 = vadd.f32 0.0, %v985
        %v987 = vpop.f32.mrb[0].mxu0
        %988 = vdwg.mxu0
        %v990 = vlaneseq
        %v991 = vshrl.u32 %v990, 7
        %v992 = vsub.s32 0, %v991
        %v993 = vrot.slane %v749, %v992
        %v995 = vadd.f32 %v993, %v986
        %996 = vrot.lane.b32.xlu0 %v742, 120
        %v997 = vpop.permute.xlu0 %996
        %998 = vrot.lane.b32.xlu0 %v742, 88
        %v999 = vpop.permute.xlu0 %998
        %v1000 = vsel %vm753, %v997, 0
        %v1002 = vsel %vm753, %v999, 0
        %1004 = vmatprep.subr.mxu0 0.0
        %1005 = vmatpush1.xpose.msra.mxu0 %v1002
        %1006 = vmatprep.subr.mxu0 0.0
        %1007 = vmatpush1.xpose.msra.mxu0 0.0
        %1008 = vmatprep.subr.mxu0 0.0
        %1009 = vmatpush1.xpose.msra.mxu0 0.0
        %1010 = vmatprep.subr.mxu0 0.0
        %1011 = vmatpush1.xpose.msra.mxu0 0.0
        %1012 = vmatprep.subr.mxu0 0.0
        %1013 = vmatpush1.xpose.msra.mxu0 0.0
        %1014 = vmatprep.subr.mxu0 0.0
        %1015 = vmatpush1.xpose.msra.mxu0 0.0
        %1016 = vmatprep.subr.mxu0 0.0
        %1017 = vmatpush1.xpose.msra.mxu0 0.0
        %1018 = vmatprep.subr.mxu0 0.0
        %1019 = vmatpush1.xpose.msra.mxu0 0.0
        %1020 = vmatprep.subr.mxu0 0.0
        %1021 = vmatpush1.xpose.msra.mxu0 0.0
        %1022 = vmatprep.subr.mxu0 0.0
        %1023 = vmatpush1.xpose.msra.mxu0 0.0
        %1024 = vmatprep.subr.mxu0 0.0
        %1025 = vmatpush1.xpose.msra.mxu0 0.0
        %1026 = vmatprep.subr.mxu0 0.0
        %1027 = vmatpush1.xpose.msra.mxu0 0.0
        %1028 = vmatprep.subr.mxu0 0.0
        %1029 = vmatpush1.xpose.msra.mxu0 0.0
        %1030 = vmatprep.subr.mxu0 0.0
        %1031 = vmatpush1.xpose.msra.mxu0 0.0
        %1032 = vmatprep.subr.mxu0 0.0
        %1033 = vmatpush1.xpose.msra.mxu0 0.0
        %1034 = vmatprep.subr.mxu0 0.0
        %1035 = vmatpush1.xpose.msra.mxu0 0.0
        %1036 = vmatprep.subr.mxu0 0.0
        %1037 = vmatpush1.xpose.msra.mxu0 0.0
        %1038 = vmatprep.subr.mxu0 0.0
        %1039 = vmatpush1.xpose.msra.mxu0 0.0
        %1040 = vmatprep.subr.mxu0 0.0
        %1041 = vmatpush1.xpose.msra.mxu0 0.0
        %1042 = vmatprep.subr.mxu0 0.0
        %1043 = vmatpush1.xpose.msra.mxu0 0.0
        %1044 = vmatprep.subr.mxu0 0.0
        %1045 = vmatpush1.xpose.msra.mxu0 0.0
        %1046 = vmatprep.subr.mxu0 0.0
        %1047 = vmatpush1.xpose.msra.mxu0 0.0
        %1048 = vmatprep.subr.mxu0 0.0
        %1049 = vmatpush1.xpose.msra.mxu0 0.0
        %1050 = vmatprep.subr.mxu0 0.0
        %1051 = vmatpush1.xpose.msra.mxu0 0.0
        %1052 = vmatprep.subr.mxu0 0.0
        %1053 = vmatpush1.xpose.msra.mxu0 0.0
        %1054 = vmatprep.subr.mxu0 0.0
        %1055 = vmatpush1.xpose.msra.mxu0 0.0
        %1056 = vmatprep.subr.mxu0 0.0
        %1057 = vmatpush1.xpose.msra.mxu0 0.0
        %1058 = vmatprep.subr.mxu0 0.0
        %1059 = vmatpush1.xpose.msra.mxu0 0.0
        %1060 = vmatprep.subr.mxu0 0.0
        %1061 = vmatpush1.xpose.msra.mxu0 0.0
        %1062 = vmatprep.subr.mxu0 0.0
        %1063 = vmatpush1.xpose.msra.mxu0 0.0
        %1064 = vmatprep.subr.mxu0 0.0
        %1065 = vmatpush1.xpose.msra.mxu0 0.0
        %1066 = vmatprep.subr.mxu0 0.0
        %1067 = vmatpush1.xpose.msra.mxu0 0.0
        %1068 = vmatprep.mubr.f32.mxu0 0.0
        %1069 = vmatmul.mubr.f32.gmra.mrb[0].mxu0 %v1000
        %v1070 = vpop.f32.mrb[0].mxu0
        %v1071 = vadd.f32 0.0, %v1070
        %v1072 = vpop.f32.mrb[0].mxu0
        %1073 = vdwg.mxu0
        %v1074 = vmul.f32 %v1071, 0.35355338
        %v1075 = vsel %vm753, %v1074, -inf
        %1076 = vmax.xlane.f32.xlu0 %v1075
        %v1077 = vpop.xlane.xlu0 %1076
        %v1078 = vsub.f32 %v1074, %v1077
        %v1079 = vmul.f32 %v1078, 1.442695
        %v1080 = vpow.pop %v1079
        %v1081 = vsel %vm753, %v1080, 0.0
        %1082 = vadd.xlane.f32.xlu0 %v1081
        %v1083 = vpop.xlane.xlu0 %1082
        %v1084 = vrcp.pop %v1083
        %1085 = vrot.lane.b32.xlu0 %v742, 56
        %v1086 = vpop.permute.xlu0 %1085
        %v1089 = vsel %vm753, %v1080, 0
        %1091 = vmatprep.subr.mxu0 0.0
        %1092 = vmatpush1.msra.mxu0 %v1086
        %1093 = vmatprep.subr.mxu0 0.0
        %1094 = vmatpush1.msra.mxu0 0.0
        %1095 = vmatprep.subr.mxu0 0.0
        %1096 = vmatpush1.msra.mxu0 0.0
        %1097 = vmatprep.subr.mxu0 0.0
        %1098 = vmatpush1.msra.mxu0 0.0
        %1099 = vmatprep.subr.mxu0 0.0
        %1100 = vmatpush1.msra.mxu0 0.0
        %1101 = vmatprep.subr.mxu0 0.0
        %1102 = vmatpush1.msra.mxu0 0.0
        %1103 = vmatprep.subr.mxu0 0.0
        %1104 = vmatpush1.msra.mxu0 0.0
        %1105 = vmatprep.subr.mxu0 0.0
        %1106 = vmatpush1.msra.mxu0 0.0
        %1107 = vmatprep.subr.mxu0 0.0
        %1108 = vmatpush1.msra.mxu0 0.0
        %1109 = vmatprep.subr.mxu0 0.0
        %1110 = vmatpush1.msra.mxu0 0.0
        %1111 = vmatprep.subr.mxu0 0.0
        %1112 = vmatpush1.msra.mxu0 0.0
        %1113 = vmatprep.subr.mxu0 0.0
        %1114 = vmatpush1.msra.mxu0 0.0
        %1115 = vmatprep.subr.mxu0 0.0
        %1116 = vmatpush1.msra.mxu0 0.0
        %1117 = vmatprep.subr.mxu0 0.0
        %1118 = vmatpush1.msra.mxu0 0.0
        %1119 = vmatprep.subr.mxu0 0.0
        %1120 = vmatpush1.msra.mxu0 0.0
        %1121 = vmatprep.subr.mxu0 0.0
        %1122 = vmatpush1.msra.mxu0 0.0
        %1123 = vmatprep.subr.mxu0 0.0
        %1124 = vmatpush1.msra.mxu0 0.0
        %1125 = vmatprep.subr.mxu0 0.0
        %1126 = vmatpush1.msra.mxu0 0.0
        %1127 = vmatprep.subr.mxu0 0.0
        %1128 = vmatpush1.msra.mxu0 0.0
        %1129 = vmatprep.subr.mxu0 0.0
        %1130 = vmatpush1.msra.mxu0 0.0
        %1131 = vmatprep.subr.mxu0 0.0
        %1132 = vmatpush1.msra.mxu0 0.0
        %1133 = vmatprep.subr.mxu0 0.0
        %1134 = vmatpush1.msra.mxu0 0.0
        %1135 = vmatprep.subr.mxu0 0.0
        %1136 = vmatpush1.msra.mxu0 0.0
        %1137 = vmatprep.subr.mxu0 0.0
        %1138 = vmatpush1.msra.mxu0 0.0
        %1139 = vmatprep.subr.mxu0 0.0
        %1140 = vmatpush1.msra.mxu0 0.0
        %1141 = vmatprep.subr.mxu0 0.0
        %1142 = vmatpush1.msra.mxu0 0.0
        %1143 = vmatprep.subr.mxu0 0.0
        %1144 = vmatpush1.msra.mxu0 0.0
        %1145 = vmatprep.subr.mxu0 0.0
        %1146 = vmatpush1.msra.mxu0 0.0
        %1147 = vmatprep.subr.mxu0 0.0
        %1148 = vmatpush1.msra.mxu0 0.0
        %1149 = vmatprep.subr.mxu0 0.0
        %1150 = vmatpush1.msra.mxu0 0.0
        %1151 = vmatprep.subr.mxu0 0.0
        %1152 = vmatpush1.msra.mxu0 0.0
        %1153 = vmatprep.subr.mxu0 0.0
        %1154 = vmatpush1.msra.mxu0 0.0
        %1155 = vmatprep.mubr.f32.mxu0 0.0
        %1156 = vmatmul.mubr.f32.gmra.mrb[0].mxu0 %v1089
        %v1157 = vpop.f32.mrb[0].mxu0
        %v1158 = vadd.f32 0.0, %v1157
        %v1159 = vpop.f32.mrb[0].mxu0
        %1160 = vdwg.mxu0
        %v1161 = vmul.f32 %v1158, %v1084
        %v1163 = vsel %vm753, %v1161, 0
        %1165 = vmatprep.subr.mxu0 0.0
        %1166 = vmatpush1.msra.mxu0 %v746
        %1167 = vmatprep.subr.mxu0 0.0
        %1168 = vmatpush1.msra.mxu0 0.0
        %1169 = vmatprep.subr.mxu0 0.0
        %1170 = vmatpush1.msra.mxu0 0.0
        %1171 = vmatprep.subr.mxu0 0.0
        %1172 = vmatpush1.msra.mxu0 0.0
        %1173 = vmatprep.subr.mxu0 0.0
        %1174 = vmatpush1.msra.mxu0 0.0
        %1175 = vmatprep.subr.mxu0 0.0
        %1176 = vmatpush1.msra.mxu0 0.0
        %1177 = vmatprep.subr.mxu0 0.0
        %1178 = vmatpush1.msra.mxu0 0.0
        %1179 = vmatprep.subr.mxu0 0.0
        %1180 = vmatpush1.msra.mxu0 0.0
        %1181 = vmatprep.subr.mxu0 0.0
        %1182 = vmatpush1.msra.mxu0 0.0
        %1183 = vmatprep.subr.mxu0 0.0
        %1184 = vmatpush1.msra.mxu0 0.0
        %1185 = vmatprep.subr.mxu0 0.0
        %1186 = vmatpush1.msra.mxu0 0.0
        %1187 = vmatprep.subr.mxu0 0.0
        %1188 = vmatpush1.msra.mxu0 0.0
        %1189 = vmatprep.subr.mxu0 0.0
        %1190 = vmatpush1.msra.mxu0 0.0
        %1191 = vmatprep.subr.mxu0 0.0
        %1192 = vmatpush1.msra.mxu0 0.0
        %1193 = vmatprep.subr.mxu0 0.0
        %1194 = vmatpush1.msra.mxu0 0.0
        %1195 = vmatprep.subr.mxu0 0.0
        %1196 = vmatpush1.msra.mxu0 0.0
        %1197 = vmatprep.subr.mxu0 0.0
        %1198 = vmatpush1.msra.mxu0 0.0
        %1199 = vmatprep.subr.mxu0 0.0
        %1200 = vmatpush1.msra.mxu0 0.0
        %1201 = vmatprep.subr.mxu0 0.0
        %1202 = vmatpush1.msra.mxu0 0.0
        %1203 = vmatprep.subr.mxu0 0.0
        %1204 = vmatpush1.msra.mxu0 0.0
        %1205 = vmatprep.subr.mxu0 0.0
        %1206 = vmatpush1.msra.mxu0 0.0
        %1207 = vmatprep.subr.mxu0 0.0
        %1208 = vmatpush1.msra.mxu0 0.0
        %1209 = vmatprep.subr.mxu0 0.0
        %1210 = vmatpush1.msra.mxu0 0.0
        %1211 = vmatprep.subr.mxu0 0.0
        %1212 = vmatpush1.msra.mxu0 0.0
        %1213 = vmatprep.subr.mxu0 0.0
        %1214 = vmatpush1.msra.mxu0 0.0
        %1215 = vmatprep.subr.mxu0 0.0
        %1216 = vmatpush1.msra.mxu0 0.0
        %1217 = vmatprep.subr.mxu0 0.0
        %1218 = vmatpush1.msra.mxu0 0.0
        %1219 = vmatprep.subr.mxu0 0.0
        %1220 = vmatpush1.msra.mxu0 0.0
        %1221 = vmatprep.subr.mxu0 0.0
        %1222 = vmatpush1.msra.mxu0 0.0
        %1223 = vmatprep.subr.mxu0 0.0
        %1224 = vmatpush1.msra.mxu0 0.0
        %1225 = vmatprep.subr.mxu0 0.0
        %1226 = vmatpush1.msra.mxu0 0.0
        %1227 = vmatprep.subr.mxu0 0.0
        %1228 = vmatpush1.msra.mxu0 0.0
        %1229 = vmatprep.mubr.f32.mxu0 0.0
        %1230 = vmatmul.mubr.f32.gmra.mrb[0].mxu0 %v1163
        %v1231 = vpop.f32.mrb[0].mxu0
        %v1232 = vadd.f32 0.0, %v1231
        %v1233 = vpop.f32.mrb[0].mxu0
        %1234 = vdwg.mxu0
        %v1235 = vadd.f32 %v995, %v1232
        %1236 = vrot.lane.b32.xlu0 %v742, 112
        %v1237 = vpop.permute.xlu0 %1236
        %1238 = vrot.lane.b32.xlu0 %v742, 80
        %v1239 = vpop.permute.xlu0 %1238
        %v1240 = vsel %vm753, %v1237, 0
        %v1242 = vsel %vm753, %v1239, 0
        %1244 = vmatprep.subr.mxu0 0.0
        %1245 = vmatpush1.xpose.msra.mxu0 %v1242
        %1246 = vmatprep.subr.mxu0 0.0
        %1247 = vmatpush1.xpose.msra.mxu0 0.0
        %1248 = vmatprep.subr.mxu0 0.0
        %1249 = vmatpush1.xpose.msra.mxu0 0.0
        %1250 = vmatprep.subr.mxu0 0.0
        %1251 = vmatpush1.xpose.msra.mxu0 0.0
        %1252 = vmatprep.subr.mxu0 0.0
        %1253 = vmatpush1.xpose.msra.mxu0 0.0
        %1254 = vmatprep.subr.mxu0 0.0
        %1255 = vmatpush1.xpose.msra.mxu0 0.0
        %1256 = vmatprep.subr.mxu0 0.0
        %1257 = vmatpush1.xpose.msra.mxu0 0.0
        %1258 = vmatprep.subr.mxu0 0.0
        %1259 = vmatpush1.xpose.msra.mxu0 0.0
        %1260 = vmatprep.subr.mxu0 0.0
        %1261 = vmatpush1.xpose.msra.mxu0 0.0
        %1262 = vmatprep.subr.mxu0 0.0
        %1263 = vmatpush1.xpose.msra.mxu0 0.0
        %1264 = vmatprep.subr.mxu0 0.0
        %1265 = vmatpush1.xpose.msra.mxu0 0.0
        %1266 = vmatprep.subr.mxu0 0.0
        %1267 = vmatpush1.xpose.msra.mxu0 0.0
        %1268 = vmatprep.subr.mxu0 0.0
        %1269 = vmatpush1.xpose.msra.mxu0 0.0
        %1270 = vmatprep.subr.mxu0 0.0
        %1271 = vmatpush1.xpose.msra.mxu0 0.0
        %1272 = vmatprep.subr.mxu0 0.0
        %1273 = vmatpush1.xpose.msra.mxu0 0.0
        %1274 = vmatprep.subr.mxu0 0.0
        %1275 = vmatpush1.xpose.msra.mxu0 0.0
        %1276 = vmatprep.subr.mxu0 0.0
        %1277 = vmatpush1.xpose.msra.mxu0 0.0
        %1278 = vmatprep.subr.mxu0 0.0
        %1279 = vmatpush1.xpose.msra.mxu0 0.0
        %1280 = vmatprep.subr.mxu0 0.0
        %1281 = vmatpush1.xpose.msra.mxu0 0.0
        %1282 = vmatprep.subr.mxu0 0.0
        %1283 = vmatpush1.xpose.msra.mxu0 0.0
        %1284 = vmatprep.subr.mxu0 0.0
        %1285 = vmatpush1.xpose.msra.mxu0 0.0
        %1286 = vmatprep.subr.mxu0 0.0
        %1287 = vmatpush1.xpose.msra.mxu0 0.0
        %1288 = vmatprep.subr.mxu0 0.0
        %1289 = vmatpush1.xpose.msra.mxu0 0.0
        %1290 = vmatprep.subr.mxu0 0.0
        %1291 = vmatpush1.xpose.msra.mxu0 0.0
        %1292 = vmatprep.subr.mxu0 0.0
        %1293 = vmatpush1.xpose.msra.mxu0 0.0
        %1294 = vmatprep.subr.mxu0 0.0
        %1295 = vmatpush1.xpose.msra.mxu0 0.0
        %1296 = vmatprep.subr.mxu0 0.0
        %1297 = vmatpush1.xpose.msra.mxu0 0.0
        %1298 = vmatprep.subr.mxu0 0.0
        %1299 = vmatpush1.xpose.msra.mxu0 0.0
        %1300 = vmatprep.subr.mxu0 0.0
        %1301 = vmatpush1.xpose.msra.mxu0 0.0
        %1302 = vmatprep.subr.mxu0 0.0
        %1303 = vmatpush1.xpose.msra.mxu0 0.0
        %1304 = vmatprep.subr.mxu0 0.0
        %1305 = vmatpush1.xpose.msra.mxu0 0.0
        %1306 = vmatprep.subr.mxu0 0.0
        %1307 = vmatpush1.xpose.msra.mxu0 0.0
        %1308 = vmatprep.mubr.f32.mxu0 0.0
        %1309 = vmatmul.mubr.f32.gmra.mrb[0].mxu0 %v1240
        %v1310 = vpop.f32.mrb[0].mxu0
        %v1311 = vadd.f32 0.0, %v1310
        %v1312 = vpop.f32.mrb[0].mxu0
        %1313 = vdwg.mxu0
        %v1314 = vmul.f32 %v1311, 0.35355338
        %v1315 = vsel %vm753, %v1314, -inf
        %1316 = vmax.xlane.f32.xlu0 %v1315
        %v1317 = vpop.xlane.xlu0 %1316
        %v1318 = vsub.f32 %v1314, %v1317
        %v1319 = vmul.f32 %v1318, 1.442695
        %v1320 = vpow.pop %v1319
        %v1321 = vsel %vm753, %v1320, 0.0
        %1322 = vadd.xlane.f32.xlu0 %v1321
        %v1323 = vpop.xlane.xlu0 %1322
        %v1324 = vrcp.pop %v1323
        %1325 = vrot.lane.b32.xlu0 %v742, 48
        %v1326 = vpop.permute.xlu0 %1325
        %v1329 = vsel %vm753, %v1320, 0
        %1331 = vmatprep.subr.mxu0 0.0
        %1332 = vmatpush1.msra.mxu0 %v1326
        %1333 = vmatprep.subr.mxu0 0.0
        %1334 = vmatpush1.msra.mxu0 0.0
        %1335 = vmatprep.subr.mxu0 0.0
        %1336 = vmatpush1.msra.mxu0 0.0
        %1337 = vmatprep.subr.mxu0 0.0
        %1338 = vmatpush1.msra.mxu0 0.0
        %1339 = vmatprep.subr.mxu0 0.0
        %1340 = vmatpush1.msra.mxu0 0.0
        %1341 = vmatprep.subr.mxu0 0.0
        %1342 = vmatpush1.msra.mxu0 0.0
        %1343 = vmatprep.subr.mxu0 0.0
        %1344 = vmatpush1.msra.mxu0 0.0
        %1345 = vmatprep.subr.mxu0 0.0
        %1346 = vmatpush1.msra.mxu0 0.0
        %1347 = vmatprep.subr.mxu0 0.0
        %1348 = vmatpush1.msra.mxu0 0.0
        %1349 = vmatprep.subr.mxu0 0.0
        %1350 = vmatpush1.msra.mxu0 0.0
        %1351 = vmatprep.subr.mxu0 0.0
        %1352 = vmatpush1.msra.mxu0 0.0
        %1353 = vmatprep.subr.mxu0 0.0
        %1354 = vmatpush1.msra.mxu0 0.0
        %1355 = vmatprep.subr.mxu0 0.0
        %1356 = vmatpush1.msra.mxu0 0.0
        %1357 = vmatprep.subr.mxu0 0.0
        %1358 = vmatpush1.msra.mxu0 0.0
        %1359 = vmatprep.subr.mxu0 0.0
        %1360 = vmatpush1.msra.mxu0 0.0
        %1361 = vmatprep.subr.mxu0 0.0
        %1362 = vmatpush1.msra.mxu0 0.0
        %1363 = vmatprep.subr.mxu0 0.0
        %1364 = vmatpush1.msra.mxu0 0.0
        %1365 = vmatprep.subr.mxu0 0.0
        %1366 = vmatpush1.msra.mxu0 0.0
        %1367 = vmatprep.subr.mxu0 0.0
        %1368 = vmatpush1.msra.mxu0 0.0
        %1369 = vmatprep.subr.mxu0 0.0
        %1370 = vmatpush1.msra.mxu0 0.0
        %1371 = vmatprep.subr.mxu0 0.0
        %1372 = vmatpush1.msra.mxu0 0.0
        %1373 = vmatprep.subr.mxu0 0.0
        %1374 = vmatpush1.msra.mxu0 0.0
        %1375 = vmatprep.subr.mxu0 0.0
        %1376 = vmatpush1.msra.mxu0 0.0
        %1377 = vmatprep.subr.mxu0 0.0
        %1378 = vmatpush1.msra.mxu0 0.0
        %1379 = vmatprep.subr.mxu0 0.0
        %1380 = vmatpush1.msra.mxu0 0.0
        %1381 = vmatprep.subr.mxu0 0.0
        %1382 = vmatpush1.msra.mxu0 0.0
        %1383 = vmatprep.subr.mxu0 0.0
        %1384 = vmatpush1.msra.mxu0 0.0
        %1385 = vmatprep.subr.mxu0 0.0
        %1386 = vmatpush1.msra.mxu0 0.0
        %1387 = vmatprep.subr.mxu0 0.0
        %1388 = vmatpush1.msra.mxu0 0.0
        %1389 = vmatprep.subr.mxu0 0.0
        %1390 = vmatpush1.msra.mxu0 0.0
        %1391 = vmatprep.subr.mxu0 0.0
        %1392 = vmatpush1.msra.mxu0 0.0
        %1393 = vmatprep.subr.mxu0 0.0
        %1394 = vmatpush1.msra.mxu0 0.0
        %1395 = vmatprep.mubr.f32.mxu0 0.0
        %1396 = vmatmul.mubr.f32.gmra.mrb[0].mxu0 %v1329
        %v1397 = vpop.f32.mrb[0].mxu0
        %v1398 = vadd.f32 0.0, %v1397
        %v1399 = vpop.f32.mrb[0].mxu0
        %1400 = vdwg.mxu0
        %v1401 = vmul.f32 %v1398, %v1324
        %v1403 = vsel %vm753, %v1401, 0
        %1405 = vmatprep.subr.mxu0 0.0
        %1406 = vmatpush1.msra.mxu0 %v747
        %1407 = vmatprep.subr.mxu0 0.0
        %1408 = vmatpush1.msra.mxu0 0.0
        %1409 = vmatprep.subr.mxu0 0.0
        %1410 = vmatpush1.msra.mxu0 0.0
        %1411 = vmatprep.subr.mxu0 0.0
        %1412 = vmatpush1.msra.mxu0 0.0
        %1413 = vmatprep.subr.mxu0 0.0
        %1414 = vmatpush1.msra.mxu0 0.0
        %1415 = vmatprep.subr.mxu0 0.0
        %1416 = vmatpush1.msra.mxu0 0.0
        %1417 = vmatprep.subr.mxu0 0.0
        %1418 = vmatpush1.msra.mxu0 0.0
        %1419 = vmatprep.subr.mxu0 0.0
        %1420 = vmatpush1.msra.mxu0 0.0
        %1421 = vmatprep.subr.mxu0 0.0
        %1422 = vmatpush1.msra.mxu0 0.0
        %1423 = vmatprep.subr.mxu0 0.0
        %1424 = vmatpush1.msra.mxu0 0.0
        %1425 = vmatprep.subr.mxu0 0.0
        %1426 = vmatpush1.msra.mxu0 0.0
        %1427 = vmatprep.subr.mxu0 0.0
        %1428 = vmatpush1.msra.mxu0 0.0
        %1429 = vmatprep.subr.mxu0 0.0
        %1430 = vmatpush1.msra.mxu0 0.0
        %1431 = vmatprep.subr.mxu0 0.0
        %1432 = vmatpush1.msra.mxu0 0.0
        %1433 = vmatprep.subr.mxu0 0.0
        %1434 = vmatpush1.msra.mxu0 0.0
        %1435 = vmatprep.subr.mxu0 0.0
        %1436 = vmatpush1.msra.mxu0 0.0
        %1437 = vmatprep.subr.mxu0 0.0
        %1438 = vmatpush1.msra.mxu0 0.0
        %1439 = vmatprep.subr.mxu0 0.0
        %1440 = vmatpush1.msra.mxu0 0.0
        %1441 = vmatprep.subr.mxu0 0.0
        %1442 = vmatpush1.msra.mxu0 0.0
        %1443 = vmatprep.subr.mxu0 0.0
        %1444 = vmatpush1.msra.mxu0 0.0
        %1445 = vmatprep.subr.mxu0 0.0
        %1446 = vmatpush1.msra.mxu0 0.0
        %1447 = vmatprep.subr.mxu0 0.0
        %1448 = vmatpush1.msra.mxu0 0.0
        %1449 = vmatprep.subr.mxu0 0.0
        %1450 = vmatpush1.msra.mxu0 0.0
        %1451 = vmatprep.subr.mxu0 0.0
        %1452 = vmatpush1.msra.mxu0 0.0
        %1453 = vmatprep.subr.mxu0 0.0
        %1454 = vmatpush1.msra.mxu0 0.0
        %1455 = vmatprep.subr.mxu0 0.0
        %1456 = vmatpush1.msra.mxu0 0.0
        %1457 = vmatprep.subr.mxu0 0.0
        %1458 = vmatpush1.msra.mxu0 0.0
        %1459 = vmatprep.subr.mxu0 0.0
        %1460 = vmatpush1.msra.mxu0 0.0
        %1461 = vmatprep.subr.mxu0 0.0
        %1462 = vmatpush1.msra.mxu0 0.0
        %1463 = vmatprep.subr.mxu0 0.0
        %1464 = vmatpush1.msra.mxu0 0.0
        %1465 = vmatprep.subr.mxu0 0.0
        %1466 = vmatpush1.msra.mxu0 0.0
        %1467 = vmatprep.subr.mxu0 0.0
        %1468 = vmatpush1.msra.mxu0 0.0
        %1469 = vmatprep.mubr.f32.mxu0 0.0
        %1470 = vmatmul.mubr.f32.gmra.mrb[0].mxu0 %v1403
        %v1471 = vpop.f32.mrb[0].mxu0
        %v1472 = vadd.f32 0.0, %v1471
        %v1473 = vpop.f32.mrb[0].mxu0
        %1474 = vdwg.mxu0
        %v1475 = vadd.f32 %v1235, %v1472
        %1476 = vrot.lane.b32.xlu0 %v742, 104
        %v1477 = vpop.permute.xlu0 %1476
        %1478 = vrot.lane.b32.xlu0 %v742, 72
        %v1479 = vpop.permute.xlu0 %1478
        %v1480 = vsel %vm753, %v1477, 0
        %v1482 = vsel %vm753, %v1479, 0
        %1484 = vmatprep.subr.mxu0 0.0
        %1485 = vmatpush1.xpose.msra.mxu0 %v1482
        %1486 = vmatprep.subr.mxu0 0.0
        %1487 = vmatpush1.xpose.msra.mxu0 0.0
        %1488 = vmatprep.subr.mxu0 0.0
        %1489 = vmatpush1.xpose.msra.mxu0 0.0
        %1490 = vmatprep.subr.mxu0 0.0
        %1491 = vmatpush1.xpose.msra.mxu0 0.0
        %1492 = vmatprep.subr.mxu0 0.0
        %1493 = vmatpush1.xpose.msra.mxu0 0.0
        %1494 = vmatprep.subr.mxu0 0.0
        %1495 = vmatpush1.xpose.msra.mxu0 0.0
        %1496 = vmatprep.subr.mxu0 0.0
        %1497 = vmatpush1.xpose.msra.mxu0 0.0
        %1498 = vmatprep.subr.mxu0 0.0
        %1499 = vmatpush1.xpose.msra.mxu0 0.0
        %1500 = vmatprep.subr.mxu0 0.0
        %1501 = vmatpush1.xpose.msra.mxu0 0.0
        %1502 = vmatprep.subr.mxu0 0.0
        %1503 = vmatpush1.xpose.msra.mxu0 0.0
        %1504 = vmatprep.subr.mxu0 0.0
        %1505 = vmatpush1.xpose.msra.mxu0 0.0
        %1506 = vmatprep.subr.mxu0 0.0
        %1507 = vmatpush1.xpose.msra.mxu0 0.0
        %1508 = vmatprep.subr.mxu0 0.0
        %1509 = vmatpush1.xpose.msra.mxu0 0.0
        %1510 = vmatprep.subr.mxu0 0.0
        %1511 = vmatpush1.xpose.msra.mxu0 0.0
        %1512 = vmatprep.subr.mxu0 0.0
        %1513 = vmatpush1.xpose.msra.mxu0 0.0
        %1514 = vmatprep.subr.mxu0 0.0
        %1515 = vmatpush1.xpose.msra.mxu0 0.0
        %1516 = vmatprep.subr.mxu0 0.0
        %1517 = vmatpush1.xpose.msra.mxu0 0.0
        %1518 = vmatprep.subr.mxu0 0.0
        %1519 = vmatpush1.xpose.msra.mxu0 0.0
        %1520 = vmatprep.subr.mxu0 0.0
        %1521 = vmatpush1.xpose.msra.mxu0 0.0
        %1522 = vmatprep.subr.mxu0 0.0
        %1523 = vmatpush1.xpose.msra.mxu0 0.0
        %1524 = vmatprep.subr.mxu0 0.0
        %1525 = vmatpush1.xpose.msra.mxu0 0.0
        %1526 = vmatprep.subr.mxu0 0.0
        %1527 = vmatpush1.xpose.msra.mxu0 0.0
        %1528 = vmatprep.subr.mxu0 0.0
        %1529 = vmatpush1.xpose.msra.mxu0 0.0
        %1530 = vmatprep.subr.mxu0 0.0
        %1531 = vmatpush1.xpose.msra.mxu0 0.0
        %1532 = vmatprep.subr.mxu0 0.0
        %1533 = vmatpush1.xpose.msra.mxu0 0.0
        %1534 = vmatprep.subr.mxu0 0.0
        %1535 = vmatpush1.xpose.msra.mxu0 0.0
        %1536 = vmatprep.subr.mxu0 0.0
        %1537 = vmatpush1.xpose.msra.mxu0 0.0
        %1538 = vmatprep.subr.mxu0 0.0
        %1539 = vmatpush1.xpose.msra.mxu0 0.0
        %1540 = vmatprep.subr.mxu0 0.0
        %1541 = vmatpush1.xpose.msra.mxu0 0.0
        %1542 = vmatprep.subr.mxu0 0.0
        %1543 = vmatpush1.xpose.msra.mxu0 0.0
        %1544 = vmatprep.subr.mxu0 0.0
        %1545 = vmatpush1.xpose.msra.mxu0 0.0
        %1546 = vmatprep.subr.mxu0 0.0
        %1547 = vmatpush1.xpose.msra.mxu0 0.0
        %1548 = vmatprep.mubr.f32.mxu0 0.0
        %1549 = vmatmul.mubr.f32.gmra.mrb[0].mxu0 %v1480
        %v1550 = vpop.f32.mrb[0].mxu0
        %v1551 = vadd.f32 0.0, %v1550
        %v1552 = vpop.f32.mrb[0].mxu0
        %1553 = vdwg.mxu0
        %v1554 = vmul.f32 %v1551, 0.35355338
        %v1555 = vsel %vm753, %v1554, -inf
        %1556 = vmax.xlane.f32.xlu0 %v1555
        %v1557 = vpop.xlane.xlu0 %1556
        %v1558 = vsub.f32 %v1554, %v1557
        %v1559 = vmul.f32 %v1558, 1.442695
        %v1560 = vpow.pop %v1559
        %v1561 = vsel %vm753, %v1560, 0.0
        %1562 = vadd.xlane.f32.xlu0 %v1561
        %v1563 = vpop.xlane.xlu0 %1562
        %v1564 = vrcp.pop %v1563
        %1565 = vrot.lane.b32.xlu0 %v742, 40
        %v1566 = vpop.permute.xlu0 %1565
        %v1569 = vsel %vm753, %v1560, 0
        %1571 = vmatprep.subr.mxu0 0.0
        %1572 = vmatpush1.msra.mxu0 %v1566
        %1573 = vmatprep.subr.mxu0 0.0
        %1574 = vmatpush1.msra.mxu0 0.0
        %1575 = vmatprep.subr.mxu0 0.0
        %1576 = vmatpush1.msra.mxu0 0.0
        %1577 = vmatprep.subr.mxu0 0.0
        %1578 = vmatpush1.msra.mxu0 0.0
        %1579 = vmatprep.subr.mxu0 0.0
        %1580 = vmatpush1.msra.mxu0 0.0
        %1581 = vmatprep.subr.mxu0 0.0
        %1582 = vmatpush1.msra.mxu0 0.0
        %1583 = vmatprep.subr.mxu0 0.0
        %1584 = vmatpush1.msra.mxu0 0.0
        %1585 = vmatprep.subr.mxu0 0.0
        %1586 = vmatpush1.msra.mxu0 0.0
        %1587 = vmatprep.subr.mxu0 0.0
        %1588 = vmatpush1.msra.mxu0 0.0
        %1589 = vmatprep.subr.mxu0 0.0
        %1590 = vmatpush1.msra.mxu0 0.0
        %1591 = vmatprep.subr.mxu0 0.0
        %1592 = vmatpush1.msra.mxu0 0.0
        %1593 = vmatprep.subr.mxu0 0.0
        %1594 = vmatpush1.msra.mxu0 0.0
        %1595 = vmatprep.subr.mxu0 0.0
        %1596 = vmatpush1.msra.mxu0 0.0
        %1597 = vmatprep.subr.mxu0 0.0
        %1598 = vmatpush1.msra.mxu0 0.0
        %1599 = vmatprep.subr.mxu0 0.0
        %1600 = vmatpush1.msra.mxu0 0.0
        %1601 = vmatprep.subr.mxu0 0.0
        %1602 = vmatpush1.msra.mxu0 0.0
        %1603 = vmatprep.subr.mxu0 0.0
        %1604 = vmatpush1.msra.mxu0 0.0
        %1605 = vmatprep.subr.mxu0 0.0
        %1606 = vmatpush1.msra.mxu0 0.0
        %1607 = vmatprep.subr.mxu0 0.0
        %1608 = vmatpush1.msra.mxu0 0.0
        %1609 = vmatprep.subr.mxu0 0.0
        %1610 = vmatpush1.msra.mxu0 0.0
        %1611 = vmatprep.subr.mxu0 0.0
        %1612 = vmatpush1.msra.mxu0 0.0
        %1613 = vmatprep.subr.mxu0 0.0
        %1614 = vmatpush1.msra.mxu0 0.0
        %1615 = vmatprep.subr.mxu0 0.0
        %1616 = vmatpush1.msra.mxu0 0.0
        %1617 = vmatprep.subr.mxu0 0.0
        %1618 = vmatpush1.msra.mxu0 0.0
        %1619 = vmatprep.subr.mxu0 0.0
        %1620 = vmatpush1.msra.mxu0 0.0
        %1621 = vmatprep.subr.mxu0 0.0
        %1622 = vmatpush1.msra.mxu0 0.0
        %1623 = vmatprep.subr.mxu0 0.0
        %1624 = vmatpush1.msra.mxu0 0.0
        %1625 = vmatprep.subr.mxu0 0.0
        %1626 = vmatpush1.msra.mxu0 0.0
        %1627 = vmatprep.subr.mxu0 0.0
        %1628 = vmatpush1.msra.mxu0 0.0
        %1629 = vmatprep.subr.mxu0 0.0
        %1630 = vmatpush1.msra.mxu0 0.0
        %1631 = vmatprep.subr.mxu0 0.0
        %1632 = vmatpush1.msra.mxu0 0.0
        %1633 = vmatprep.subr.mxu0 0.0
        %1634 = vmatpush1.msra.mxu0 0.0
        %1635 = vmatprep.mubr.f32.mxu0 0.0
        %1636 = vmatmul.mubr.f32.gmra.mrb[0].mxu0 %v1569
        %v1637 = vpop.f32.mrb[0].mxu0
        %v1638 = vadd.f32 0.0, %v1637
        %v1639 = vpop.f32.mrb[0].mxu0
        %1640 = vdwg.mxu0
        %v1641 = vmul.f32 %v1638, %v1564
        %v1643 = vsel %vm753, %v1641, 0
        %1645 = vmatprep.subr.mxu0 0.0
        %1646 = vmatpush1.msra.mxu0 %v748
        %1647 = vmatprep.subr.mxu0 0.0
        %1648 = vmatpush1.msra.mxu0 0.0
        %1649 = vmatprep.subr.mxu0 0.0
        %1650 = vmatpush1.msra.mxu0 0.0
        %1651 = vmatprep.subr.mxu0 0.0
        %1652 = vmatpush1.msra.mxu0 0.0
        %1653 = vmatprep.subr.mxu0 0.0
        %1654 = vmatpush1.msra.mxu0 0.0
        %1655 = vmatprep.subr.mxu0 0.0
        %1656 = vmatpush1.msra.mxu0 0.0
        %1657 = vmatprep.subr.mxu0 0.0
        %1658 = vmatpush1.msra.mxu0 0.0
        %1659 = vmatprep.subr.mxu0 0.0
        %1660 = vmatpush1.msra.mxu0 0.0
        %1661 = vmatprep.subr.mxu0 0.0
        %1662 = vmatpush1.msra.mxu0 0.0
        %1663 = vmatprep.subr.mxu0 0.0
        %1664 = vmatpush1.msra.mxu0 0.0
        %1665 = vmatprep.subr.mxu0 0.0
        %1666 = vmatpush1.msra.mxu0 0.0
        %1667 = vmatprep.subr.mxu0 0.0
        %1668 = vmatpush1.msra.mxu0 0.0
        %1669 = vmatprep.subr.mxu0 0.0
        %1670 = vmatpush1.msra.mxu0 0.0
        %1671 = vmatprep.subr.mxu0 0.0
        %1672 = vmatpush1.msra.mxu0 0.0
        %1673 = vmatprep.subr.mxu0 0.0
        %1674 = vmatpush1.msra.mxu0 0.0
        %1675 = vmatprep.subr.mxu0 0.0
        %1676 = vmatpush1.msra.mxu0 0.0
        %1677 = vmatprep.subr.mxu0 0.0
        %1678 = vmatpush1.msra.mxu0 0.0
        %1679 = vmatprep.subr.mxu0 0.0
        %1680 = vmatpush1.msra.mxu0 0.0
        %1681 = vmatprep.subr.mxu0 0.0
        %1682 = vmatpush1.msra.mxu0 0.0
        %1683 = vmatprep.subr.mxu0 0.0
        %1684 = vmatpush1.msra.mxu0 0.0
        %1685 = vmatprep.subr.mxu0 0.0
        %1686 = vmatpush1.msra.mxu0 0.0
        %1687 = vmatprep.subr.mxu0 0.0
        %1688 = vmatpush1.msra.mxu0 0.0
        %1689 = vmatprep.subr.mxu0 0.0
        %1690 = vmatpush1.msra.mxu0 0.0
        %1691 = vmatprep.subr.mxu0 0.0
        %1692 = vmatpush1.msra.mxu0 0.0
        %1693 = vmatprep.subr.mxu0 0.0
        %1694 = vmatpush1.msra.mxu0 0.0
        %1695 = vmatprep.subr.mxu0 0.0
        %1696 = vmatpush1.msra.mxu0 0.0
        %1697 = vmatprep.subr.mxu0 0.0
        %1698 = vmatpush1.msra.mxu0 0.0
        %1699 = vmatprep.subr.mxu0 0.0
        %1700 = vmatpush1.msra.mxu0 0.0
        %1701 = vmatprep.subr.mxu0 0.0
        %1702 = vmatpush1.msra.mxu0 0.0
        %1703 = vmatprep.subr.mxu0 0.0
        %1704 = vmatpush1.msra.mxu0 0.0
        %1705 = vmatprep.subr.mxu0 0.0
        %1706 = vmatpush1.msra.mxu0 0.0
        %1707 = vmatprep.subr.mxu0 0.0
        %1708 = vmatpush1.msra.mxu0 0.0
        %1709 = vmatprep.mubr.f32.mxu0 0.0
        %1710 = vmatmul.mubr.f32.gmra.mrb[0].mxu0 %v1643
        %v1711 = vpop.f32.mrb[0].mxu0
        %v1712 = vadd.f32 0.0, %v1711
        %v1713 = vpop.f32.mrb[0].mxu0
        %1714 = vdwg.mxu0
        %v1715 = vadd.f32 %v1475, %v1712
        %v1716 = vadd.f32 %v659, %v1715
        %v1717 = vld [vmem:[%s8] sm:$0x1]
        %v1718 = vld [vmem:[%s9] sm:$0x1]
        %v1719 = vsel %vm671, %v1716, 0.0
        %1720 = vadd.xlane.f32.xlu0 %v1719
        %v1721 = vpop.xlane.xlu0 %1720
        %v1722 = vrcp.pop 32.0
        %v1723 = vmul.f32 %v1721, %v1722
        %v1724 = vsub.f32 %v1716, %v1723
        %v1725 = vmul.f32 %v1724, %v1724
        %v1726 = vsel %vm671, %v1725, 0.0
        %1727 = vadd.xlane.f32.xlu0 %v1726
        %v1728 = vpop.xlane.xlu0 %1727
        %v1729 = vmul.f32 %v1728, %v1722
        %v1730 = vadd.f32 %v1729, 1e-05
        %v1731 = vrsqrt.pop %v1730
        %v1732 = vmul.f32 %v1724, %v1731
        %v1734 = vlaneseq
        %v1735 = vshrl.u32 %v1734, 7
        %v1736 = vsub.s32 0, %v1735
        %v1737 = vrot.slane %v1717, %v1736
        %v1739 = vmul.f32 %v1732, %v1737
        %v1741 = vlaneseq
        %v1742 = vshrl.u32 %v1741, 7
        %v1743 = vsub.s32 0, %v1742
        %v1744 = vrot.slane %v1718, %v1743
        %v1746 = vadd.f32 %v1739, %v1744
        %v1747 = vld [vmem:[%s10] sm:$0xff]
        %v1748 = vld [vmem:[%s10 + $0x8] sm:$0xff]
        %v1749 = vld [vmem:[%s10 + $0x10] sm:$0xff]
        %v1750 = vld [vmem:[%s10 + $0x18] sm:$0xff]
        %v1751 = vld [vmem:[%s11] sm:$0x1]
        %v1753 = vlaneseq
        %v1754 = vshrl.u32 %v1753, 7
        %v1755 = vsub.s32 0, %v1754
        %v1756 = vrot.slane %v1751, %v1755
        %v1759 = vsel %vm671, %v1746, 0
        %1761 = vmatprep.subr.mxu0 0.0
        %1762 = vmatpush1.msra.mxu0 %v1747
        %1763 = vmatprep.subr.mxu0 0.0
        %1764 = vmatpush1.msra.mxu0 %v1748
        %1765 = vmatprep.subr.mxu0 0.0
        %1766 = vmatpush1.msra.mxu0 %v1749
        %1767 = vmatprep.subr.mxu0 0.0
        %1768 = vmatpush1.msra.mxu0 %v1750
        %1769 = vmatprep.subr.mxu0 0.0
        %1770 = vmatpush1.msra.mxu0 0.0
        %1771 = vmatprep.subr.mxu0 0.0
        %1772 = vmatpush1.msra.mxu0 0.0
        %1773 = vmatprep.subr.mxu0 0.0
        %1774 = vmatpush1.msra.mxu0 0.0
        %1775 = vmatprep.subr.mxu0 0.0
        %1776 = vmatpush1.msra.mxu0 0.0
        %1777 = vmatprep.subr.mxu0 0.0
        %1778 = vmatpush1.msra.mxu0 0.0
        %1779 = vmatprep.subr.mxu0 0.0
        %1780 = vmatpush1.msra.mxu0 0.0
        %1781 = vmatprep.subr.mxu0 0.0
        %1782 = vmatpush1.msra.mxu0 0.0
        %1783 = vmatprep.subr.mxu0 0.0
        %1784 = vmatpush1.msra.mxu0 0.0
        %1785 = vmatprep.subr.mxu0 0.0
        %1786 = vmatpush1.msra.mxu0 0.0
        %1787 = vmatprep.subr.mxu0 0.0
        %1788 = vmatpush1.msra.mxu0 0.0
        %1789 = vmatprep.subr.mxu0 0.0
        %1790 = vmatpush1.msra.mxu0 0.0
        %1791 = vmatprep.subr.mxu0 0.0
        %1792 = vmatpush1.msra.mxu0 0.0
        %1793 = vmatprep.subr.mxu0 0.0
        %1794 = vmatpush1.msra.mxu0 0.0
        %1795 = vmatprep.subr.mxu0 0.0
        %1796 = vmatpush1.msra.mxu0 0.0
        %1797 = vmatprep.subr.mxu0 0.0
        %1798 = vmatpush1.msra.mxu0 0.0
        %1799 = vmatprep.subr.mxu0 0.0
        %1800 = vmatpush1.msra.mxu0 0.0
        %1801 = vmatprep.subr.mxu0 0.0
        %1802 = vmatpush1.msra.mxu0 0.0
        %1803 = vmatprep.subr.mxu0 0.0
        %1804 = vmatpush1.msra.mxu0 0.0
        %1805 = vmatprep.subr.mxu0 0.0
        %1806 = vmatpush1.msra.mxu0 0.0
        %1807 = vmatprep.subr.mxu0 0.0
        %1808 = vmatpush1.msra.mxu0 0.0
        %1809 = vmatprep.subr.mxu0 0.0
        %1810 = vmatpush1.msra.mxu0 0.0
        %1811 = vmatprep.subr.mxu0 0.0
        %1812 = vmatpush1.msra.mxu0 0.0
        %1813 = vmatprep.subr.mxu0 0.0
        %1814 = vmatpush1.msra.mxu0 0.0
        %1815 = vmatprep.subr.mxu0 0.0
        %1816 = vmatpush1.msra.mxu0 0.0
        %1817 = vmatprep.subr.mxu0 0.0
        %1818 = vmatpush1.msra.mxu0 0.0
        %1819 = vmatprep.subr.mxu0 0.0
        %1820 = vmatpush1.msra.mxu0 0.0
        %1821 = vmatprep.subr.mxu0 0.0
        %1822 = vmatpush1.msra.mxu0 0.0
        %1823 = vmatprep.subr.mxu0 0.0
        %1824 = vmatpush1.msra.mxu0 0.0
        %1825 = vmatprep.mubr.f32.mxu0 0.0
        %1826 = vmatmul.mubr.f32.gmra.mrb[0].mxu0 %v1759
        %v1827 = vpop.f32.mrb[0].mxu0
        %v1828 = vadd.f32 %v1756, %v1827
        %v1829 = vpop.f32.mrb[0].mxu0
        %1830 = vdwg.mxu0
        %v1831 = vmul.f32 %v1828, 0.5
        %v1832 = vmul.f32 %v1828, 0.70710677
        %v1833 = vand.u32 2147483647, %v1832
        %v1834 = vmul.f32 %v1833, 0.3275911
        %v1835 = vadd.f32 %v1834, 1.0
        %v1836 = vrcp.pop %v1835
        %v1837 = vmul.f32 1.0, %v1836
        %v1838 = vmul.f32 %v1837, 1.0614054
        %v1839 = vadd.f32 %v1838, -1.4531521
        %v1840 = vmul.f32 %v1839, %v1837
        %v1841 = vadd.f32 %v1840, 1.4214138
        %v1842 = vmul.f32 %v1841, %v1837
        %v1843 = vadd.f32 %v1842, -0.28449672
        %v1844 = vmul.f32 %v1843, %v1837
        %v1845 = vadd.f32 %v1844, 0.2548296
        %v1846 = vmul.f32 %v1845, %v1837
        %v1847 = vsub.f32 0.0, %v1833
        %v1848 = vmul.f32 %v1847, %v1833
        %v1849 = vmul.f32 %v1848, 1.442695
        %v1850 = vpow.pop %v1849
        %v1851 = vmul.f32 %v1846, %v1850
        %v1852 = vsub.f32 1.0, %v1851
        %vm1853 = vcmp.lt.f32.partialorder %v1832, 0.0
        %v1854 = vsub.f32 0.0, %v1852
        %v1855 = vsel %vm1853, %v1854, %v1852
        %v1856 = vadd.f32 %v1855, 1.0
        %v1857 = vmul.f32 %v1831, %v1856
        %v1858 = vld [vmem:[%s12] sm:$0xff]
        %v1859 = vld [vmem:[%s12 + $0x8] sm:$0xff]
        %v1860 = vld [vmem:[%s12 + $0x10] sm:$0xff]
        %v1861 = vld [vmem:[%s12 + $0x18] sm:$0xff]
        %v1862 = vld [vmem:[%s12 + $0x20] sm:$0xff]
        %v1863 = vld [vmem:[%s12 + $0x28] sm:$0xff]
        %v1864 = vld [vmem:[%s12 + $0x30] sm:$0xff]
        %v1865 = vld [vmem:[%s12 + $0x38] sm:$0xff]
        %v1866 = vld [vmem:[%s12 + $0x40] sm:$0xff]
        %v1867 = vld [vmem:[%s12 + $0x48] sm:$0xff]
        %v1868 = vld [vmem:[%s12 + $0x50] sm:$0xff]
        %v1869 = vld [vmem:[%s12 + $0x58] sm:$0xff]
        %v1870 = vld [vmem:[%s12 + $0x60] sm:$0xff]
        %v1871 = vld [vmem:[%s12 + $0x68] sm:$0xff]
        %v1872 = vld [vmem:[%s12 + $0x70] sm:$0xff]
        %v1873 = vld [vmem:[%s12 + $0x78] sm:$0xff]
        %v1874 = vld [vmem:[%s13] sm:$0x1]
        %v1876 = vlaneseq
        %v1877 = vshrl.u32 %v1876, 7
        %v1878 = vsub.s32 0, %v1877
        %v1879 = vrot.slane %v1874, %v1878
        %1881 = vmatprep.subr.mxu0 0.0
        %1882 = vmatpush1.msra.mxu0 %v1858
        %1883 = vmatprep.subr.mxu0 0.0
        %1884 = vmatpush1.msra.mxu0 %v1859
        %1885 = vmatprep.subr.mxu0 0.0
        %1886 = vmatpush1.msra.mxu0 %v1860
        %1887 = vmatprep.subr.mxu0 0.0
        %1888 = vmatpush1.msra.mxu0 %v1861
        %1889 = vmatprep.subr.mxu0 0.0
        %1890 = vmatpush1.msra.mxu0 %v1862
        %1891 = vmatprep.subr.mxu0 0.0
        %1892 = vmatpush1.msra.mxu0 %v1863
        %1893 = vmatprep.subr.mxu0 0.0
        %1894 = vmatpush1.msra.mxu0 %v1864
        %1895 = vmatprep.subr.mxu0 0.0
        %1896 = vmatpush1.msra.mxu0 %v1865
        %1897 = vmatprep.subr.mxu0 0.0
        %1898 = vmatpush1.msra.mxu0 %v1866
        %1899 = vmatprep.subr.mxu0 0.0
        %1900 = vmatpush1.msra.mxu0 %v1867
        %1901 = vmatprep.subr.mxu0 0.0
        %1902 = vmatpush1.msra.mxu0 %v1868
        %1903 = vmatprep.subr.mxu0 0.0
        %1904 = vmatpush1.msra.mxu0 %v1869
        %1905 = vmatprep.subr.mxu0 0.0
        %1906 = vmatpush1.msra.mxu0 %v1870
        %1907 = vmatprep.subr.mxu0 0.0
        %1908 = vmatpush1.msra.mxu0 %v1871
        %1909 = vmatprep.subr.mxu0 0.0
        %1910 = vmatpush1.msra.mxu0 %v1872
        %1911 = vmatprep.subr.mxu0 0.0
        %1912 = vmatpush1.msra.mxu0 %v1873
        %1913 = vmatprep.subr.mxu0 0.0
        %1914 = vmatpush1.msra.mxu0 0.0
        %1915 = vmatprep.subr.mxu0 0.0
        %1916 = vmatpush1.msra.mxu0 0.0
        %1917 = vmatprep.subr.mxu0 0.0
        %1918 = vmatpush1.msra.mxu0 0.0
        %1919 = vmatprep.subr.mxu0 0.0
        %1920 = vmatpush1.msra.mxu0 0.0
        %1921 = vmatprep.subr.mxu0 0.0
        %1922 = vmatpush1.msra.mxu0 0.0
        %1923 = vmatprep.subr.mxu0 0.0
        %1924 = vmatpush1.msra.mxu0 0.0
        %1925 = vmatprep.subr.mxu0 0.0
        %1926 = vmatpush1.msra.mxu0 0.0
        %1927 = vmatprep.subr.mxu0 0.0
        %1928 = vmatpush1.msra.mxu0 0.0
        %1929 = vmatprep.subr.mxu0 0.0
        %1930 = vmatpush1.msra.mxu0 0.0
        %1931 = vmatprep.subr.mxu0 0.0
        %1932 = vmatpush1.msra.mxu0 0.0
        %1933 = vmatprep.subr.mxu0 0.0
        %1934 = vmatpush1.msra.mxu0 0.0
        %1935 = vmatprep.subr.mxu0 0.0
        %1936 = vmatpush1.msra.mxu0 0.0
        %1937 = vmatprep.subr.mxu0 0.0
        %1938 = vmatpush1.msra.mxu0 0.0
        %1939 = vmatprep.subr.mxu0 0.0
        %1940 = vmatpush1.msra.mxu0 0.0
        %1941 = vmatprep.subr.mxu0 0.0
        %1942 = vmatpush1.msra.mxu0 0.0
        %1943 = vmatprep.subr.mxu0 0.0
        %1944 = vmatpush1.msra.mxu0 0.0
        %1945 = vmatprep.mubr.f32.mxu0 0.0
        %1946 = vmatmul.mubr.f32.gmra.mrb[0].mxu0 %v1857
        %v1947 = vpop.f32.mrb[0].mxu0
        %v1948 = vadd.f32 %v1879, %v1947
        %v1949 = vpop.f32.mrb[0].mxu0
        %1950 = vdwg.mxu0
        %v1951 = vadd.f32 %v1746, %v1948
        %v1952 = vld [vmem:[%s14] sm:$0x1]
        %v1953 = vld [vmem:[%s15] sm:$0x1]
        %v1954 = vsel %vm671, %v1951, 0.0
        %1955 = vadd.xlane.f32.xlu0 %v1954
        %v1956 = vpop.xlane.xlu0 %1955
        %v1957 = vmul.f32 %v1956, %v1722
        %v1958 = vsub.f32 %v1951, %v1957
        %v1959 = vmul.f32 %v1958, %v1958
        %v1960 = vsel %vm671, %v1959, 0.0
        %1961 = vadd.xlane.f32.xlu0 %v1960
        %v1962 = vpop.xlane.xlu0 %1961
        %v1963 = vmul.f32 %v1962, %v1722
        %v1964 = vadd.f32 %v1963, 1e-05
        %v1965 = vrsqrt.pop %v1964
        %v1966 = vmul.f32 %v1958, %v1965
        %v1968 = vlaneseq
        %v1969 = vshrl.u32 %v1968, 7
        %v1970 = vsub.s32 0, %v1969
        %v1971 = vrot.slane %v1952, %v1970
        %v1973 = vmul.f32 %v1966, %v1971
        %v1975 = vlaneseq
        %v1976 = vshrl.u32 %v1975, 7
        %v1977 = vsub.s32 0, %v1976
        %v1978 = vrot.slane %v1953, %v1977
        %v1980 = vadd.f32 %v1973, %v1978
        %s1981 = scalar_lea.vmem %s4, 32
        %v1982 = vld [vmem:[%s1981] sm:$0xff]
        %v1983 = vld [vmem:[%s1981 + $0x8] sm:$0xff]
        %v1984 = vld [vmem:[%s1981 + $0x10] sm:$0xff]
        %v1985 = vld [vmem:[%s1981 + $0x18] sm:$0xff]
        %s1986 = scalar_lea.vmem %s5, 1
        %v1987 = vld [vmem:[%s1986] sm:$0x1]
        %v1989 = vlaneseq
        %v1990 = vshrl.u32 %v1989, 7
        %v1991 = vsub.s32 0, %v1990
        %v1992 = vrot.slane %v1987, %v1991
        %v1995 = vsel %vm671, %v1980, 0
        %1997 = vmatprep.subr.mxu0 0.0
        %1998 = vmatpush1.msra.mxu0 %v1982
        %1999 = vmatprep.subr.mxu0 0.0
        %2000 = vmatpush1.msra.mxu0 %v1983
        %2001 = vmatprep.subr.mxu0 0.0
        %2002 = vmatpush1.msra.mxu0 %v1984
        %2003 = vmatprep.subr.mxu0 0.0
        %2004 = vmatpush1.msra.mxu0 %v1985
        %2005 = vmatprep.subr.mxu0 0.0
        %2006 = vmatpush1.msra.mxu0 0.0
        %2007 = vmatprep.subr.mxu0 0.0
        %2008 = vmatpush1.msra.mxu0 0.0
        %2009 = vmatprep.subr.mxu0 0.0
        %2010 = vmatpush1.msra.mxu0 0.0
        %2011 = vmatprep.subr.mxu0 0.0
        %2012 = vmatpush1.msra.mxu0 0.0
        %2013 = vmatprep.subr.mxu0 0.0
        %2014 = vmatpush1.msra.mxu0 0.0
        %2015 = vmatprep.subr.mxu0 0.0
        %2016 = vmatpush1.msra.mxu0 0.0
        %2017 = vmatprep.subr.mxu0 0.0
        %2018 = vmatpush1.msra.mxu0 0.0
        %2019 = vmatprep.subr.mxu0 0.0
        %2020 = vmatpush1.msra.mxu0 0.0
        %2021 = vmatprep.subr.mxu0 0.0
        %2022 = vmatpush1.msra.mxu0 0.0
        %2023 = vmatprep.subr.mxu0 0.0
        %2024 = vmatpush1.msra.mxu0 0.0
        %2025 = vmatprep.subr.mxu0 0.0
        %2026 = vmatpush1.msra.mxu0 0.0
        %2027 = vmatprep.subr.mxu0 0.0
        %2028 = vmatpush1.msra.mxu0 0.0
        %2029 = vmatprep.subr.mxu0 0.0
        %2030 = vmatpush1.msra.mxu0 0.0
        %2031 = vmatprep.subr.mxu0 0.0
        %2032 = vmatpush1.msra.mxu0 0.0
        %2033 = vmatprep.subr.mxu0 0.0
        %2034 = vmatpush1.msra.mxu0 0.0
        %2035 = vmatprep.subr.mxu0 0.0
        %2036 = vmatpush1.msra.mxu0 0.0
        %2037 = vmatprep.subr.mxu0 0.0
        %2038 = vmatpush1.msra.mxu0 0.0
        %2039 = vmatprep.subr.mxu0 0.0
        %2040 = vmatpush1.msra.mxu0 0.0
        %2041 = vmatprep.subr.mxu0 0.0
        %2042 = vmatpush1.msra.mxu0 0.0
        %2043 = vmatprep.subr.mxu0 0.0
        %2044 = vmatpush1.msra.mxu0 0.0
        %2045 = vmatprep.subr.mxu0 0.0
        %2046 = vmatpush1.msra.mxu0 0.0
        %2047 = vmatprep.subr.mxu0 0.0
        %2048 = vmatpush1.msra.mxu0 0.0
        %2049 = vmatprep.subr.mxu0 0.0
        %2050 = vmatpush1.msra.mxu0 0.0
        %2051 = vmatprep.subr.mxu0 0.0
        %2052 = vmatpush1.msra.mxu0 0.0
        %2053 = vmatprep.subr.mxu0 0.0
        %2054 = vmatpush1.msra.mxu0 0.0
        %2055 = vmatprep.subr.mxu0 0.0
        %2056 = vmatpush1.msra.mxu0 0.0
        %2057 = vmatprep.subr.mxu0 0.0
        %2058 = vmatpush1.msra.mxu0 0.0
        %2059 = vmatprep.subr.mxu0 0.0
        %2060 = vmatpush1.msra.mxu0 0.0
        %2061 = vmatprep.mubr.f32.mxu0 0.0
        %2062 = vmatmul.mubr.f32.gmra.mrb[0].mxu0 %v1995
        %v2063 = vpop.f32.mrb[0].mxu0
        %v2064 = vadd.f32 %v1992, %v2063
        %v2065 = vpop.f32.mrb[0].mxu0
        %2066 = vdwg.mxu0
        %s2067 = scalar_lea.vmem %s6, 32
        %v2068 = vld [vmem:[%s2067] sm:$0xff]
        %v2069 = vld [vmem:[%s2067 + $0x8] sm:$0xff]
        %v2070 = vld [vmem:[%s2067 + $0x10] sm:$0xff]
        %v2071 = vld [vmem:[%s2067 + $0x18] sm:$0xff]
        %s2072 = scalar_lea.vmem %s7, 1
        %v2073 = vld [vmem:[%s2072] sm:$0x1]
        %2075 = vrot.lane.b32.xlu0 %v2064, 96
        %v2076 = vpop.permute.xlu0 %2075
        %v2077 = vsel %vm753, %v2064, 0
        %v2079 = vsel %vm753, %v2076, 0
        %2081 = vmatprep.subr.mxu0 0.0
        %2082 = vmatpush1.xpose.msra.mxu0 %v2079
        %2083 = vmatprep.subr.mxu0 0.0
        %2084 = vmatpush1.xpose.msra.mxu0 0.0
        %2085 = vmatprep.subr.mxu0 0.0
        %2086 = vmatpush1.xpose.msra.mxu0 0.0
        %2087 = vmatprep.subr.mxu0 0.0
        %2088 = vmatpush1.xpose.msra.mxu0 0.0
        %2089 = vmatprep.subr.mxu0 0.0
        %2090 = vmatpush1.xpose.msra.mxu0 0.0
        %2091 = vmatprep.subr.mxu0 0.0
        %2092 = vmatpush1.xpose.msra.mxu0 0.0
        %2093 = vmatprep.subr.mxu0 0.0
        %2094 = vmatpush1.xpose.msra.mxu0 0.0
        %2095 = vmatprep.subr.mxu0 0.0
        %2096 = vmatpush1.xpose.msra.mxu0 0.0
        %2097 = vmatprep.subr.mxu0 0.0
        %2098 = vmatpush1.xpose.msra.mxu0 0.0
        %2099 = vmatprep.subr.mxu0 0.0
        %2100 = vmatpush1.xpose.msra.mxu0 0.0
        %2101 = vmatprep.subr.mxu0 0.0
        %2102 = vmatpush1.xpose.msra.mxu0 0.0
        %2103 = vmatprep.subr.mxu0 0.0
        %2104 = vmatpush1.xpose.msra.mxu0 0.0
        %2105 = vmatprep.subr.mxu0 0.0
        %2106 = vmatpush1.xpose.msra.mxu0 0.0
        %2107 = vmatprep.subr.mxu0 0.0
        %2108 = vmatpush1.xpose.msra.mxu0 0.0
        %2109 = vmatprep.subr.mxu0 0.0
        %2110 = vmatpush1.xpose.msra.mxu0 0.0
        %2111 = vmatprep.subr.mxu0 0.0
        %2112 = vmatpush1.xpose.msra.mxu0 0.0
        %2113 = vmatprep.subr.mxu0 0.0
        %2114 = vmatpush1.xpose.msra.mxu0 0.0
        %2115 = vmatprep.subr.mxu0 0.0
        %2116 = vmatpush1.xpose.msra.mxu0 0.0
        %2117 = vmatprep.subr.mxu0 0.0
        %2118 = vmatpush1.xpose.msra.mxu0 0.0
        %2119 = vmatprep.subr.mxu0 0.0
        %2120 = vmatpush1.xpose.msra.mxu0 0.0
        %2121 = vmatprep.subr.mxu0 0.0
        %2122 = vmatpush1.xpose.msra.mxu0 0.0
        %2123 = vmatprep.subr.mxu0 0.0
        %2124 = vmatpush1.xpose.msra.mxu0 0.0
        %2125 = vmatprep.subr.mxu0 0.0
        %2126 = vmatpush1.xpose.msra.mxu0 0.0
        %2127 = vmatprep.subr.mxu0 0.0
        %2128 = vmatpush1.xpose.msra.mxu0 0.0
        %2129 = vmatprep.subr.mxu0 0.0
        %2130 = vmatpush1.xpose.msra.mxu0 0.0
        %2131 = vmatprep.subr.mxu0 0.0
        %2132 = vmatpush1.xpose.msra.mxu0 0.0
        %2133 = vmatprep.subr.mxu0 0.0
        %2134 = vmatpush1.xpose.msra.mxu0 0.0
        %2135 = vmatprep.subr.mxu0 0.0
        %2136 = vmatpush1.xpose.msra.mxu0 0.0
        %2137 = vmatprep.subr.mxu0 0.0
        %2138 = vmatpush1.xpose.msra.mxu0 0.0
        %2139 = vmatprep.subr.mxu0 0.0
        %2140 = vmatpush1.xpose.msra.mxu0 0.0
        %2141 = vmatprep.subr.mxu0 0.0
        %2142 = vmatpush1.xpose.msra.mxu0 0.0
        %2143 = vmatprep.subr.mxu0 0.0
        %2144 = vmatpush1.xpose.msra.mxu0 0.0
        %2145 = vmatprep.mubr.f32.mxu0 0.0
        %2146 = vmatmul.mubr.f32.gmra.mrb[0].mxu0 %v2077
        %v2147 = vpop.f32.mrb[0].mxu0
        %v2148 = vadd.f32 0.0, %v2147
        %v2149 = vpop.f32.mrb[0].mxu0
        %2150 = vdwg.mxu0
        %v2151 = vmul.f32 %v2148, 0.35355338
        %v2152 = vsel %vm753, %v2151, -inf
        %2153 = vmax.xlane.f32.xlu0 %v2152
        %v2154 = vpop.xlane.xlu0 %2153
        %v2155 = vsub.f32 %v2151, %v2154
        %v2156 = vmul.f32 %v2155, 1.442695
        %v2157 = vpow.pop %v2156
        %v2158 = vsel %vm753, %v2157, 0.0
        %2159 = vadd.xlane.f32.xlu0 %v2158
        %v2160 = vpop.xlane.xlu0 %2159
        %v2161 = vrcp.pop %v2160
        %2162 = vrot.lane.b32.xlu0 %v2064, 64
        %v2163 = vpop.permute.xlu0 %2162
        %v2166 = vsel %vm753, %v2157, 0
        %2168 = vmatprep.subr.mxu0 0.0
        %2169 = vmatpush1.msra.mxu0 %v2163
        %2170 = vmatprep.subr.mxu0 0.0
        %2171 = vmatpush1.msra.mxu0 0.0
        %2172 = vmatprep.subr.mxu0 0.0
        %2173 = vmatpush1.msra.mxu0 0.0
        %2174 = vmatprep.subr.mxu0 0.0
        %2175 = vmatpush1.msra.mxu0 0.0
        %2176 = vmatprep.subr.mxu0 0.0
        %2177 = vmatpush1.msra.mxu0 0.0
        %2178 = vmatprep.subr.mxu0 0.0
        %2179 = vmatpush1.msra.mxu0 0.0
        %2180 = vmatprep.subr.mxu0 0.0
        %2181 = vmatpush1.msra.mxu0 0.0
        %2182 = vmatprep.subr.mxu0 0.0
        %2183 = vmatpush1.msra.mxu0 0.0
        %2184 = vmatprep.subr.mxu0 0.0
        %2185 = vmatpush1.msra.mxu0 0.0
        %2186 = vmatprep.subr.mxu0 0.0
        %2187 = vmatpush1.msra.mxu0 0.0
        %2188 = vmatprep.subr.mxu0 0.0
        %2189 = vmatpush1.msra.mxu0 0.0
        %2190 = vmatprep.subr.mxu0 0.0
        %2191 = vmatpush1.msra.mxu0 0.0
        %2192 = vmatprep.subr.mxu0 0.0
        %2193 = vmatpush1.msra.mxu0 0.0
        %2194 = vmatprep.subr.mxu0 0.0
        %2195 = vmatpush1.msra.mxu0 0.0
        %2196 = vmatprep.subr.mxu0 0.0
        %2197 = vmatpush1.msra.mxu0 0.0
        %2198 = vmatprep.subr.mxu0 0.0
        %2199 = vmatpush1.msra.mxu0 0.0
        %2200 = vmatprep.subr.mxu0 0.0
        %2201 = vmatpush1.msra.mxu0 0.0
        %2202 = vmatprep.subr.mxu0 0.0
        %2203 = vmatpush1.msra.mxu0 0.0
        %2204 = vmatprep.subr.mxu0 0.0
        %2205 = vmatpush1.msra.mxu0 0.0
        %2206 = vmatprep.subr.mxu0 0.0
        %2207 = vmatpush1.msra.mxu0 0.0
        %2208 = vmatprep.subr.mxu0 0.0
        %2209 = vmatpush1.msra.mxu0 0.0
        %2210 = vmatprep.subr.mxu0 0.0
        %2211 = vmatpush1.msra.mxu0 0.0
        %2212 = vmatprep.subr.mxu0 0.0
        %2213 = vmatpush1.msra.mxu0 0.0
        %2214 = vmatprep.subr.mxu0 0.0
        %2215 = vmatpush1.msra.mxu0 0.0
        %2216 = vmatprep.subr.mxu0 0.0
        %2217 = vmatpush1.msra.mxu0 0.0
        %2218 = vmatprep.subr.mxu0 0.0
        %2219 = vmatpush1.msra.mxu0 0.0
        %2220 = vmatprep.subr.mxu0 0.0
        %2221 = vmatpush1.msra.mxu0 0.0
        %2222 = vmatprep.subr.mxu0 0.0
        %2223 = vmatpush1.msra.mxu0 0.0
        %2224 = vmatprep.subr.mxu0 0.0
        %2225 = vmatpush1.msra.mxu0 0.0
        %2226 = vmatprep.subr.mxu0 0.0
        %2227 = vmatpush1.msra.mxu0 0.0
        %2228 = vmatprep.subr.mxu0 0.0
        %2229 = vmatpush1.msra.mxu0 0.0
        %2230 = vmatprep.subr.mxu0 0.0
        %2231 = vmatpush1.msra.mxu0 0.0
        %2232 = vmatprep.mubr.f32.mxu0 0.0
        %2233 = vmatmul.mubr.f32.gmra.mrb[0].mxu0 %v2166
        %v2234 = vpop.f32.mrb[0].mxu0
        %v2235 = vadd.f32 0.0, %v2234
        %v2236 = vpop.f32.mrb[0].mxu0
        %2237 = vdwg.mxu0
        %v2238 = vmul.f32 %v2235, %v2161
        %v2240 = vsel %vm753, %v2238, 0
        %2242 = vmatprep.subr.mxu0 0.0
        %2243 = vmatpush1.msra.mxu0 %v2068
        %2244 = vmatprep.subr.mxu0 0.0
        %2245 = vmatpush1.msra.mxu0 0.0
        %2246 = vmatprep.subr.mxu0 0.0
        %2247 = vmatpush1.msra.mxu0 0.0
        %2248 = vmatprep.subr.mxu0 0.0
        %2249 = vmatpush1.msra.mxu0 0.0
        %2250 = vmatprep.subr.mxu0 0.0
        %2251 = vmatpush1.msra.mxu0 0.0
        %2252 = vmatprep.subr.mxu0 0.0
        %2253 = vmatpush1.msra.mxu0 0.0
        %2254 = vmatprep.subr.mxu0 0.0
        %2255 = vmatpush1.msra.mxu0 0.0
        %2256 = vmatprep.subr.mxu0 0.0
        %2257 = vmatpush1.msra.mxu0 0.0
        %2258 = vmatprep.subr.mxu0 0.0
        %2259 = vmatpush1.msra.mxu0 0.0
        %2260 = vmatprep.subr.mxu0 0.0
        %2261 = vmatpush1.msra.mxu0 0.0
        %2262 = vmatprep.subr.mxu0 0.0
        %2263 = vmatpush1.msra.mxu0 0.0
        %2264 = vmatprep.subr.mxu0 0.0
        %2265 = vmatpush1.msra.mxu0 0.0
        %2266 = vmatprep.subr.mxu0 0.0
        %2267 = vmatpush1.msra.mxu0 0.0
        %2268 = vmatprep.subr.mxu0 0.0
        %2269 = vmatpush1.msra.mxu0 0.0
        %2270 = vmatprep.subr.mxu0 0.0
        %2271 = vmatpush1.msra.mxu0 0.0
        %2272 = vmatprep.subr.mxu0 0.0
        %2273 = vmatpush1.msra.mxu0 0.0
        %2274 = vmatprep.subr.mxu0 0.0
        %2275 = vmatpush1.msra.mxu0 0.0
        %2276 = vmatprep.subr.mxu0 0.0
        %2277 = vmatpush1.msra.mxu0 0.0
        %2278 = vmatprep.subr.mxu0 0.0
        %2279 = vmatpush1.msra.mxu0 0.0
        %2280 = vmatprep.subr.mxu0 0.0
        %2281 = vmatpush1.msra.mxu0 0.0
        %2282 = vmatprep.subr.mxu0 0.0
        %2283 = vmatpush1.msra.mxu0 0.0
        %2284 = vmatprep.subr.mxu0 0.0
        %2285 = vmatpush1.msra.mxu0 0.0
        %2286 = vmatprep.subr.mxu0 0.0
        %2287 = vmatpush1.msra.mxu0 0.0
        %2288 = vmatprep.subr.mxu0 0.0
        %2289 = vmatpush1.msra.mxu0 0.0
        %2290 = vmatprep.subr.mxu0 0.0
        %2291 = vmatpush1.msra.mxu0 0.0
        %2292 = vmatprep.subr.mxu0 0.0
        %2293 = vmatpush1.msra.mxu0 0.0
        %2294 = vmatprep.subr.mxu0 0.0
        %2295 = vmatpush1.msra.mxu0 0.0
        %2296 = vmatprep.subr.mxu0 0.0
        %2297 = vmatpush1.msra.mxu0 0.0
        %2298 = vmatprep.subr.mxu0 0.0
        %2299 = vmatpush1.msra.mxu0 0.0
        %2300 = vmatprep.subr.mxu0 0.0
        %2301 = vmatpush1.msra.mxu0 0.0
        %2302 = vmatprep.subr.mxu0 0.0
        %2303 = vmatpush1.msra.mxu0 0.0
        %2304 = vmatprep.subr.mxu0 0.0
        %2305 = vmatpush1.msra.mxu0 0.0
        %2306 = vmatprep.mubr.f32.mxu0 0.0
        %2307 = vmatmul.mubr.f32.gmra.mrb[0].mxu0 %v2240
        %v2308 = vpop.f32.mrb[0].mxu0
        %v2309 = vadd.f32 0.0, %v2308
        %v2310 = vpop.f32.mrb[0].mxu0
        %2311 = vdwg.mxu0
        %v2313 = vlaneseq
        %v2314 = vshrl.u32 %v2313, 7
        %v2315 = vsub.s32 0, %v2314
        %v2316 = vrot.slane %v2073, %v2315
        %v2318 = vadd.f32 %v2316, %v2309
        %2319 = vrot.lane.b32.xlu0 %v2064, 120
        %v2320 = vpop.permute.xlu0 %2319
        %2321 = vrot.lane.b32.xlu0 %v2064, 88
        %v2322 = vpop.permute.xlu0 %2321
        %v2323 = vsel %vm753, %v2320, 0
        %v2325 = vsel %vm753, %v2322, 0
        %2327 = vmatprep.subr.mxu0 0.0
        %2328 = vmatpush1.xpose.msra.mxu0 %v2325
        %2329 = vmatprep.subr.mxu0 0.0
        %2330 = vmatpush1.xpose.msra.mxu0 0.0
        %2331 = vmatprep.subr.mxu0 0.0
        %2332 = vmatpush1.xpose.msra.mxu0 0.0
        %2333 = vmatprep.subr.mxu0 0.0
        %2334 = vmatpush1.xpose.msra.mxu0 0.0
        %2335 = vmatprep.subr.mxu0 0.0
        %2336 = vmatpush1.xpose.msra.mxu0 0.0
        %2337 = vmatprep.subr.mxu0 0.0
        %2338 = vmatpush1.xpose.msra.mxu0 0.0
        %2339 = vmatprep.subr.mxu0 0.0
        %2340 = vmatpush1.xpose.msra.mxu0 0.0
        %2341 = vmatprep.subr.mxu0 0.0
        %2342 = vmatpush1.xpose.msra.mxu0 0.0
        %2343 = vmatprep.subr.mxu0 0.0
        %2344 = vmatpush1.xpose.msra.mxu0 0.0
        %2345 = vmatprep.subr.mxu0 0.0
        %2346 = vmatpush1.xpose.msra.mxu0 0.0
        %2347 = vmatprep.subr.mxu0 0.0
        %2348 = vmatpush1.xpose.msra.mxu0 0.0
        %2349 = vmatprep.subr.mxu0 0.0
        %2350 = vmatpush1.xpose.msra.mxu0 0.0
        %2351 = vmatprep.subr.mxu0 0.0
        %2352 = vmatpush1.xpose.msra.mxu0 0.0
        %2353 = vmatprep.subr.mxu0 0.0
        %2354 = vmatpush1.xpose.msra.mxu0 0.0
        %2355 = vmatprep.subr.mxu0 0.0
        %2356 = vmatpush1.xpose.msra.mxu0 0.0
        %2357 = vmatprep.subr.mxu0 0.0
        %2358 = vmatpush1.xpose.msra.mxu0 0.0
        %2359 = vmatprep.subr.mxu0 0.0
        %2360 = vmatpush1.xpose.msra.mxu0 0.0
        %2361 = vmatprep.subr.mxu0 0.0
        %2362 = vmatpush1.xpose.msra.mxu0 0.0
        %2363 = vmatprep.subr.mxu0 0.0
        %2364 = vmatpush1.xpose.msra.mxu0 0.0
        %2365 = vmatprep.subr.mxu0 0.0
        %2366 = vmatpush1.xpose.msra.mxu0 0.0
        %2367 = vmatprep.subr.mxu0 0.0
        %2368 = vmatpush1.xpose.msra.mxu0 0.0
        %2369 = vmatprep.subr.mxu0 0.0
        %2370 = vmatpush1.xpose.msra.mxu0 0.0
        %2371 = vmatprep.subr.mxu0 0.0
        %2372 = vmatpush1.xpose.msra.mxu0 0.0
        %2373 = vmatprep.subr.mxu0 0.0
        %2374 = vmatpush1.xpose.msra.mxu0 0.0
        %2375 = vmatprep.subr.mxu0 0.0
        %2376 = vmatpush1.xpose.msra.mxu0 0.0
        %2377 = vmatprep.subr.mxu0 0.0
        %2378 = vmatpush1.xpose.msra.mxu0 0.0
        %2379 = vmatprep.subr.mxu0 0.0
        %2380 = vmatpush1.xpose.msra.mxu0 0.0
        %2381 = vmatprep.subr.mxu0 0.0
        %2382 = vmatpush1.xpose.msra.mxu0 0.0
        %2383 = vmatprep.subr.mxu0 0.0
        %2384 = vmatpush1.xpose.msra.mxu0 0.0
        %2385 = vmatprep.subr.mxu0 0.0
        %2386 = vmatpush1.xpose.msra.mxu0 0.0
        %2387 = vmatprep.subr.mxu0 0.0
        %2388 = vmatpush1.xpose.msra.mxu0 0.0
        %2389 = vmatprep.subr.mxu0 0.0
        %2390 = vmatpush1.xpose.msra.mxu0 0.0
        %2391 = vmatprep.mubr.f32.mxu0 0.0
        %2392 = vmatmul.mubr.f32.gmra.mrb[0].mxu0 %v2323
        %v2393 = vpop.f32.mrb[0].mxu0
        %v2394 = vadd.f32 0.0, %v2393
        %v2395 = vpop.f32.mrb[0].mxu0
        %2396 = vdwg.mxu0
        %v2397 = vmul.f32 %v2394, 0.35355338
        %v2398 = vsel %vm753, %v2397, -inf
        %2399 = vmax.xlane.f32.xlu0 %v2398
        %v2400 = vpop.xlane.xlu0 %2399
        %v2401 = vsub.f32 %v2397, %v2400
        %v2402 = vmul.f32 %v2401, 1.442695
        %v2403 = vpow.pop %v2402
        %v2404 = vsel %vm753, %v2403, 0.0
        %2405 = vadd.xlane.f32.xlu0 %v2404
        %v2406 = vpop.xlane.xlu0 %2405
        %v2407 = vrcp.pop %v2406
        %2408 = vrot.lane.b32.xlu0 %v2064, 56
        %v2409 = vpop.permute.xlu0 %2408
        %v2412 = vsel %vm753, %v2403, 0
        %2414 = vmatprep.subr.mxu0 0.0
        %2415 = vmatpush1.msra.mxu0 %v2409
        %2416 = vmatprep.subr.mxu0 0.0
        %2417 = vmatpush1.msra.mxu0 0.0
        %2418 = vmatprep.subr.mxu0 0.0
        %2419 = vmatpush1.msra.mxu0 0.0
        %2420 = vmatprep.subr.mxu0 0.0
        %2421 = vmatpush1.msra.mxu0 0.0
        %2422 = vmatprep.subr.mxu0 0.0
        %2423 = vmatpush1.msra.mxu0 0.0
        %2424 = vmatprep.subr.mxu0 0.0
        %2425 = vmatpush1.msra.mxu0 0.0
        %2426 = vmatprep.subr.mxu0 0.0
        %2427 = vmatpush1.msra.mxu0 0.0
        %2428 = vmatprep.subr.mxu0 0.0
        %2429 = vmatpush1.msra.mxu0 0.0
        %2430 = vmatprep.subr.mxu0 0.0
        %2431 = vmatpush1.msra.mxu0 0.0
        %2432 = vmatprep.subr.mxu0 0.0
        %2433 = vmatpush1.msra.mxu0 0.0
        %2434 = vmatprep.subr.mxu0 0.0
        %2435 = vmatpush1.msra.mxu0 0.0
        %2436 = vmatprep.subr.mxu0 0.0
        %2437 = vmatpush1.msra.mxu0 0.0
        %2438 = vmatprep.subr.mxu0 0.0
        %2439 = vmatpush1.msra.mxu0 0.0
        %2440 = vmatprep.subr.mxu0 0.0
        %2441 = vmatpush1.msra.mxu0 0.0
        %2442 = vmatprep.subr.mxu0 0.0
        %2443 = vmatpush1.msra.mxu0 0.0
        %2444 = vmatprep.subr.mxu0 0.0
        %2445 = vmatpush1.msra.mxu0 0.0
        %2446 = vmatprep.subr.mxu0 0.0
        %2447 = vmatpush1.msra.mxu0 0.0
        %2448 = vmatprep.subr.mxu0 0.0
        %2449 = vmatpush1.msra.mxu0 0.0
        %2450 = vmatprep.subr.mxu0 0.0
        %2451 = vmatpush1.msra.mxu0 0.0
        %2452 = vmatprep.subr.mxu0 0.0
        %2453 = vmatpush1.msra.mxu0 0.0
        %2454 = vmatprep.subr.mxu0 0.0
        %2455 = vmatpush1.msra.mxu0 0.0
        %2456 = vmatprep.subr.mxu0 0.0
        %2457 = vmatpush1.msra.mxu0 0.0
        %2458 = vmatprep.subr.mxu0 0.0
        %2459 = vmatpush1.msra.mxu0 0.0
        %2460 = vmatprep.subr.mxu0 0.0
        %2461 = vmatpush1.msra.mxu0 0.0
        %2462 = vmatprep.subr.mxu0 0.0
        %2463 = vmatpush1.msra.mxu0 0.0
        %2464 = vmatprep.subr.mxu0 0.0
        %2465 = vmatpush1.msra.mxu0 0.0
        %2466 = vmatprep.subr.mxu0 0.0
        %2467 = vmatpush1.msra.mxu0 0.0
        %2468 = vmatprep.subr.mxu0 0.0
        %2469 = vmatpush1.msra.mxu0 0.0
        %2470 = vmatprep.subr.mxu0 0.0
        %2471 = vmatpush1.msra.mxu0 0.0
        %2472 = vmatprep.subr.mxu0 0.0
        %2473 = vmatpush1.msra.mxu0 0.0
        %2474 = vmatprep.subr.mxu0 0.0
        %2475 = vmatpush1.msra.mxu0 0.0
        %2476 = vmatprep.subr.mxu0 0.0
        %2477 = vmatpush1.msra.mxu0 0.0
        %2478 = vmatprep.mubr.f32.mxu0 0.0
        %2479 = vmatmul.mubr.f32.gmra.mrb[0].mxu0 %v2412
        %v2480 = vpop.f32.mrb[0].mxu0
        %v2481 = vadd.f32 0.0, %v2480
        %v2482 = vpop.f32.mrb[0].mxu0
        %2483 = vdwg.mxu0
        %v2484 = vmul.f32 %v2481, %v2407
        %v2486 = vsel %vm753, %v2484, 0
        %2488 = vmatprep.subr.mxu0 0.0
        %2489 = vmatpush1.msra.mxu0 %v2069
        %2490 = vmatprep.subr.mxu0 0.0
        %2491 = vmatpush1.msra.mxu0 0.0
        %2492 = vmatprep.subr.mxu0 0.0
        %2493 = vmatpush1.msra.mxu0 0.0
        %2494 = vmatprep.subr.mxu0 0.0
        %2495 = vmatpush1.msra.mxu0 0.0
        %2496 = vmatprep.subr.mxu0 0.0
        %2497 = vmatpush1.msra.mxu0 0.0
        %2498 = vmatprep.subr.mxu0 0.0
        %2499 = vmatpush1.msra.mxu0 0.0
        %2500 = vmatprep.subr.mxu0 0.0
        %2501 = vmatpush1.msra.mxu0 0.0
        %2502 = vmatprep.subr.mxu0 0.0
        %2503 = vmatpush1.msra.mxu0 0.0
        %2504 = vmatprep.subr.mxu0 0.0
        %2505 = vmatpush1.msra.mxu0 0.0
        %2506 = vmatprep.subr.mxu0 0.0
        %2507 = vmatpush1.msra.mxu0 0.0
        %2508 = vmatprep.subr.mxu0 0.0
        %2509 = vmatpush1.msra.mxu0 0.0
        %2510 = vmatprep.subr.mxu0 0.0
        %2511 = vmatpush1.msra.mxu0 0.0
        %2512 = vmatprep.subr.mxu0 0.0
        %2513 = vmatpush1.msra.mxu0 0.0
        %2514 = vmatprep.subr.mxu0 0.0
        %2515 = vmatpush1.msra.mxu0 0.0
        %2516 = vmatprep.subr.mxu0 0.0
        %2517 = vmatpush1.msra.mxu0 0.0
        %2518 = vmatprep.subr.mxu0 0.0
        %2519 = vmatpush1.msra.mxu0 0.0
        %2520 = vmatprep.subr.mxu0 0.0
        %2521 = vmatpush1.msra.mxu0 0.0
        %2522 = vmatprep.subr.mxu0 0.0
        %2523 = vmatpush1.msra.mxu0 0.0
        %2524 = vmatprep.subr.mxu0 0.0
        %2525 = vmatpush1.msra.mxu0 0.0
        %2526 = vmatprep.subr.mxu0 0.0
        %2527 = vmatpush1.msra.mxu0 0.0
        %2528 = vmatprep.subr.mxu0 0.0
        %2529 = vmatpush1.msra.mxu0 0.0
        %2530 = vmatprep.subr.mxu0 0.0
        %2531 = vmatpush1.msra.mxu0 0.0
        %2532 = vmatprep.subr.mxu0 0.0
        %2533 = vmatpush1.msra.mxu0 0.0
        %2534 = vmatprep.subr.mxu0 0.0
        %2535 = vmatpush1.msra.mxu0 0.0
        %2536 = vmatprep.subr.mxu0 0.0
        %2537 = vmatpush1.msra.mxu0 0.0
        %2538 = vmatprep.subr.mxu0 0.0
        %2539 = vmatpush1.msra.mxu0 0.0
        %2540 = vmatprep.subr.mxu0 0.0
        %2541 = vmatpush1.msra.mxu0 0.0
        %2542 = vmatprep.subr.mxu0 0.0
        %2543 = vmatpush1.msra.mxu0 0.0
        %2544 = vmatprep.subr.mxu0 0.0
        %2545 = vmatpush1.msra.mxu0 0.0
        %2546 = vmatprep.subr.mxu0 0.0
        %2547 = vmatpush1.msra.mxu0 0.0
        %2548 = vmatprep.subr.mxu0 0.0
        %2549 = vmatpush1.msra.mxu0 0.0
        %2550 = vmatprep.subr.mxu0 0.0
        %2551 = vmatpush1.msra.mxu0 0.0
        %2552 = vmatprep.mubr.f32.mxu0 0.0
        %2553 = vmatmul.mubr.f32.gmra.mrb[0].mxu0 %v2486
        %v2554 = vpop.f32.mrb[0].mxu0
        %v2555 = vadd.f32 0.0, %v2554
        %v2556 = vpop.f32.mrb[0].mxu0
        %2557 = vdwg.mxu0
        %v2558 = vadd.f32 %v2318, %v2555
        %2559 = vrot.lane.b32.xlu0 %v2064, 112
        %v2560 = vpop.permute.xlu0 %2559
        %2561 = vrot.lane.b32.xlu0 %v2064, 80
        %v2562 = vpop.permute.xlu0 %2561
        %v2563 = vsel %vm753, %v2560, 0
        %v2565 = vsel %vm753, %v2562, 0
        %2567 = vmatprep.subr.mxu0 0.0
        %2568 = vmatpush1.xpose.msra.mxu0 %v2565
        %2569 = vmatprep.subr.mxu0 0.0
        %2570 = vmatpush1.xpose.msra.mxu0 0.0
        %2571 = vmatprep.subr.mxu0 0.0
        %2572 = vmatpush1.xpose.msra.mxu0 0.0
        %2573 = vmatprep.subr.mxu0 0.0
        %2574 = vmatpush1.xpose.msra.mxu0 0.0
        %2575 = vmatprep.subr.mxu0 0.0
        %2576 = vmatpush1.xpose.msra.mxu0 0.0
        %2577 = vmatprep.subr.mxu0 0.0
        %2578 = vmatpush1.xpose.msra.mxu0 0.0
        %2579 = vmatprep.subr.mxu0 0.0
        %2580 = vmatpush1.xpose.msra.mxu0 0.0
        %2581 = vmatprep.subr.mxu0 0.0
        %2582 = vmatpush1.xpose.msra.mxu0 0.0
        %2583 = vmatprep.subr.mxu0 0.0
        %2584 = vmatpush1.xpose.msra.mxu0 0.0
        %2585 = vmatprep.subr.mxu0 0.0
        %2586 = vmatpush1.xpose.msra.mxu0 0.0
        %2587 = vmatprep.subr.mxu0 0.0
        %2588 = vmatpush1.xpose.msra.mxu0 0.0
        %2589 = vmatprep.subr.mxu0 0.0
        %2590 = vmatpush1.xpose.msra.mxu0 0.0
        %2591 = vmatprep.subr.mxu0 0.0
        %2592 = vmatpush1.xpose.msra.mxu0 0.0
        %2593 = vmatprep.subr.mxu0 0.0
        %2594 = vmatpush1.xpose.msra.mxu0 0.0
        %2595 = vmatprep.subr.mxu0 0.0
        %2596 = vmatpush1.xpose.msra.mxu0 0.0
        %2597 = vmatprep.subr.mxu0 0.0
        %2598 = vmatpush1.xpose.msra.mxu0 0.0
        %2599 = vmatprep.subr.mxu0 0.0
        %2600 = vmatpush1.xpose.msra.mxu0 0.0
        %2601 = vmatprep.subr.mxu0 0.0
        %2602 = vmatpush1.xpose.msra.mxu0 0.0
        %2603 = vmatprep.subr.mxu0 0.0
        %2604 = vmatpush1.xpose.msra.mxu0 0.0
        %2605 = vmatprep.subr.mxu0 0.0
        %2606 = vmatpush1.xpose.msra.mxu0 0.0
        %2607 = vmatprep.subr.mxu0 0.0
        %2608 = vmatpush1.xpose.msra.mxu0 0.0
        %2609 = vmatprep.subr.mxu0 0.0
        %2610 = vmatpush1.xpose.msra.mxu0 0.0
        %2611 = vmatprep.subr.mxu0 0.0
        %2612 = vmatpush1.xpose.msra.mxu0 0.0
        %2613 = vmatprep.subr.mxu0 0.0
        %2614 = vmatpush1.xpose.msra.mxu0 0.0
        %2615 = vmatprep.subr.mxu0 0.0
        %2616 = vmatpush1.xpose.msra.mxu0 0.0
        %2617 = vmatprep.subr.mxu0 0.0
        %2618 = vmatpush1.xpose.msra.mxu0 0.0
        %2619 = vmatprep.subr.mxu0 0.0
        %2620 = vmatpush1.xpose.msra.mxu0 0.0
        %2621 = vmatprep.subr.mxu0 0.0
        %2622 = vmatpush1.xpose.msra.mxu0 0.0
        %2623 = vmatprep.subr.mxu0 0.0
        %2624 = vmatpush1.xpose.msra.mxu0 0.0
        %2625 = vmatprep.subr.mxu0 0.0
        %2626 = vmatpush1.xpose.msra.mxu0 0.0
        %2627 = vmatprep.subr.mxu0 0.0
        %2628 = vmatpush1.xpose.msra.mxu0 0.0
        %2629 = vmatprep.subr.mxu0 0.0
        %2630 = vmatpush1.xpose.msra.mxu0 0.0
        %2631 = vmatprep.mubr.f32.mxu0 0.0
        %2632 = vmatmul.mubr.f32.gmra.mrb[0].mxu0 %v2563
        %v2633 = vpop.f32.mrb[0].mxu0
        %v2634 = vadd.f32 0.0, %v2633
        %v2635 = vpop.f32.mrb[0].mxu0
        %2636 = vdwg.mxu0
        %v2637 = vmul.f32 %v2634, 0.35355338
        %v2638 = vsel %vm753, %v2637, -inf
        %2639 = vmax.xlane.f32.xlu0 %v2638
        %v2640 = vpop.xlane.xlu0 %2639
        %v2641 = vsub.f32 %v2637, %v2640
        %v2642 = vmul.f32 %v2641, 1.442695
        %v2643 = vpow.pop %v2642
        %v2644 = vsel %vm753, %v2643, 0.0
        %2645 = vadd.xlane.f32.xlu0 %v2644
        %v2646 = vpop.xlane.xlu0 %2645
        %v2647 = vrcp.pop %v2646
        %2648 = vrot.lane.b32.xlu0 %v2064, 48
        %v2649 = vpop.permute.xlu0 %2648
        %v2652 = vsel %vm753, %v2643, 0
        %2654 = vmatprep.subr.mxu0 0.0
        %2655 = vmatpush1.msra.mxu0 %v2649
        %2656 = vmatprep.subr.mxu0 0.0
        %2657 = vmatpush1.msra.mxu0 0.0
        %2658 = vmatprep.subr.mxu0 0.0
        %2659 = vmatpush1.msra.mxu0 0.0
        %2660 = vmatprep.subr.mxu0 0.0
        %2661 = vmatpush1.msra.mxu0 0.0
        %2662 = vmatprep.subr.mxu0 0.0
        %2663 = vmatpush1.msra.mxu0 0.0
        %2664 = vmatprep.subr.mxu0 0.0
        %2665 = vmatpush1.msra.mxu0 0.0
        %2666 = vmatprep.subr.mxu0 0.0
        %2667 = vmatpush1.msra.mxu0 0.0
        %2668 = vmatprep.subr.mxu0 0.0
        %2669 = vmatpush1.msra.mxu0 0.0
        %2670 = vmatprep.subr.mxu0 0.0
        %2671 = vmatpush1.msra.mxu0 0.0
        %2672 = vmatprep.subr.mxu0 0.0
        %2673 = vmatpush1.msra.mxu0 0.0
        %2674 = vmatprep.subr.mxu0 0.0
        %2675 = vmatpush1.msra.mxu0 0.0
        %2676 = vmatprep.subr.mxu0 0.0
        %2677 = vmatpush1.msra.mxu0 0.0
        %2678 = vmatprep.subr.mxu0 0.0
        %2679 = vmatpush1.msra.mxu0 0.0
        %2680 = vmatprep.subr.mxu0 0.0
        %2681 = vmatpush1.msra.mxu0 0.0
        %2682 = vmatprep.subr.mxu0 0.0
        %2683 = vmatpush1.msra.mxu0 0.0
        %2684 = vmatprep.subr.mxu0 0.0
        %2685 = vmatpush1.msra.mxu0 0.0
        %2686 = vmatprep.subr.mxu0 0.0
        %2687 = vmatpush1.msra.mxu0 0.0
        %2688 = vmatprep.subr.mxu0 0.0
        %2689 = vmatpush1.msra.mxu0 0.0
        %2690 = vmatprep.subr.mxu0 0.0
        %2691 = vmatpush1.msra.mxu0 0.0
        %2692 = vmatprep.subr.mxu0 0.0
        %2693 = vmatpush1.msra.mxu0 0.0
        %2694 = vmatprep.subr.mxu0 0.0
        %2695 = vmatpush1.msra.mxu0 0.0
        %2696 = vmatprep.subr.mxu0 0.0
        %2697 = vmatpush1.msra.mxu0 0.0
        %2698 = vmatprep.subr.mxu0 0.0
        %2699 = vmatpush1.msra.mxu0 0.0
        %2700 = vmatprep.subr.mxu0 0.0
        %2701 = vmatpush1.msra.mxu0 0.0
        %2702 = vmatprep.subr.mxu0 0.0
        %2703 = vmatpush1.msra.mxu0 0.0
        %2704 = vmatprep.subr.mxu0 0.0
        %2705 = vmatpush1.msra.mxu0 0.0
        %2706 = vmatprep.subr.mxu0 0.0
        %2707 = vmatpush1.msra.mxu0 0.0
        %2708 = vmatprep.subr.mxu0 0.0
        %2709 = vmatpush1.msra.mxu0 0.0
        %2710 = vmatprep.subr.mxu0 0.0
        %2711 = vmatpush1.msra.mxu0 0.0
        %2712 = vmatprep.subr.mxu0 0.0
        %2713 = vmatpush1.msra.mxu0 0.0
        %2714 = vmatprep.subr.mxu0 0.0
        %2715 = vmatpush1.msra.mxu0 0.0
        %2716 = vmatprep.subr.mxu0 0.0
        %2717 = vmatpush1.msra.mxu0 0.0
        %2718 = vmatprep.mubr.f32.mxu0 0.0
        %2719 = vmatmul.mubr.f32.gmra.mrb[0].mxu0 %v2652
        %v2720 = vpop.f32.mrb[0].mxu0
        %v2721 = vadd.f32 0.0, %v2720
        %v2722 = vpop.f32.mrb[0].mxu0
        %2723 = vdwg.mxu0
        %v2724 = vmul.f32 %v2721, %v2647
        %v2726 = vsel %vm753, %v2724, 0
        %2728 = vmatprep.subr.mxu0 0.0
        %2729 = vmatpush1.msra.mxu0 %v2070
        %2730 = vmatprep.subr.mxu0 0.0
        %2731 = vmatpush1.msra.mxu0 0.0
        %2732 = vmatprep.subr.mxu0 0.0
        %2733 = vmatpush1.msra.mxu0 0.0
        %2734 = vmatprep.subr.mxu0 0.0
        %2735 = vmatpush1.msra.mxu0 0.0
        %2736 = vmatprep.subr.mxu0 0.0
        %2737 = vmatpush1.msra.mxu0 0.0
        %2738 = vmatprep.subr.mxu0 0.0
        %2739 = vmatpush1.msra.mxu0 0.0
        %2740 = vmatprep.subr.mxu0 0.0
        %2741 = vmatpush1.msra.mxu0 0.0
        %2742 = vmatprep.subr.mxu0 0.0
        %2743 = vmatpush1.msra.mxu0 0.0
        %2744 = vmatprep.subr.mxu0 0.0
        %2745 = vmatpush1.msra.mxu0 0.0
        %2746 = vmatprep.subr.mxu0 0.0
        %2747 = vmatpush1.msra.mxu0 0.0
        %2748 = vmatprep.subr.mxu0 0.0
        %2749 = vmatpush1.msra.mxu0 0.0
        %2750 = vmatprep.subr.mxu0 0.0
        %2751 = vmatpush1.msra.mxu0 0.0
        %2752 = vmatprep.subr.mxu0 0.0
        %2753 = vmatpush1.msra.mxu0 0.0
        %2754 = vmatprep.subr.mxu0 0.0
        %2755 = vmatpush1.msra.mxu0 0.0
        %2756 = vmatprep.subr.mxu0 0.0
        %2757 = vmatpush1.msra.mxu0 0.0
        %2758 = vmatprep.subr.mxu0 0.0
        %2759 = vmatpush1.msra.mxu0 0.0
        %2760 = vmatprep.subr.mxu0 0.0
        %2761 = vmatpush1.msra.mxu0 0.0
        %2762 = vmatprep.subr.mxu0 0.0
        %2763 = vmatpush1.msra.mxu0 0.0
        %2764 = vmatprep.subr.mxu0 0.0
        %2765 = vmatpush1.msra.mxu0 0.0
        %2766 = vmatprep.subr.mxu0 0.0
        %2767 = vmatpush1.msra.mxu0 0.0
        %2768 = vmatprep.subr.mxu0 0.0
        %2769 = vmatpush1.msra.mxu0 0.0
        %2770 = vmatprep.subr.mxu0 0.0
        %2771 = vmatpush1.msra.mxu0 0.0
        %2772 = vmatprep.subr.mxu0 0.0
        %2773 = vmatpush1.msra.mxu0 0.0
        %2774 = vmatprep.subr.mxu0 0.0
        %2775 = vmatpush1.msra.mxu0 0.0
        %2776 = vmatprep.subr.mxu0 0.0
        %2777 = vmatpush1.msra.mxu0 0.0
        %2778 = vmatprep.subr.mxu0 0.0
        %2779 = vmatpush1.msra.mxu0 0.0
        %2780 = vmatprep.subr.mxu0 0.0
        %2781 = vmatpush1.msra.mxu0 0.0
        %2782 = vmatprep.subr.mxu0 0.0
        %2783 = vmatpush1.msra.mxu0 0.0
        %2784 = vmatprep.subr.mxu0 0.0
        %2785 = vmatpush1.msra.mxu0 0.0
        %2786 = vmatprep.subr.mxu0 0.0
        %2787 = vmatpush1.msra.mxu0 0.0
        %2788 = vmatprep.subr.mxu0 0.0
        %2789 = vmatpush1.msra.mxu0 0.0
        %2790 = vmatprep.subr.mxu0 0.0
        %2791 = vmatpush1.msra.mxu0 0.0
        %2792 = vmatprep.mubr.f32.mxu0 0.0
        %2793 = vmatmul.mubr.f32.gmra.mrb[0].mxu0 %v2726
        %v2794 = vpop.f32.mrb[0].mxu0
        %v2795 = vadd.f32 0.0, %v2794
        %v2796 = vpop.f32.mrb[0].mxu0
        %2797 = vdwg.mxu0
        %v2798 = vadd.f32 %v2558, %v2795
        %2799 = vrot.lane.b32.xlu0 %v2064, 104
        %v2800 = vpop.permute.xlu0 %2799
        %2801 = vrot.lane.b32.xlu0 %v2064, 72
        %v2802 = vpop.permute.xlu0 %2801
        %v2803 = vsel %vm753, %v2800, 0
        %v2805 = vsel %vm753, %v2802, 0
        %2807 = vmatprep.subr.mxu0 0.0
        %2808 = vmatpush1.xpose.msra.mxu0 %v2805
        %2809 = vmatprep.subr.mxu0 0.0
        %2810 = vmatpush1.xpose.msra.mxu0 0.0
        %2811 = vmatprep.subr.mxu0 0.0
        %2812 = vmatpush1.xpose.msra.mxu0 0.0
        %2813 = vmatprep.subr.mxu0 0.0
        %2814 = vmatpush1.xpose.msra.mxu0 0.0
        %2815 = vmatprep.subr.mxu0 0.0
        %2816 = vmatpush1.xpose.msra.mxu0 0.0
        %2817 = vmatprep.subr.mxu0 0.0
        %2818 = vmatpush1.xpose.msra.mxu0 0.0
        %2819 = vmatprep.subr.mxu0 0.0
        %2820 = vmatpush1.xpose.msra.mxu0 0.0
        %2821 = vmatprep.subr.mxu0 0.0
        %2822 = vmatpush1.xpose.msra.mxu0 0.0
        %2823 = vmatprep.subr.mxu0 0.0
        %2824 = vmatpush1.xpose.msra.mxu0 0.0
        %2825 = vmatprep.subr.mxu0 0.0
        %2826 = vmatpush1.xpose.msra.mxu0 0.0
        %2827 = vmatprep.subr.mxu0 0.0
        %2828 = vmatpush1.xpose.msra.mxu0 0.0
        %2829 = vmatprep.subr.mxu0 0.0
        %2830 = vmatpush1.xpose.msra.mxu0 0.0
        %2831 = vmatprep.subr.mxu0 0.0
        %2832 = vmatpush1.xpose.msra.mxu0 0.0
        %2833 = vmatprep.subr.mxu0 0.0
        %2834 = vmatpush1.xpose.msra.mxu0 0.0
        %2835 = vmatprep.subr.mxu0 0.0
        %2836 = vmatpush1.xpose.msra.mxu0 0.0
        %2837 = vmatprep.subr.mxu0 0.0
        %2838 = vmatpush1.xpose.msra.mxu0 0.0
        %2839 = vmatprep.subr.mxu0 0.0
        %2840 = vmatpush1.xpose.msra.mxu0 0.0
        %2841 = vmatprep.subr.mxu0 0.0
        %2842 = vmatpush1.xpose.msra.mxu0 0.0
        %2843 = vmatprep.subr.mxu0 0.0
        %2844 = vmatpush1.xpose.msra.mxu0 0.0
        %2845 = vmatprep.subr.mxu0 0.0
        %2846 = vmatpush1.xpose.msra.mxu0 0.0
        %2847 = vmatprep.subr.mxu0 0.0
        %2848 = vmatpush1.xpose.msra.mxu0 0.0
        %2849 = vmatprep.subr.mxu0 0.0
        %2850 = vmatpush1.xpose.msra.mxu0 0.0
        %2851 = vmatprep.subr.mxu0 0.0
        %2852 = vmatpush1.xpose.msra.mxu0 0.0
        %2853 = vmatprep.subr.mxu0 0.0
        %2854 = vmatpush1.xpose.msra.mxu0 0.0
        %2855 = vmatprep.subr.mxu0 0.0
        %2856 = vmatpush1.xpose.msra.mxu0 0.0
        %2857 = vmatprep.subr.mxu0 0.0
        %2858 = vmatpush1.xpose.msra.mxu0 0.0
        %2859 = vmatprep.subr.mxu0 0.0
        %2860 = vmatpush1.xpose.msra.mxu0 0.0
        %2861 = vmatprep.subr.mxu0 0.0
        %2862 = vmatpush1.xpose.msra.mxu0 0.0
        %2863 = vmatprep.subr.mxu0 0.0
        %2864 = vmatpush1.xpose.msra.mxu0 0.0
        %2865 = vmatprep.subr.mxu0 0.0
        %2866 = vmatpush1.xpose.msra.mxu0 0.0
        %2867 = vmatprep.subr.mxu0 0.0
        %2868 = vmatpush1.xpose.msra.mxu0 0.0
        %2869 = vmatprep.subr.mxu0 0.0
        %2870 = vmatpush1.xpose.msra.mxu0 0.0
        %2871 = vmatprep.mubr.f32.mxu0 0.0
        %2872 = vmatmul.mubr.f32.gmra.mrb[0].mxu0 %v2803
        %v2873 = vpop.f32.mrb[0].mxu0
        %v2874 = vadd.f32 0.0, %v2873
        %v2875 = vpop.f32.mrb[0].mxu0
        %2876 = vdwg.mxu0
        %v2877 = vmul.f32 %v2874, 0.35355338
        %v2878 = vsel %vm753, %v2877, -inf
        %2879 = vmax.xlane.f32.xlu0 %v2878
        %v2880 = vpop.xlane.xlu0 %2879
        %v2881 = vsub.f32 %v2877, %v2880
        %v2882 = vmul.f32 %v2881, 1.442695
        %v2883 = vpow.pop %v2882
        %v2884 = vsel %vm753, %v2883, 0.0
        %2885 = vadd.xlane.f32.xlu0 %v2884
        %v2886 = vpop.xlane.xlu0 %2885
        %v2887 = vrcp.pop %v2886
        %2888 = vrot.lane.b32.xlu0 %v2064, 40
        %v2889 = vpop.permute.xlu0 %2888
        %v2892 = vsel %vm753, %v2883, 0
        %2894 = vmatprep.subr.mxu0 0.0
        %2895 = vmatpush1.msra.mxu0 %v2889
        %2896 = vmatprep.subr.mxu0 0.0
        %2897 = vmatpush1.msra.mxu0 0.0
        %2898 = vmatprep.subr.mxu0 0.0
        %2899 = vmatpush1.msra.mxu0 0.0
        %2900 = vmatprep.subr.mxu0 0.0
        %2901 = vmatpush1.msra.mxu0 0.0
        %2902 = vmatprep.subr.mxu0 0.0
        %2903 = vmatpush1.msra.mxu0 0.0
        %2904 = vmatprep.subr.mxu0 0.0
        %2905 = vmatpush1.msra.mxu0 0.0
        %2906 = vmatprep.subr.mxu0 0.0
        %2907 = vmatpush1.msra.mxu0 0.0
        %2908 = vmatprep.subr.mxu0 0.0
        %2909 = vmatpush1.msra.mxu0 0.0
        %2910 = vmatprep.subr.mxu0 0.0
        %2911 = vmatpush1.msra.mxu0 0.0
        %2912 = vmatprep.subr.mxu0 0.0
        %2913 = vmatpush1.msra.mxu0 0.0
        %2914 = vmatprep.subr.mxu0 0.0
        %2915 = vmatpush1.msra.mxu0 0.0
        %2916 = vmatprep.subr.mxu0 0.0
        %2917 = vmatpush1.msra.mxu0 0.0
        %2918 = vmatprep.subr.mxu0 0.0
        %2919 = vmatpush1.msra.mxu0 0.0
        %2920 = vmatprep.subr.mxu0 0.0
        %2921 = vmatpush1.msra.mxu0 0.0
        %2922 = vmatprep.subr.mxu0 0.0
        %2923 = vmatpush1.msra.mxu0 0.0
        %2924 = vmatprep.subr.mxu0 0.0
        %2925 = vmatpush1.msra.mxu0 0.0
        %2926 = vmatprep.subr.mxu0 0.0
        %2927 = vmatpush1.msra.mxu0 0.0
        %2928 = vmatprep.subr.mxu0 0.0
        %2929 = vmatpush1.msra.mxu0 0.0
        %2930 = vmatprep.subr.mxu0 0.0
        %2931 = vmatpush1.msra.mxu0 0.0
        %2932 = vmatprep.subr.mxu0 0.0
        %2933 = vmatpush1.msra.mxu0 0.0
        %2934 = vmatprep.subr.mxu0 0.0
        %2935 = vmatpush1.msra.mxu0 0.0
        %2936 = vmatprep.subr.mxu0 0.0
        %2937 = vmatpush1.msra.mxu0 0.0
        %2938 = vmatprep.subr.mxu0 0.0
        %2939 = vmatpush1.msra.mxu0 0.0
        %2940 = vmatprep.subr.mxu0 0.0
        %2941 = vmatpush1.msra.mxu0 0.0
        %2942 = vmatprep.subr.mxu0 0.0
        %2943 = vmatpush1.msra.mxu0 0.0
        %2944 = vmatprep.subr.mxu0 0.0
        %2945 = vmatpush1.msra.mxu0 0.0
        %2946 = vmatprep.subr.mxu0 0.0
        %2947 = vmatpush1.msra.mxu0 0.0
        %2948 = vmatprep.subr.mxu0 0.0
        %2949 = vmatpush1.msra.mxu0 0.0
        %2950 = vmatprep.subr.mxu0 0.0
        %2951 = vmatpush1.msra.mxu0 0.0
        %2952 = vmatprep.subr.mxu0 0.0
        %2953 = vmatpush1.msra.mxu0 0.0
        %2954 = vmatprep.subr.mxu0 0.0
        %2955 = vmatpush1.msra.mxu0 0.0
        %2956 = vmatprep.subr.mxu0 0.0
        %2957 = vmatpush1.msra.mxu0 0.0
        %2958 = vmatprep.mubr.f32.mxu0 0.0
        %2959 = vmatmul.mubr.f32.gmra.mrb[0].mxu0 %v2892
        %v2960 = vpop.f32.mrb[0].mxu0
        %v2961 = vadd.f32 0.0, %v2960
        %v2962 = vpop.f32.mrb[0].mxu0
        %2963 = vdwg.mxu0
        %v2964 = vmul.f32 %v2961, %v2887
        %v2966 = vsel %vm753, %v2964, 0
        %2968 = vmatprep.subr.mxu0 0.0
        %2969 = vmatpush1.msra.mxu0 %v2071
        %2970 = vmatprep.subr.mxu0 0.0
        %2971 = vmatpush1.msra.mxu0 0.0
        %2972 = vmatprep.subr.mxu0 0.0
        %2973 = vmatpush1.msra.mxu0 0.0
        %2974 = vmatprep.subr.mxu0 0.0
        %2975 = vmatpush1.msra.mxu0 0.0
        %2976 = vmatprep.subr.mxu0 0.0
        %2977 = vmatpush1.msra.mxu0 0.0
        %2978 = vmatprep.subr.mxu0 0.0
        %2979 = vmatpush1.msra.mxu0 0.0
        %2980 = vmatprep.subr.mxu0 0.0
        %2981 = vmatpush1.msra.mxu0 0.0
        %2982 = vmatprep.subr.mxu0 0.0
        %2983 = vmatpush1.msra.mxu0 0.0
        %2984 = vmatprep.subr.mxu0 0.0
        %2985 = vmatpush1.msra.mxu0 0.0
        %2986 = vmatprep.subr.mxu0 0.0
        %2987 = vmatpush1.msra.mxu0 0.0
        %2988 = vmatprep.subr.mxu0 0.0
        %2989 = vmatpush1.msra.mxu0 0.0
        %2990 = vmatprep.subr.mxu0 0.0
        %2991 = vmatpush1.msra.mxu0 0.0
        %2992 = vmatprep.subr.mxu0 0.0
        %2993 = vmatpush1.msra.mxu0 0.0
        %2994 = vmatprep.subr.mxu0 0.0
        %2995 = vmatpush1.msra.mxu0 0.0
        %2996 = vmatprep.subr.mxu0 0.0
        %2997 = vmatpush1.msra.mxu0 0.0
        %2998 = vmatprep.subr.mxu0 0.0
        %2999 = vmatpush1.msra.mxu0 0.0
        %3000 = vmatprep.subr.mxu0 0.0
        %3001 = vmatpush1.msra.mxu0 0.0
        %3002 = vmatprep.subr.mxu0 0.0
        %3003 = vmatpush1.msra.mxu0 0.0
        %3004 = vmatprep.subr.mxu0 0.0
        %3005 = vmatpush1.msra.mxu0 0.0
        %3006 = vmatprep.subr.mxu0 0.0
        %3007 = vmatpush1.msra.mxu0 0.0
        %3008 = vmatprep.subr.mxu0 0.0
        %3009 = vmatpush1.msra.mxu0 0.0
        %3010 = vmatprep.subr.mxu0 0.0
        %3011 = vmatpush1.msra.mxu0 0.0
        %3012 = vmatprep.subr.mxu0 0.0
        %3013 = vmatpush1.msra.mxu0 0.0
        %3014 = vmatprep.subr.mxu0 0.0
        %3015 = vmatpush1.msra.mxu0 0.0
        %3016 = vmatprep.subr.mxu0 0.0
        %3017 = vmatpush1.msra.mxu0 0.0
        %3018 = vmatprep.subr.mxu0 0.0
        %3019 = vmatpush1.msra.mxu0 0.0
        %3020 = vmatprep.subr.mxu0 0.0
        %3021 = vmatpush1.msra.mxu0 0.0
        %3022 = vmatprep.subr.mxu0 0.0
        %3023 = vmatpush1.msra.mxu0 0.0
        %3024 = vmatprep.subr.mxu0 0.0
        %3025 = vmatpush1.msra.mxu0 0.0
        %3026 = vmatprep.subr.mxu0 0.0
        %3027 = vmatpush1.msra.mxu0 0.0
        %3028 = vmatprep.subr.mxu0 0.0
        %3029 = vmatpush1.msra.mxu0 0.0
        %3030 = vmatprep.subr.mxu0 0.0
        %3031 = vmatpush1.msra.mxu0 0.0
        %3032 = vmatprep.mubr.f32.mxu0 0.0
        %3033 = vmatmul.mubr.f32.gmra.mrb[0].mxu0 %v2966
        %v3034 = vpop.f32.mrb[0].mxu0
        %v3035 = vadd.f32 0.0, %v3034
        %v3036 = vpop.f32.mrb[0].mxu0
        %3037 = vdwg.mxu0
        %v3038 = vadd.f32 %v2798, %v3035
        %v3039 = vadd.f32 %v1980, %v3038
        %s3040 = scalar_lea.vmem %s8, 1
        %v3041 = vld [vmem:[%s3040] sm:$0x1]
        %s3042 = scalar_lea.vmem %s9, 1
        %v3043 = vld [vmem:[%s3042] sm:$0x1]
        %v3044 = vsel %vm671, %v3039, 0.0
        %3045 = vadd.xlane.f32.xlu0 %v3044
        %v3046 = vpop.xlane.xlu0 %3045
        %v3047 = vmul.f32 %v3046, %v1722
        %v3048 = vsub.f32 %v3039, %v3047
        %v3049 = vmul.f32 %v3048, %v3048
        %v3050 = vsel %vm671, %v3049, 0.0
        %3051 = vadd.xlane.f32.xlu0 %v3050
        %v3052 = vpop.xlane.xlu0 %3051
        %v3053 = vmul.f32 %v3052, %v1722
        %v3054 = vadd.f32 %v3053, 1e-05
        %v3055 = vrsqrt.pop %v3054
        %v3056 = vmul.f32 %v3048, %v3055
        %v3058 = vlaneseq
        %v3059 = vshrl.u32 %v3058, 7
        %v3060 = vsub.s32 0, %v3059
        %v3061 = vrot.slane %v3041, %v3060
        %v3063 = vmul.f32 %v3056, %v3061
        %v3065 = vlaneseq
        %v3066 = vshrl.u32 %v3065, 7
        %v3067 = vsub.s32 0, %v3066
        %v3068 = vrot.slane %v3043, %v3067
        %v3070 = vadd.f32 %v3063, %v3068
        %s3071 = scalar_lea.vmem %s10, 32
        %v3072 = vld [vmem:[%s3071] sm:$0xff]
        %v3073 = vld [vmem:[%s3071 + $0x8] sm:$0xff]
        %v3074 = vld [vmem:[%s3071 + $0x10] sm:$0xff]
        %v3075 = vld [vmem:[%s3071 + $0x18] sm:$0xff]
        %s3076 = scalar_lea.vmem %s11, 1
        %v3077 = vld [vmem:[%s3076] sm:$0x1]
        %v3079 = vlaneseq
        %v3080 = vshrl.u32 %v3079, 7
        %v3081 = vsub.s32 0, %v3080
        %v3082 = vrot.slane %v3077, %v3081
        %v3085 = vsel %vm671, %v3070, 0
        %3087 = vmatprep.subr.mxu0 0.0
        %3088 = vmatpush1.msra.mxu0 %v3072
        %3089 = vmatprep.subr.mxu0 0.0
        %3090 = vmatpush1.msra.mxu0 %v3073
        %3091 = vmatprep.subr.mxu0 0.0
        %3092 = vmatpush1.msra.mxu0 %v3074
        %3093 = vmatprep.subr.mxu0 0.0
        %3094 = vmatpush1.msra.mxu0 %v3075
        %3095 = vmatprep.subr.mxu0 0.0
        %3096 = vmatpush1.msra.mxu0 0.0
        %3097 = vmatprep.subr.mxu0 0.0
        %3098 = vmatpush1.msra.mxu0 0.0
        %3099 = vmatprep.subr.mxu0 0.0
        %3100 = vmatpush1.msra.mxu0 0.0
        %3101 = vmatprep.subr.mxu0 0.0
        %3102 = vmatpush1.msra.mxu0 0.0
        %3103 = vmatprep.subr.mxu0 0.0
        %3104 = vmatpush1.msra.mxu0 0.0
        %3105 = vmatprep.subr.mxu0 0.0
        %3106 = vmatpush1.msra.mxu0 0.0
        %3107 = vmatprep.subr.mxu0 0.0
        %3108 = vmatpush1.msra.mxu0 0.0
        %3109 = vmatprep.subr.mxu0 0.0
        %3110 = vmatpush1.msra.mxu0 0.0
        %3111 = vmatprep.subr.mxu0 0.0
        %3112 = vmatpush1.msra.mxu0 0.0
        %3113 = vmatprep.subr.mxu0 0.0
        %3114 = vmatpush1.msra.mxu0 0.0
        %3115 = vmatprep.subr.mxu0 0.0
        %3116 = vmatpush1.msra.mxu0 0.0
        %3117 = vmatprep.subr.mxu0 0.0
        %3118 = vmatpush1.msra.mxu0 0.0
        %3119 = vmatprep.subr.mxu0 0.0
        %3120 = vmatpush1.msra.mxu0 0.0
        %3121 = vmatprep.subr.mxu0 0.0
        %3122 = vmatpush1.msra.mxu0 0.0
        %3123 = vmatprep.subr.mxu0 0.0
        %3124 = vmatpush1.msra.mxu0 0.0
        %3125 = vmatprep.subr.mxu0 0.0
        %3126 = vmatpush1.msra.mxu0 0.0
        %3127 = vmatprep.subr.mxu0 0.0
        %3128 = vmatpush1.msra.mxu0 0.0
        %3129 = vmatprep.subr.mxu0 0.0
        %3130 = vmatpush1.msra.mxu0 0.0
        %3131 = vmatprep.subr.mxu0 0.0
        %3132 = vmatpush1.msra.mxu0 0.0
        %3133 = vmatprep.subr.mxu0 0.0
        %3134 = vmatpush1.msra.mxu0 0.0
        %3135 = vmatprep.subr.mxu0 0.0
        %3136 = vmatpush1.msra.mxu0 0.0
        %3137 = vmatprep.subr.mxu0 0.0
        %3138 = vmatpush1.msra.mxu0 0.0
        %3139 = vmatprep.subr.mxu0 0.0
        %3140 = vmatpush1.msra.mxu0 0.0
        %3141 = vmatprep.subr.mxu0 0.0
        %3142 = vmatpush1.msra.mxu0 0.0
        %3143 = vmatprep.subr.mxu0 0.0
        %3144 = vmatpush1.msra.mxu0 0.0
        %3145 = vmatprep.subr.mxu0 0.0
        %3146 = vmatpush1.msra.mxu0 0.0
        %3147 = vmatprep.subr.mxu0 0.0
        %3148 = vmatpush1.msra.mxu0 0.0
        %3149 = vmatprep.subr.mxu0 0.0
        %3150 = vmatpush1.msra.mxu0 0.0
        %3151 = vmatprep.mubr.f32.mxu0 0.0
        %3152 = vmatmul.mubr.f32.gmra.mrb[0].mxu0 %v3085
        %v3153 = vpop.f32.mrb[0].mxu0
        %v3154 = vadd.f32 %v3082, %v3153
        %v3155 = vpop.f32.mrb[0].mxu0
        %3156 = vdwg.mxu0
        %v3157 = vmul.f32 %v3154, 0.5
        %v3158 = vmul.f32 %v3154, 0.70710677
        %v3159 = vand.u32 2147483647, %v3158
        %v3160 = vmul.f32 %v3159, 0.3275911
        %v3161 = vadd.f32 %v3160, 1.0
        %v3162 = vrcp.pop %v3161
        %v3163 = vmul.f32 1.0, %v3162
        %v3164 = vmul.f32 %v3163, 1.0614054
        %v3165 = vadd.f32 %v3164, -1.4531521
        %v3166 = vmul.f32 %v3165, %v3163
        %v3167 = vadd.f32 %v3166, 1.4214138
        %v3168 = vmul.f32 %v3167, %v3163
        %v3169 = vadd.f32 %v3168, -0.28449672
        %v3170 = vmul.f32 %v3169, %v3163
        %v3171 = vadd.f32 %v3170, 0.2548296
        %v3172 = vmul.f32 %v3171, %v3163
        %v3173 = vsub.f32 0.0, %v3159
        %v3174 = vmul.f32 %v3173, %v3159
        %v3175 = vmul.f32 %v3174, 1.442695
        %v3176 = vpow.pop %v3175
        %v3177 = vmul.f32 %v3172, %v3176
        %v3178 = vsub.f32 1.0, %v3177
        %vm3179 = vcmp.lt.f32.partialorder %v3158, 0.0
        %v3180 = vsub.f32 0.0, %v3178
        %v3181 = vsel %vm3179, %v3180, %v3178
        %v3182 = vadd.f32 %v3181, 1.0
        %v3183 = vmul.f32 %v3157, %v3182
        %s3184 = scalar_lea.vmem %s12, 128
        %v3185 = vld [vmem:[%s3184] sm:$0xff]
        %v3186 = vld [vmem:[%s3184 + $0x8] sm:$0xff]
        %v3187 = vld [vmem:[%s3184 + $0x10] sm:$0xff]
        %v3188 = vld [vmem:[%s3184 + $0x18] sm:$0xff]
        %v3189 = vld [vmem:[%s3184 + $0x20] sm:$0xff]
        %v3190 = vld [vmem:[%s3184 + $0x28] sm:$0xff]
        %v3191 = vld [vmem:[%s3184 + $0x30] sm:$0xff]
        %v3192 = vld [vmem:[%s3184 + $0x38] sm:$0xff]
        %v3193 = vld [vmem:[%s3184 + $0x40] sm:$0xff]
        %v3194 = vld [vmem:[%s3184 + $0x48] sm:$0xff]
        %v3195 = vld [vmem:[%s3184 + $0x50] sm:$0xff]
        %v3196 = vld [vmem:[%s3184 + $0x58] sm:$0xff]
        %v3197 = vld [vmem:[%s3184 + $0x60] sm:$0xff]
        %v3198 = vld [vmem:[%s3184 + $0x68] sm:$0xff]
        %v3199 = vld [vmem:[%s3184 + $0x70] sm:$0xff]
        %v3200 = vld [vmem:[%s3184 + $0x78] sm:$0xff]
        %s3201 = scalar_lea.vmem %s13, 1
        %v3202 = vld [vmem:[%s3201] sm:$0x1]
        %v3204 = vlaneseq
        %v3205 = vshrl.u32 %v3204, 7
        %v3206 = vsub.s32 0, %v3205
        %v3207 = vrot.slane %v3202, %v3206
        %3209 = vmatprep.subr.mxu0 0.0
        %3210 = vmatpush1.msra.mxu0 %v3185
        %3211 = vmatprep.subr.mxu0 0.0
        %3212 = vmatpush1.msra.mxu0 %v3186
        %3213 = vmatprep.subr.mxu0 0.0
        %3214 = vmatpush1.msra.mxu0 %v3187
        %3215 = vmatprep.subr.mxu0 0.0
        %3216 = vmatpush1.msra.mxu0 %v3188
        %3217 = vmatprep.subr.mxu0 0.0
        %3218 = vmatpush1.msra.mxu0 %v3189
        %3219 = vmatprep.subr.mxu0 0.0
        %3220 = vmatpush1.msra.mxu0 %v3190
        %3221 = vmatprep.subr.mxu0 0.0
        %3222 = vmatpush1.msra.mxu0 %v3191
        %3223 = vmatprep.subr.mxu0 0.0
        %3224 = vmatpush1.msra.mxu0 %v3192
        %3225 = vmatprep.subr.mxu0 0.0
        %3226 = vmatpush1.msra.mxu0 %v3193
        %3227 = vmatprep.subr.mxu0 0.0
        %3228 = vmatpush1.msra.mxu0 %v3194
        %3229 = vmatprep.subr.mxu0 0.0
        %3230 = vmatpush1.msra.mxu0 %v3195
        %3231 = vmatprep.subr.mxu0 0.0
        %3232 = vmatpush1.msra.mxu0 %v3196
        %3233 = vmatprep.subr.mxu0 0.0
        %3234 = vmatpush1.msra.mxu0 %v3197
        %3235 = vmatprep.subr.mxu0 0.0
        %3236 = vmatpush1.msra.mxu0 %v3198
        %3237 = vmatprep.subr.mxu0 0.0
        %3238 = vmatpush1.msra.mxu0 %v3199
        %3239 = vmatprep.subr.mxu0 0.0
        %3240 = vmatpush1.msra.mxu0 %v3200
        %3241 = vmatprep.subr.mxu0 0.0
        %3242 = vmatpush1.msra.mxu0 0.0
        %3243 = vmatprep.subr.mxu0 0.0
        %3244 = vmatpush1.msra.mxu0 0.0
        %3245 = vmatprep.subr.mxu0 0.0
        %3246 = vmatpush1.msra.mxu0 0.0
        %3247 = vmatprep.subr.mxu0 0.0
        %3248 = vmatpush1.msra.mxu0 0.0
        %3249 = vmatprep.subr.mxu0 0.0
        %3250 = vmatpush1.msra.mxu0 0.0
        %3251 = vmatprep.subr.mxu0 0.0
        %3252 = vmatpush1.msra.mxu0 0.0
        %3253 = vmatprep.subr.mxu0 0.0
        %3254 = vmatpush1.msra.mxu0 0.0
        %3255 = vmatprep.subr.mxu0 0.0
        %3256 = vmatpush1.msra.mxu0 0.0
        %3257 = vmatprep.subr.mxu0 0.0
        %3258 = vmatpush1.msra.mxu0 0.0
        %3259 = vmatprep.subr.mxu0 0.0
        %3260 = vmatpush1.msra.mxu0 0.0
        %3261 = vmatprep.subr.mxu0 0.0
        %3262 = vmatpush1.msra.mxu0 0.0
        %3263 = vmatprep.subr.mxu0 0.0
        %3264 = vmatpush1.msra.mxu0 0.0
        %3265 = vmatprep.subr.mxu0 0.0
        %3266 = vmatpush1.msra.mxu0 0.0
        %3267 = vmatprep.subr.mxu0 0.0
        %3268 = vmatpush1.msra.mxu0 0.0
        %3269 = vmatprep.subr.mxu0 0.0
        %3270 = vmatpush1.msra.mxu0 0.0
        %3271 = vmatprep.subr.mxu0 0.0
        %3272 = vmatpush1.msra.mxu0 0.0
        %3273 = vmatprep.mubr.f32.mxu0 0.0
        %3274 = vmatmul.mubr.f32.gmra.mrb[0].mxu0 %v3183
        %v3275 = vpop.f32.mrb[0].mxu0
        %v3276 = vadd.f32 %v3207, %v3275
        %v3277 = vpop.f32.mrb[0].mxu0
        %3278 = vdwg.mxu0
        %v3279 = vadd.f32 %v3070, %v3276
        %s3280 = scalar_lea.vmem %s14, 1
        %v3281 = vld [vmem:[%s3280] sm:$0x1]
        %s3282 = scalar_lea.vmem %s15, 1
        %v3283 = vld [vmem:[%s3282] sm:$0x1]
        %v3284 = vsel %vm671, %v3279, 0.0
        %3285 = vadd.xlane.f32.xlu0 %v3284
        %v3286 = vpop.xlane.xlu0 %3285
        %v3287 = vmul.f32 %v3286, %v1722
        %v3288 = vsub.f32 %v3279, %v3287
        %v3289 = vmul.f32 %v3288, %v3288
        %v3290 = vsel %vm671, %v3289, 0.0
        %3291 = vadd.xlane.f32.xlu0 %v3290
        %v3292 = vpop.xlane.xlu0 %3291
        %v3293 = vmul.f32 %v3292, %v1722
        %v3294 = vadd.f32 %v3293, 1e-05
        %v3295 = vrsqrt.pop %v3294
        %v3296 = vmul.f32 %v3288, %v3295
        %v3298 = vlaneseq
        %v3299 = vshrl.u32 %v3298, 7
        %v3300 = vsub.s32 0, %v3299
        %v3301 = vrot.slane %v3281, %v3300
        %v3303 = vmul.f32 %v3296, %v3301
        %v3305 = vlaneseq
        %v3306 = vshrl.u32 %v3305, 7
        %v3307 = vsub.s32 0, %v3306
        %v3308 = vrot.slane %v3283, %v3307
        %v3310 = vadd.f32 %v3303, %v3308
        %v3311 = vld [vmem:[%s16] sm:$0x1]
        %v3312 = vld [vmem:[%s17] sm:$0x1]
        %v3313 = vsel %vm671, %v3310, 0.0
        %3314 = vadd.xlane.f32.xlu0 %v3313
        %v3315 = vpop.xlane.xlu0 %3314
        %v3316 = vmul.f32 %v3315, %v1722
        %v3317 = vsub.f32 %v3310, %v3316
        %v3318 = vmul.f32 %v3317, %v3317
        %v3319 = vsel %vm671, %v3318, 0.0
        %3320 = vadd.xlane.f32.xlu0 %v3319
        %v3321 = vpop.xlane.xlu0 %3320
        %v3322 = vmul.f32 %v3321, %v1722
        %v3323 = vadd.f32 %v3322, 1e-05
        %v3324 = vrsqrt.pop %v3323
        %v3325 = vmul.f32 %v3317, %v3324
        %v3327 = vlaneseq
        %v3328 = vshrl.u32 %v3327, 7
        %v3329 = vsub.s32 0, %v3328
        %v3330 = vrot.slane %v3311, %v3329
        %v3332 = vmul.f32 %v3325, %v3330
        %v3334 = vlaneseq
        %v3335 = vshrl.u32 %v3334, 7
        %v3336 = vsub.s32 0, %v3335
        %v3337 = vrot.slane %v3312, %v3336
        %v3339 = vadd.f32 %v3332, %v3337
        %3340 = vst.msk [vmem:[%s566] sm:$0xff] %vm671, %v3339
        %s3341 = sand.u32 %s423, 1
        %s3342 = scalar_lea.sflag [#allocation3], %s3341
        %s3343 = sand.u32 %s423, 1
        %s3344 = smul.addr %s3343, 8
        %s3345 = scalar_lea.vmem [#allocation2], %s3344
        // Predicated region
        $region93: #{encoder_forward.1} parent=91 // pred_check
          %p3346 = pneg %p433
        $region94: #{encoder_forward.1} parent=91 // pred_check_branch
          %3348 = sbr.rel (%p3346) target = $region96
        $region95: #{encoder_forward.1} parent=91 // pred_region
          %s3350 = ssub.s32 128, 128
          %3351 = vsyncadd %s3342, %s3350
          %s3352 = smul.addr %s32, 128
          %s3353 = scalar_lea.hbm %s18, %s3352
          %s3355 = sshll.u32 %s3345, 4
          %s3356 = int_to_ptr.vmem [resolvable:$true] %s3355
          %3358 = dma.vmem_to_hbm [thread:$0]  %s3356, 128, %s3353, %s3342
        $region96: #{encoder_forward.1} parent=91 // pred_fallthru
          _
      $region92: #{encoder_forward.1} parent=5 // pred_fallthru
        _
      %p3359 = scmp.le.s32.totalorder 2, %s27
      // Predicated region
      $region97: #{encoder_forward.1} parent=5 // pred_check
        %p3360 = pneg %p3359
      $region98: #{encoder_forward.1} parent=5 // pred_check_branch
        %3362 = sbr.rel (%p3360) target = $region100
      $region99: #{encoder_forward.1} parent=5 // pred_region
        %s3363 = ssub.s32 %s27, 2
        // Predicated region
        $region101: #{encoder_forward.1} parent=99 // pred_check
          %p3364 = pneg %p439
        $region102: #{encoder_forward.1} parent=99 // pred_check_branch
          %3366 = sbr.rel (%p3364) target = $region104
        $region103: #{encoder_forward.1} parent=99 // pred_region
          %s3367 = sand.u32 %s424, 1
          %s3368 = scalar_lea.sflag [#allocation3], %s3367
          %s3369 = sand.u32 %s424, 1
          %s3370 = smul.addr %s3369, 8
          %s3371 = scalar_lea.vmem [#allocation2], %s3370
          %3372 = dma.done %s3368, 128
        $region104: #{encoder_forward.1} parent=99 // pred_fallthru
          _
      $region100: #{encoder_forward.1} parent=5 // pred_fallthru
        _
    $region6: #{encoder_forward.1} parent=1 // loop_footer
      %s31 = sadd.s32 1, %s27
    $region7: #{encoder_forward.1} parent=1 // loop_footer_branch
      %26 = sbr.rel target = $region3
    $region8: #{encoder_forward.1} parent=1 // loop_exit
      _
    %3373 = vsyncpa [#allocation3], 1
    %s3374 = scalar_lea.sflag [#allocation3], 1
    %3375 = vsyncpa %s3374, 1

</llo_original>
